<compile_context>
chip_gen: v6e
topology: v6e:2x2x1
jax: 0.10.0
libtpu: 0.0.40
codegen_flags: <defaults>
</compile_context>

<pallas_src>
import functools

import jax
import jax.numpy as jnp
from jax.experimental import pallas as pl
from jax.experimental.pallas import tpu as pltpu

LEAK = 0.2
MASK_CST = -1.0


def _leaky_relu(x, leak=LEAK):
    # one mul + one max instead of compare+select+mul
    return jnp.maximum(x, leak * x)


def _round_up(v, m):
    return (v + m - 1) // m * m


def mesh_des_kernel(x_ref,
                    w1_ref, b1_ref, w2_ref, b2_ref, w3_ref, b3_ref, w4_ref, b4_ref,
                    w5_ref, b5_ref, w6_ref, b6_ref, w7_ref, b7_ref,
                    o_ref,
                    acc_ref, cnt_ref,
                    *, n_points, n_padded, mask_cst):
    n = pl.program_id(1)
    n_last = pl.num_programs(1) - 1

    @pl.when(n == 0)
    def _init():
        acc_ref[...] = jnp.zeros_like(acc_ref)
        cnt_ref[...] = jnp.zeros_like(cnt_ref)

    x = x_ref[...]                                    # (tb, tn, 4) f32
    tb, tn, _ = x.shape

    needs_row_mask = (n_padded != n_points)           # static Python bool
    if needs_row_mask:
        row_ids = n * tn + jax.lax.broadcasted_iota(jnp.int32, (tb, tn), 1)
        valid = row_ids < n_points                    # (tb, tn)

    # mask count per batch row (the divisor of the quirky 'mean' pooling)
    msk = x[:, :, 3] == mask_cst                      # (tb, tn)
    if needs_row_mask:
        msk = jnp.logical_and(msk, valid)
    cnt_ref[...] += jnp.sum(msk.astype(jnp.float32), axis=-1, keepdims=True)

    # ---- stage-1 layer 1 (4 -> 64): K=4 wastes the MXU, do it as 4 broadcast
    #      FMAs on the VPU (also avoids reshaping the lane-sparse x tile). ----
    w1 = w1_ref[...]                                  # (4, 64)
    h = (x[:, :, 0:1] * w1[0:1, :] + x[:, :, 1:2] * w1[1:2, :]
         + x[:, :, 2:3] * w1[2:3, :] + x[:, :, 3:4] * w1[3:4, :]
         + b1_ref[...])                               # (tb, tn, 64)
    h = _leaky_relu(h).reshape(tb * tn, 64)

    # ---- layers 2-4 on the MXU (bf16 inputs to the big ones, f32 accumulate) ----
    h = _leaky_relu(jnp.dot(h, w2_ref[...],
                            preferred_element_type=jnp.float32) + b2_ref[...])
    h = _leaky_relu(jnp.dot(h.astype(jnp.bfloat16), w3_ref[...],
                            preferred_element_type=jnp.float32) + b3_ref[...])
    h = _leaky_relu(jnp.dot(h.astype(jnp.bfloat16), w4_ref[...],
                            preferred_element_type=jnp.float32) + b4_ref[...])  # (tb*tn, 1024)

    # ---- fold the 'mean' pooling sum into the per-tile accumulator ----
    h = h.reshape(tb, tn, 1024)
    if needs_row_mask:
        h = jnp.where(valid[:, :, None], h, 0.0)
    acc_ref[...] += jnp.sum(h, axis=1)                # (tb, 1024)

    # ---- stage-2 MLP (1024 -> 512 -> 256 -> 1) once per batch tile ----
    @pl.when(n == n_last)
    def _finalize():
        inv = pl.reciprocal(cnt_ref[...], approx=True)        # EUP slot
        pooled = acc_ref[...] * inv                           # (tb, 1024)
        g = _leaky_relu(jnp.dot(pooled.astype(jnp.bfloat16), w5_ref[...],
                                preferred_element_type=jnp.float32) + b5_ref[...])
        g = _leaky_relu(jnp.dot(g, w6_ref[...],
                                preferred_element_type=jnp.float32) + b6_ref[...])
        g = _leaky_relu(jnp.dot(g, w7_ref[...],
                                preferred_element_type=jnp.float32) + b7_ref[...])
        o_ref[...] = g                                        # (tb, 1)


def init_params(key):
    """Deterministic xavier_normal_(gain=sqrt(2/(1+leak^2))) weights, zero biases."""
    gain = (2.0 / (1.0 + LEAK ** 2)) ** 0.5
    dims = [(4, 64), (64, 128), (128, 512), (512, 1024),      # stage1
            (1024, 512), (512, 256), (256, 1)]                # stage2
    keys = jax.random.split(key, len(dims))
    params = []
    for k, (fin, fout) in zip(keys, dims):
        std = gain * (2.0 / (fin + fout)) ** 0.5
        w = std * jax.random.normal(k, (fin, fout), dtype=jnp.float32)
        b = jnp.zeros((1, fout), dtype=jnp.float32)
        params.append((w, b))
    return params


@jax.jit
def mesh_des_forward(x, params):
    B, N, F = x.shape
    assert F == 4

    # ---- generation-safe tiling: ~1024 points of activations per grid step ----
    tb = min(B, 8)
    tn_target = max(8, (1024 // tb) // 8 * 8)
    tn = min(_round_up(N, 8), tn_target)
    Bp = _round_up(B, tb)
    Np = _round_up(N, tn)

    xp = x
    if (Bp, Np) != (B, N):
        xp = jnp.pad(x, ((0, Bp - B), (0, Np - N), (0, 0)))

    (w1, b1), (w2, b2), (w3, b3), (w4, b4), (w5, b5), (w6, b6), (w7, b7) = params
    # the three large matmul weights go bf16 (MXU-native, halves VMEM footprint)
    w3 = w3.astype(jnp.bfloat16)
    w4 = w4.astype(jnp.bfloat16)
    w5 = w5.astype(jnp.bfloat16)
    flat = [w1, b1, w2, b2, w3, b3, w4, b4, w5, b5, w6, b6, w7, b7]

    def const_spec(a):
        # full block, index independent of the grid -> weights stay resident
        return pl.BlockSpec(a.shape, lambda b, n, _nd=a.ndim: (0,) * _nd)

    grid = (Bp // tb, Np // tn)
    kernel = functools.partial(mesh_des_kernel, n_points=N, n_padded=Np,
                               mask_cst=MASK_CST)

    out = pl.pallas_call(
        kernel,
        out_shape=jax.ShapeDtypeStruct((Bp, 1), jnp.float32),
        grid_spec=pltpu.PrefetchScalarGridSpec(
            num_scalar_prefetch=0,
            grid=grid,
            in_specs=[pl.BlockSpec((tb, tn, 4), lambda b, n: (b, n, 0))]
                     + [const_spec(a) for a in flat],
            out_specs=pl.BlockSpec((tb, 1), lambda b, n: (b, 0)),
            scratch_shapes=[pltpu.VMEM((tb, 1024), jnp.float32),   # pooled sum
                            pltpu.VMEM((tb, 1), jnp.float32)],     # mask count
        ),
        compiler_params=pltpu.CompilerParams(
            dimension_semantics=("parallel", "arbitrary"),
            vmem_limit_bytes=48 * 1024 * 1024,
        ),
    )(xp, *flat)
    return out[:B]


def mesh_des_reference(x, params):
    """Pure-JAX fp32 reference with the same quirky PyTorch semantics."""
    def leaky(v):
        return jnp.maximum(v, LEAK * v)
    B, N, _ = x.shape
    h = x.reshape(B * N, 4)
    for w, b in params[:4]:
        h = leaky(h @ w + b)
    h = h.reshape(B, N, -1)
    cnt = jnp.sum((x[:, :, 3] == MASK_CST).astype(jnp.float32), axis=-1,
                  keepdims=True)
    g = jnp.sum(h, axis=1) / cnt
    for w, b in params[4:]:
        g = leaky(g @ w + b)
    return g


if __name__ == "__main__":
    key = jax.random.PRNGKey(0)
    kx, kp = jax.random.split(key)

    B, N = 2, 8
    x = jax.random.normal(kx, (B, N, 4), dtype=jnp.float32)
    # make sure each batch element has a few "masked" rows (feature 3 == -1.0)
    # so the mean-pooling divisor is nonzero.
    x = x.at[:, :3, 3].set(MASK_CST)

    params = init_params(kp)
    out = mesh_des_forward(x, params)
    jax.block_until_ready(out)
    assert out.shape == (B, 1) and out.dtype == jnp.float32

    # relaxed tolerance: kernel uses bf16 MXU inputs + approx reciprocal
    ref = mesh_des_reference(x, params)
    assert jnp.allclose(out, ref, rtol=5e-2, atol=5e-2)

    print("KERNEL_OK")
</pallas_src>

<mosaic_0001>
module attributes {stable_mosaic.version = 11 : i64} {
  func.func @mesh_des_kernel(%arg0: i32, %arg1: i32, %arg2: memref<2x8x4xf32, #tpu.memory_space<vmem>>, %arg3: memref<4x64xf32, #tpu.memory_space<vmem>>, %arg4: memref<1x64xf32, #tpu.memory_space<vmem>>, %arg5: memref<64x128xf32, #tpu.memory_space<vmem>>, %arg6: memref<1x128xf32, #tpu.memory_space<vmem>>, %arg7: memref<128x512xbf16, #tpu.memory_space<vmem>>, %arg8: memref<1x512xf32, #tpu.memory_space<vmem>>, %arg9: memref<512x1024xbf16, #tpu.memory_space<vmem>>, %arg10: memref<1x1024xf32, #tpu.memory_space<vmem>>, %arg11: memref<1024x512xbf16, #tpu.memory_space<vmem>>, %arg12: memref<1x512xf32, #tpu.memory_space<vmem>>, %arg13: memref<512x256xf32, #tpu.memory_space<vmem>>, %arg14: memref<1x256xf32, #tpu.memory_space<vmem>>, %arg15: memref<256x1xf32, #tpu.memory_space<vmem>>, %arg16: memref<1x1xf32, #tpu.memory_space<vmem>>, %arg17: memref<2x1xf32, #tpu.memory_space<vmem>>, %arg18: memref<2x1024xf32, #tpu.memory_space<vmem>>, %arg19: memref<2x1xf32, #tpu.memory_space<vmem>>) attributes {dimension_semantics = [#tpu.dimension_semantics<parallel>, #tpu.dimension_semantics<arbitrary>], iteration_bounds = array<i64: 1, 1>, scalar_prefetch = 0 : i64, scratch_operands = 2 : i64, tpu.core_type = #tpu.core_type<tc>, window_params = [{transform_indices = @transform_0, window_bounds = array<i64: 2, 8, 4>}, {pipeline_mode = #tpu.pipeline_mode<synchronous>, transform_indices = @transform_1, window_bounds = array<i64: 4, 64>}, {pipeline_mode = #tpu.pipeline_mode<synchronous>, transform_indices = @transform_2, window_bounds = array<i64: 1, 64>}, {pipeline_mode = #tpu.pipeline_mode<synchronous>, transform_indices = @transform_3, window_bounds = array<i64: 64, 128>}, {pipeline_mode = #tpu.pipeline_mode<synchronous>, transform_indices = @transform_4, window_bounds = array<i64: 1, 128>}, {pipeline_mode = #tpu.pipeline_mode<synchronous>, transform_indices = @transform_5, window_bounds = array<i64: 128, 512>}, {pipeline_mode = #tpu.pipeline_mode<synchronous>, transform_indices = @transform_6, window_bounds = array<i64: 1, 512>}, {pipeline_mode = #tpu.pipeline_mode<synchronous>, transform_indices = @transform_7, window_bounds = array<i64: 512, 1024>}, {pipeline_mode = #tpu.pipeline_mode<synchronous>, transform_indices = @transform_8, window_bounds = array<i64: 1, 1024>}, {pipeline_mode = #tpu.pipeline_mode<synchronous>, transform_indices = @transform_9, window_bounds = array<i64: 1024, 512>}, {pipeline_mode = #tpu.pipeline_mode<synchronous>, transform_indices = @transform_10, window_bounds = array<i64: 1, 512>}, {pipeline_mode = #tpu.pipeline_mode<synchronous>, transform_indices = @transform_11, window_bounds = array<i64: 512, 256>}, {pipeline_mode = #tpu.pipeline_mode<synchronous>, transform_indices = @transform_12, window_bounds = array<i64: 1, 256>}, {pipeline_mode = #tpu.pipeline_mode<synchronous>, transform_indices = @transform_13, window_bounds = array<i64: 256, 1>}, {pipeline_mode = #tpu.pipeline_mode<synchronous>, transform_indices = @transform_14, window_bounds = array<i64: 1, 1>}, {transform_indices = @transform_15, window_bounds = array<i64: 2, 1>}]} {
    %c0_i32 = arith.constant 0 : i32
    %0 = arith.cmpi eq, %arg1, %c0_i32 : i32
    %1 = arith.extui %0 : i1 to i32
    %c0_i32_0 = arith.constant 0 : i32
    %2 = arith.cmpi ne, %1, %c0_i32_0 : i32
    scf.if %2 {
      %cst_38 = arith.constant 0.000000e+00 : f32
      %85 = vector.broadcast %cst_38 : f32 to vector<2x1024xf32>
      %c0_39 = arith.constant 0 : index
      %c0_40 = arith.constant 0 : index
      %86 = vector.load %arg18[%c0_39, %c0_40] : memref<2x1024xf32, #tpu.memory_space<vmem>>, vector<2x1024xf32>
      tpu.vector_store %arg18[%c0_39, %c0_40], %85 {strides = array<i32>} : memref<2x1024xf32, #tpu.memory_space<vmem>>, vector<2x1024xf32>,
      %cst_41 = arith.constant 0.000000e+00 : f32
      %87 = vector.broadcast %cst_41 : f32 to vector<2x1xf32>
      %c0_42 = arith.constant 0 : index
      %c0_43 = arith.constant 0 : index
      %88 = vector.load %arg19[%c0_42, %c0_43] : memref<2x1xf32, #tpu.memory_space<vmem>>, vector<2x1xf32>
      tpu.vector_store %arg19[%c0_42, %c0_43], %87 {strides = array<i32>} : memref<2x1xf32, #tpu.memory_space<vmem>>, vector<2x1xf32>,
    } else {
    }
    %c0 = arith.constant 0 : index
    %c0_1 = arith.constant 0 : index
    %c0_2 = arith.constant 0 : index
    %3 = vector.load %arg2[%c0, %c0_1, %c0_2] : memref<2x8x4xf32, #tpu.memory_space<vmem>>, vector<2x8x4xf32>
    %4 = vector.extract_strided_slice %3 {offsets = [0, 0, 3], sizes = [2, 8, 1], strides = [1, 1, 1]} : vector<2x8x4xf32> to vector<2x8x1xf32>
    %5 = vector.shape_cast %4 : vector<2x8x1xf32> to vector<2x8xf32>
    %cst = arith.constant -1.000000e+00 : f32
    %6 = vector.broadcast %cst : f32 to vector<2x8xf32>
    %7 = arith.cmpf oeq, %5, %6 : vector<2x8xf32>
    %c0_3 = arith.constant 0 : index
    %c0_4 = arith.constant 0 : index
    %8 = vector.load %arg19[%c0_3, %c0_4] : memref<2x1xf32, #tpu.memory_space<vmem>>, vector<2x1xf32>
    %9 = arith.extui %7 : vector<2x8xi1> to vector<2x8xi32>
    %10 = arith.sitofp %9 : vector<2x8xi32> to vector<2x8xf32>
    %cst_5 = arith.constant dense<0.000000e+00> : vector<2xf32>
    %11 = vector.multi_reduction <add>, %10, %cst_5 [1] : vector<2x8xf32> to vector<2xf32>
    %12 = vector.shape_cast %11 : vector<2xf32> to vector<2x1xf32>
    %13 = arith.addf %8, %12 : vector<2x1xf32>
    %c0_6 = arith.constant 0 : index
    %c0_7 = arith.constant 0 : index
    %14 = vector.load %arg19[%c0_6, %c0_7] : memref<2x1xf32, #tpu.memory_space<vmem>>, vector<2x1xf32>
    tpu.vector_store %arg19[%c0_6, %c0_7], %13 {strides = array<i32>} : memref<2x1xf32, #tpu.memory_space<vmem>>, vector<2x1xf32>,
    %c0_8 = arith.constant 0 : index
    %c0_9 = arith.constant 0 : index
    %15 = vector.load %arg3[%c0_8, %c0_9] : memref<4x64xf32, #tpu.memory_space<vmem>>, vector<4x64xf32>
    %16 = vector.extract_strided_slice %3 {offsets = [0, 0, 0], sizes = [2, 8, 1], strides = [1, 1, 1]} : vector<2x8x4xf32> to vector<2x8x1xf32>
    %17 = vector.extract_strided_slice %15 {offsets = [0, 0], sizes = [1, 64], strides = [1, 1]} : vector<4x64xf32> to vector<1x64xf32>
    %18 = vector.shape_cast %17 : vector<1x64xf32> to vector<1x1x64xf32>
    %19 = vector.broadcast %16 : vector<2x8x1xf32> to vector<2x8x64xf32>
    %20 = vector.broadcast %18 : vector<1x1x64xf32> to vector<2x8x64xf32>
    %21 = arith.mulf %19, %20 : vector<2x8x64xf32>
    %22 = vector.extract_strided_slice %3 {offsets = [0, 0, 1], sizes = [2, 8, 1], strides = [1, 1, 1]} : vector<2x8x4xf32> to vector<2x8x1xf32>
    %23 = vector.extract_strided_slice %15 {offsets = [1, 0], sizes = [1, 64], strides = [1, 1]} : vector<4x64xf32> to vector<1x64xf32>
    %24 = vector.shape_cast %23 : vector<1x64xf32> to vector<1x1x64xf32>
    %25 = vector.broadcast %22 : vector<2x8x1xf32> to vector<2x8x64xf32>
    %26 = vector.broadcast %24 : vector<1x1x64xf32> to vector<2x8x64xf32>
    %27 = arith.mulf %25, %26 : vector<2x8x64xf32>
    %28 = arith.addf %21, %27 : vector<2x8x64xf32>
    %29 = vector.extract_strided_slice %3 {offsets = [0, 0, 2], sizes = [2, 8, 1], strides = [1, 1, 1]} : vector<2x8x4xf32> to vector<2x8x1xf32>
    %30 = vector.extract_strided_slice %15 {offsets = [2, 0], sizes = [1, 64], strides = [1, 1]} : vector<4x64xf32> to vector<1x64xf32>
    %31 = vector.shape_cast %30 : vector<1x64xf32> to vector<1x1x64xf32>
    %32 = vector.broadcast %29 : vector<2x8x1xf32> to vector<2x8x64xf32>
    %33 = vector.broadcast %31 : vector<1x1x64xf32> to vector<2x8x64xf32>
    %34 = arith.mulf %32, %33 : vector<2x8x64xf32>
    %35 = arith.addf %28, %34 : vector<2x8x64xf32>
    %36 = vector.extract_strided_slice %3 {offsets = [0, 0, 3], sizes = [2, 8, 1], strides = [1, 1, 1]} : vector<2x8x4xf32> to vector<2x8x1xf32>
    %37 = vector.extract_strided_slice %15 {offsets = [3, 0], sizes = [1, 64], strides = [1, 1]} : vector<4x64xf32> to vector<1x64xf32>
    %38 = vector.shape_cast %37 : vector<1x64xf32> to vector<1x1x64xf32>
    %39 = vector.broadcast %36 : vector<2x8x1xf32> to vector<2x8x64xf32>
    %40 = vector.broadcast %38 : vector<1x1x64xf32> to vector<2x8x64xf32>
    %41 = arith.mulf %39, %40 : vector<2x8x64xf32>
    %42 = arith.addf %35, %41 : vector<2x8x64xf32>
    %c0_10 = arith.constant 0 : index
    %c0_11 = arith.constant 0 : index
    %43 = vector.load %arg4[%c0_10, %c0_11] : memref<1x64xf32, #tpu.memory_space<vmem>>, vector<1x64xf32>
    %44 = vector.shape_cast %43 : vector<1x64xf32> to vector<1x1x64xf32>
    %45 = vector.broadcast %44 : vector<1x1x64xf32> to vector<2x8x64xf32>
    %46 = arith.addf %42, %45 : vector<2x8x64xf32>
    %cst_12 = arith.constant 2.000000e-01 : f32
    %47 = vector.broadcast %cst_12 : f32 to vector<2x8x64xf32>
    %48 = arith.mulf %47, %46 : vector<2x8x64xf32>
    %49 = arith.maximumf %46, %48 : vector<2x8x64xf32>
    %50 = vector.shape_cast %49 : vector<2x8x64xf32> to vector<16x64xf32>
    %c0_13 = arith.constant 0 : index
    %c0_14 = arith.constant 0 : index
    %51 = vector.load %arg5[%c0_13, %c0_14] : memref<64x128xf32, #tpu.memory_space<vmem>>, vector<64x128xf32>
    %cst_15 = arith.constant dense<0.000000e+00> : vector<16x128xf32>
    %52 = tpu.matmul %50, %51, %cst_15 {dimension_numbers = #tpu.dot_dimension_numbers<[1], [0], [0], [1], [0, 0, 1, 1], [], []>} : vector<16x64xf32>, vector<64x128xf32>, vector<16x128xf32> -> vector<16x128xf32>
    %c0_16 = arith.constant 0 : index
    %c0_17 = arith.constant 0 : index
    %53 = vector.load %arg6[%c0_16, %c0_17] : memref<1x128xf32, #tpu.memory_space<vmem>>, vector<1x128xf32>
    %54 = vector.broadcast %53 : vector<1x128xf32> to vector<16x128xf32>
    %55 = arith.addf %52, %54 : vector<16x128xf32>
    %cst_18 = arith.constant 2.000000e-01 : f32
    %56 = vector.broadcast %cst_18 : f32 to vector<16x128xf32>
    %57 = arith.mulf %56, %55 : vector<16x128xf32>
    %58 = arith.maximumf %55, %57 : vector<16x128xf32>
    %59 = arith.truncf %58 : vector<16x128xf32> to vector<16x128xbf16>
    %c0_19 = arith.constant 0 : index
    %c0_20 = arith.constant 0 : index
    %60 = vector.load %arg7[%c0_19, %c0_20] : memref<128x512xbf16, #tpu.memory_space<vmem>>, vector<128x512xbf16>
    %cst_21 = arith.constant dense<0.000000e+00> : vector<16x512xf32>
    %61 = tpu.matmul %59, %60, %cst_21 {dimension_numbers = #tpu.dot_dimension_numbers<[1], [0], [0], [1], [0, 0, 1, 1], [], []>} : vector<16x128xbf16>, vector<128x512xbf16>, vector<16x512xf32> -> vector<16x512xf32>
    %c0_22 = arith.constant 0 : index
    %c0_23 = arith.constant 0 : index
    %62 = vector.load %arg8[%c0_22, %c0_23] : memref<1x512xf32, #tpu.memory_space<vmem>>, vector<1x512xf32>
    %63 = vector.broadcast %62 : vector<1x512xf32> to vector<16x512xf32>
    %64 = arith.addf %61, %63 : vector<16x512xf32>
    %cst_24 = arith.constant 2.000000e-01 : f32
    %65 = vector.broadcast %cst_24 : f32 to vector<16x512xf32>
    %66 = arith.mulf %65, %64 : vector<16x512xf32>
    %67 = arith.maximumf %64, %66 : vector<16x512xf32>
    %68 = arith.truncf %67 : vector<16x512xf32> to vector<16x512xbf16>
    %c0_25 = arith.constant 0 : index
    %c0_26 = arith.constant 0 : index
    %69 = vector.load %arg9[%c0_25, %c0_26] : memref<512x1024xbf16, #tpu.memory_space<vmem>>, vector<512x1024xbf16>
    %cst_27 = arith.constant dense<0.000000e+00> : vector<16x1024xf32>
    %70 = tpu.matmul %68, %69, %cst_27 {dimension_numbers = #tpu.dot_dimension_numbers<[1], [0], [0], [1], [0, 0, 1, 1], [], []>} : vector<16x512xbf16>, vector<512x1024xbf16>, vector<16x1024xf32> -> vector<16x1024xf32>
    %c0_28 = arith.constant 0 : index
    %c0_29 = arith.constant 0 : index
    %71 = vector.load %arg10[%c0_28, %c0_29] : memref<1x1024xf32, #tpu.memory_space<vmem>>, vector<1x1024xf32>
    %72 = vector.broadcast %71 : vector<1x1024xf32> to vector<16x1024xf32>
    %73 = arith.addf %70, %72 : vector<16x1024xf32>
    %cst_30 = arith.constant 2.000000e-01 : f32
    %74 = vector.broadcast %cst_30 : f32 to vector<16x1024xf32>
    %75 = arith.mulf %74, %73 : vector<16x1024xf32>
    %76 = arith.maximumf %73, %75 : vector<16x1024xf32>
    %77 = vector.shape_cast %76 : vector<16x1024xf32> to vector<2x8x1024xf32>
    %c0_31 = arith.constant 0 : index
    %c0_32 = arith.constant 0 : index
    %78 = vector.load %arg18[%c0_31, %c0_32] : memref<2x1024xf32, #tpu.memory_space<vmem>>, vector<2x1024xf32>
    %cst_33 = arith.constant dense<0.000000e+00> : vector<2x1024xf32>
    %79 = vector.multi_reduction <add>, %77, %cst_33 [1] : vector<2x8x1024xf32> to vector<2x1024xf32>
    %80 = arith.addf %78, %79 : vector<2x1024xf32>
    %c0_34 = arith.constant 0 : index
    %c0_35 = arith.constant 0 : index
    %81 = vector.load %arg18[%c0_34, %c0_35] : memref<2x1024xf32, #tpu.memory_space<vmem>>, vector<2x1024xf32>
    tpu.vector_store %arg18[%c0_34, %c0_35], %80 {strides = array<i32>} : memref<2x1024xf32, #tpu.memory_space<vmem>>, vector<2x1024xf32>,
    %c0_i32_36 = arith.constant 0 : i32
    %82 = arith.cmpi eq, %arg1, %c0_i32_36 : i32
    %83 = arith.extui %82 : i1 to i32
    %c0_i32_37 = arith.constant 0 : i32
    %84 = arith.cmpi ne, %83, %c0_i32_37 : i32
    scf.if %84 {
      %c0_38 = arith.constant 0 : index
      %c0_39 = arith.constant 0 : index
      %85 = vector.load %arg19[%c0_38, %c0_39] : memref<2x1xf32, #tpu.memory_space<vmem>>, vector<2x1xf32>
      %86 = tpu.reciprocal %85 {approx = true} : vector<2x1xf32> -> vector<2x1xf32>
      %c0_40 = arith.constant 0 : index
      %c0_41 = arith.constant 0 : index
      %87 = vector.load %arg18[%c0_40, %c0_41] : memref<2x1024xf32, #tpu.memory_space<vmem>>, vector<2x1024xf32>
      %88 = vector.broadcast %86 : vector<2x1xf32> to vector<2x1024xf32>
      %89 = arith.mulf %87, %88 : vector<2x1024xf32>
      %90 = arith.truncf %89 : vector<2x1024xf32> to vector<2x1024xbf16>
      %c0_42 = arith.constant 0 : index
      %c0_43 = arith.constant 0 : index
      %91 = vector.load %arg11[%c0_42, %c0_43] : memref<1024x512xbf16, #tpu.memory_space<vmem>>, vector<1024x512xbf16>
      %cst_44 = arith.constant dense<0.000000e+00> : vector<2x512xf32>
      %92 = tpu.matmul %90, %91, %cst_44 {dimension_numbers = #tpu.dot_dimension_numbers<[1], [0], [0], [1], [0, 0, 1, 1], [], []>} : vector<2x1024xbf16>, vector<1024x512xbf16>, vector<2x512xf32> -> vector<2x512xf32>
      %c0_45 = arith.constant 0 : index
      %c0_46 = arith.constant 0 : index
      %93 = vector.load %arg12[%c0_45, %c0_46] : memref<1x512xf32, #tpu.memory_space<vmem>>, vector<1x512xf32>
      %94 = vector.broadcast %93 : vector<1x512xf32> to vector<2x512xf32>
      %95 = arith.addf %92, %94 : vector<2x512xf32>
      %cst_47 = arith.constant 2.000000e-01 : f32
      %96 = vector.broadcast %cst_47 : f32 to vector<2x512xf32>
      %97 = arith.mulf %96, %95 : vector<2x512xf32>
      %98 = arith.maximumf %95, %97 : vector<2x512xf32>
      %c0_48 = arith.constant 0 : index
      %c0_49 = arith.constant 0 : index
      %99 = vector.load %arg13[%c0_48, %c0_49] : memref<512x256xf32, #tpu.memory_space<vmem>>, vector<512x256xf32>
      %cst_50 = arith.constant dense<0.000000e+00> : vector<2x256xf32>
      %100 = tpu.matmul %98, %99, %cst_50 {dimension_numbers = #tpu.dot_dimension_numbers<[1], [0], [0], [1], [0, 0, 1, 1], [], []>} : vector<2x512xf32>, vector<512x256xf32>, vector<2x256xf32> -> vector<2x256xf32>
      %c0_51 = arith.constant 0 : index
      %c0_52 = arith.constant 0 : index
      %101 = vector.load %arg14[%c0_51, %c0_52] : memref<1x256xf32, #tpu.memory_space<vmem>>, vector<1x256xf32>
      %102 = vector.broadcast %101 : vector<1x256xf32> to vector<2x256xf32>
      %103 = arith.addf %100, %102 : vector<2x256xf32>
      %cst_53 = arith.constant 2.000000e-01 : f32
      %104 = vector.broadcast %cst_53 : f32 to vector<2x256xf32>
      %105 = arith.mulf %104, %103 : vector<2x256xf32>
      %106 = arith.maximumf %103, %105 : vector<2x256xf32>
      %c0_54 = arith.constant 0 : index
      %c0_55 = arith.constant 0 : index
      %107 = vector.load %arg15[%c0_54, %c0_55] : memref<256x1xf32, #tpu.memory_space<vmem>>, vector<256x1xf32>
      %cst_56 = arith.constant dense<0.000000e+00> : vector<2x1xf32>
      %108 = tpu.matmul %106, %107, %cst_56 {dimension_numbers = #tpu.dot_dimension_numbers<[1], [0], [0], [1], [0, 0, 1, 1], [], []>} : vector<2x256xf32>, vector<256x1xf32>, vector<2x1xf32> -> vector<2x1xf32>
      %c0_57 = arith.constant 0 : index
      %c0_58 = arith.constant 0 : index
      %109 = vector.load %arg16[%c0_57, %c0_58] : memref<1x1xf32, #tpu.memory_space<vmem>>, vector<1x1xf32>
      %110 = vector.broadcast %109 : vector<1x1xf32> to vector<2x1xf32>
      %111 = arith.addf %108, %110 : vector<2x1xf32>
      %cst_59 = arith.constant 2.000000e-01 : f32
      %112 = vector.broadcast %cst_59 : f32 to vector<2x1xf32>
      %113 = arith.mulf %112, %111 : vector<2x1xf32>
      %114 = arith.maximumf %111, %113 : vector<2x1xf32>
      %c0_60 = arith.constant 0 : index
      %c0_61 = arith.constant 0 : index
      %115 = vector.load %arg17[%c0_60, %c0_61] : memref<2x1xf32, #tpu.memory_space<vmem>>, vector<2x1xf32>
      tpu.vector_store %arg17[%c0_60, %c0_61], %114 {strides = array<i32>} : memref<2x1xf32, #tpu.memory_space<vmem>>, vector<2x1xf32>,
    } else {
    }
    return
  }
  func.func @transform_0(%arg0: i32, %arg1: i32) -> (i32, i32, i32) {
    %c0_i32 = arith.constant 0 : i32
    %c0_i32_0 = arith.constant 0 : i32
    return %arg0, %arg1, %c0_i32 : i32, i32, i32
  }
  func.func @transform_1(%arg0: i32, %arg1: i32) -> (i32, i32) {
    %c0_i32 = arith.constant 0 : i32
    %c0_i32_0 = arith.constant 0 : i32
    %c0_i32_1 = arith.constant 0 : i32
    return %c0_i32, %c0_i32_0 : i32, i32
  }
  func.func @transform_2(%arg0: i32, %arg1: i32) -> (i32, i32) {
    %c0_i32 = arith.constant 0 : i32
    %c0_i32_0 = arith.constant 0 : i32
    %c0_i32_1 = arith.constant 0 : i32
    return %c0_i32, %c0_i32_0 : i32, i32
  }
  func.func @transform_3(%arg0: i32, %arg1: i32) -> (i32, i32) {
    %c0_i32 = arith.constant 0 : i32
    %c0_i32_0 = arith.constant 0 : i32
    %c0_i32_1 = arith.constant 0 : i32
    return %c0_i32, %c0_i32_0 : i32, i32
  }
  func.func @transform_4(%arg0: i32, %arg1: i32) -> (i32, i32) {
    %c0_i32 = arith.constant 0 : i32
    %c0_i32_0 = arith.constant 0 : i32
    %c0_i32_1 = arith.constant 0 : i32
    return %c0_i32, %c0_i32_0 : i32, i32
  }
  func.func @transform_5(%arg0: i32, %arg1: i32) -> (i32, i32) {
    %c0_i32 = arith.constant 0 : i32
    %c0_i32_0 = arith.constant 0 : i32
    %c0_i32_1 = arith.constant 0 : i32
    return %c0_i32, %c0_i32_0 : i32, i32
  }
  func.func @transform_6(%arg0: i32, %arg1: i32) -> (i32, i32) {
    %c0_i32 = arith.constant 0 : i32
    %c0_i32_0 = arith.constant 0 : i32
    %c0_i32_1 = arith.constant 0 : i32
    return %c0_i32, %c0_i32_0 : i32, i32
  }
  func.func @transform_7(%arg0: i32, %arg1: i32) -> (i32, i32) {
    %c0_i32 = arith.constant 0 : i32
    %c0_i32_0 = arith.constant 0 : i32
    %c0_i32_1 = arith.constant 0 : i32
    return %c0_i32, %c0_i32_0 : i32, i32
  }
  func.func @transform_8(%arg0: i32, %arg1: i32) -> (i32, i32) {
    %c0_i32 = arith.constant 0 : i32
    %c0_i32_0 = arith.constant 0 : i32
    %c0_i32_1 = arith.constant 0 : i32
    return %c0_i32, %c0_i32_0 : i32, i32
  }
  func.func @transform_9(%arg0: i32, %arg1: i32) -> (i32, i32) {
    %c0_i32 = arith.constant 0 : i32
    %c0_i32_0 = arith.constant 0 : i32
    %c0_i32_1 = arith.constant 0 : i32
    return %c0_i32, %c0_i32_0 : i32, i32
  }
  func.func @transform_10(%arg0: i32, %arg1: i32) -> (i32, i32) {
    %c0_i32 = arith.constant 0 : i32
    %c0_i32_0 = arith.constant 0 : i32
    %c0_i32_1 = arith.constant 0 : i32
    return %c0_i32, %c0_i32_0 : i32, i32
  }
  func.func @transform_11(%arg0: i32, %arg1: i32) -> (i32, i32) {
    %c0_i32 = arith.constant 0 : i32
    %c0_i32_0 = arith.constant 0 : i32
    %c0_i32_1 = arith.constant 0 : i32
    return %c0_i32, %c0_i32_0 : i32, i32
  }
  func.func @transform_12(%arg0: i32, %arg1: i32) -> (i32, i32) {
    %c0_i32 = arith.constant 0 : i32
    %c0_i32_0 = arith.constant 0 : i32
    %c0_i32_1 = arith.constant 0 : i32
    return %c0_i32, %c0_i32_0 : i32, i32
  }
  func.func @transform_13(%arg0: i32, %arg1: i32) -> (i32, i32) {
    %c0_i32 = arith.constant 0 : i32
    %c0_i32_0 = arith.constant 0 : i32
    %c0_i32_1 = arith.constant 0 : i32
    return %c0_i32, %c0_i32_0 : i32, i32
  }
  func.func @transform_14(%arg0: i32, %arg1: i32) -> (i32, i32) {
    %c0_i32 = arith.constant 0 : i32
    %c0_i32_0 = arith.constant 0 : i32
    %c0_i32_1 = arith.constant 0 : i32
    return %c0_i32, %c0_i32_0 : i32, i32
  }
  func.func @transform_15(%arg0: i32, %arg1: i32) -> (i32, i32) {
    %c0_i32 = arith.constant 0 : i32
    %c0_i32_0 = arith.constant 0 : i32
    return %arg0, %c0_i32 : i32, i32
  }
}

</mosaic_0001>

<llo_original>
// kernel: mesh_des_forward.1
$region0: #{mesh_des_forward.1}
  #allocation0 [shape = 'u32[]', space=smem, size = 0x4, offset = 0x4, fixed_abs, tag = 'smem constant byte address 0x4 - core index']
  #allocation1 [shape = 'u32[144,128]{1,0:T(1,128)}', space=vmem, size = 0x12000, scoped, tag = 'internal scratch']
  #allocation2 [shape = 'f32[2,1024]{1,0:T(2,128)}', space=vmem, size = 0x2000, scoped, tag = 'scratch operand']
  #allocation3 [shape = 'f32[2,1]{1,0:T(2,128)}', space=vmem, size = 0x400, scoped, tag = 'scratch operand']
  #allocation4 [shape = 'f32[1,1]{1,0:T(1,128)S(1)}', space=vmem, size = 0x200, scoped, tag = 'scoped memory for mesh_des_forward.1']
  %s0 = inlined_call_operand.vmem [shape: f32[2,8,4], index: 0, kind: input, shape index: {}]
  %s1 = inlined_call_operand.vmem [shape: f32[4,64], index: 1, kind: input, shape index: {}]
  %s2 = inlined_call_operand.vmem [shape: f32[1,64], index: 2, kind: input, shape index: {}]
  %s3 = inlined_call_operand.vmem [shape: f32[64,128], index: 3, kind: input, shape index: {}]
  %s4 = inlined_call_operand.vmem [shape: f32[1,128], index: 4, kind: input, shape index: {}]
  %s5 = inlined_call_operand.vmem [shape: bf16[128,512], index: 5, kind: input, shape index: {}]
  %s6 = inlined_call_operand.vmem [shape: f32[1,512], index: 6, kind: input, shape index: {}]
  %s7 = inlined_call_operand.vmem [shape: bf16[512,1024], index: 7, kind: input, shape index: {}]
  %s8 = inlined_call_operand.vmem [shape: f32[1,1024], index: 8, kind: input, shape index: {}]
  %s9 = inlined_call_operand.vmem [shape: bf16[1024,512], index: 9, kind: input, shape index: {}]
  %s10 = inlined_call_operand.vmem [shape: f32[1,512], index: 10, kind: input, shape index: {}]
  %s11 = inlined_call_operand.vmem [shape: f32[512,256], index: 11, kind: input, shape index: {}]
  %s12 = inlined_call_operand.vmem [shape: f32[1,256], index: 12, kind: input, shape index: {}]
  %s13 = inlined_call_operand.vmem [shape: f32[256,1], index: 13, kind: input, shape index: {}]
  %s14 = inlined_call_operand.<no memory space> [shape: f32[1,1], index: 14, kind: input, shape index: {}]
  %s15 = inlined_call_operand.vmem [shape: f32[2,1], index: 15, kind: output, shape index: {}]
  %s16 = sld [smem:[#allocation0]]
  $region78: #{mesh_des_forward.1} parent=0
    _
  %s18 = ssub.s32 1, %s16
  %s19 = scalar_select 0, %s18, %s16
  %v20 = vstv %s14
  %21 = vst [vmem:[#allocation4] sm:$0x1] %v20
  // Predicated region
  $region2: #{mesh_des_forward.1} parent=0 // pred_check
    _
  $region3: #{mesh_des_forward.1} parent=0 // pred_check_branch
    %23 = sbr.rel (0) target = $region5
  $region4: #{mesh_des_forward.1} parent=0 // pred_region
    _
  $region5: #{mesh_des_forward.1} parent=0 // pred_fallthru
    _
  // Predicated region
  $region6: #{mesh_des_forward.1} parent=0 // pred_check
    _
  $region7: #{mesh_des_forward.1} parent=0 // pred_check_branch
    %25 = sbr.rel (0) target = $region9
  $region8: #{mesh_des_forward.1} parent=0 // pred_region
    _
  $region9: #{mesh_des_forward.1} parent=0 // pred_fallthru
    _
  // Predicated region
  $region10: #{mesh_des_forward.1} parent=0 // pred_check
    _
  $region11: #{mesh_des_forward.1} parent=0 // pred_check_branch
    %27 = sbr.rel (0) target = $region13
  $region12: #{mesh_des_forward.1} parent=0 // pred_region
    _
  $region13: #{mesh_des_forward.1} parent=0 // pred_fallthru
    _
  // Predicated region
  $region14: #{mesh_des_forward.1} parent=0 // pred_check
    _
  $region15: #{mesh_des_forward.1} parent=0 // pred_check_branch
    %29 = sbr.rel (0) target = $region17
  $region16: #{mesh_des_forward.1} parent=0 // pred_region
    _
  $region17: #{mesh_des_forward.1} parent=0 // pred_fallthru
    _
  // Predicated region
  $region18: #{mesh_des_forward.1} parent=0 // pred_check
    _
  $region19: #{mesh_des_forward.1} parent=0 // pred_check_branch
    %31 = sbr.rel (0) target = $region21
  $region20: #{mesh_des_forward.1} parent=0 // pred_region
    _
  $region21: #{mesh_des_forward.1} parent=0 // pred_fallthru
    _
  // Predicated region
  $region22: #{mesh_des_forward.1} parent=0 // pred_check
    _
  $region23: #{mesh_des_forward.1} parent=0 // pred_check_branch
    %33 = sbr.rel (0) target = $region25
  $region24: #{mesh_des_forward.1} parent=0 // pred_region
    _
  $region25: #{mesh_des_forward.1} parent=0 // pred_fallthru
    _
  // Predicated region
  $region26: #{mesh_des_forward.1} parent=0 // pred_check
    _
  $region27: #{mesh_des_forward.1} parent=0 // pred_check_branch
    %35 = sbr.rel (0) target = $region29
  $region28: #{mesh_des_forward.1} parent=0 // pred_region
    _
  $region29: #{mesh_des_forward.1} parent=0 // pred_fallthru
    _
  // Predicated region
  $region30: #{mesh_des_forward.1} parent=0 // pred_check
    _
  $region31: #{mesh_des_forward.1} parent=0 // pred_check_branch
    %37 = sbr.rel (0) target = $region33
  $region32: #{mesh_des_forward.1} parent=0 // pred_region
    _
  $region33: #{mesh_des_forward.1} parent=0 // pred_fallthru
    _
  // Predicated region
  $region34: #{mesh_des_forward.1} parent=0 // pred_check
    _
  $region35: #{mesh_des_forward.1} parent=0 // pred_check_branch
    %39 = sbr.rel (0) target = $region37
  $region36: #{mesh_des_forward.1} parent=0 // pred_region
    _
  $region37: #{mesh_des_forward.1} parent=0 // pred_fallthru
    _
  // Predicated region
  $region38: #{mesh_des_forward.1} parent=0 // pred_check
    _
  $region39: #{mesh_des_forward.1} parent=0 // pred_check_branch
    %41 = sbr.rel (0) target = $region41
  $region40: #{mesh_des_forward.1} parent=0 // pred_region
    _
  $region41: #{mesh_des_forward.1} parent=0 // pred_fallthru
    _
  // Predicated region
  $region42: #{mesh_des_forward.1} parent=0 // pred_check
    _
  $region43: #{mesh_des_forward.1} parent=0 // pred_check_branch
    %43 = sbr.rel (0) target = $region45
  $region44: #{mesh_des_forward.1} parent=0 // pred_region
    _
  $region45: #{mesh_des_forward.1} parent=0 // pred_fallthru
    _
  // Predicated region
  $region46: #{mesh_des_forward.1} parent=0 // pred_check
    _
  $region47: #{mesh_des_forward.1} parent=0 // pred_check_branch
    %45 = sbr.rel (0) target = $region49
  $region48: #{mesh_des_forward.1} parent=0 // pred_region
    _
  $region49: #{mesh_des_forward.1} parent=0 // pred_fallthru
    _
  // Predicated region
  $region50: #{mesh_des_forward.1} parent=0 // pred_check
    _
  $region51: #{mesh_des_forward.1} parent=0 // pred_check_branch
    %47 = sbr.rel (0) target = $region53
  $region52: #{mesh_des_forward.1} parent=0 // pred_region
    _
  $region53: #{mesh_des_forward.1} parent=0 // pred_fallthru
    _
  // Predicated region
  $region54: #{mesh_des_forward.1} parent=0 // pred_check
    _
  $region55: #{mesh_des_forward.1} parent=0 // pred_check_branch
    %49 = sbr.rel (0) target = $region57
  $region56: #{mesh_des_forward.1} parent=0 // pred_region
    _
  $region57: #{mesh_des_forward.1} parent=0 // pred_fallthru
    _
  // Predicated region
  $region58: #{mesh_des_forward.1} parent=0 // pred_check
    _
  $region59: #{mesh_des_forward.1} parent=0 // pred_check_branch
    %51 = sbr.rel (0) target = $region61
  $region60: #{mesh_des_forward.1} parent=0 // pred_region
    _
  $region61: #{mesh_des_forward.1} parent=0 // pred_fallthru
    _
  %p53 = scmp.eq.s32.totalorder 0, 0
  // Predicated region
  $region62: #{mesh_des_forward.1} parent=0 // pred_check
    %p54 = pneg %p53
  $region63: #{mesh_des_forward.1} parent=0 // pred_check_branch
    %56 = sbr.rel (%p54) target = $region65
  $region64: #{mesh_des_forward.1} parent=0 // pred_region
    %57 = vst [vmem:[#allocation2] sm:$0xff] 0.0
    %58 = vst [vmem:[#allocation2 + $0x8] sm:$0xff] 0.0
    %vm59 = vcmask 1024
    %60 = vst.msk [vmem:[#allocation3] sm:$0x3] %vm59, 0.0
  $region65: #{mesh_des_forward.1} parent=0 // pred_fallthru
    _
  %v61 = vld [vmem:[%s0] sm:$0xff]
  %v62 = vld [vmem:[%s0 + $0x8] sm:$0xff]
  %vm63 = vcmp.eq.f32.partialorder %v61, -1.0
  %vm64 = vcmp.eq.f32.partialorder %v62, -1.0
  %v65 = vld [vmem:[#allocation3] sm:$0x3]
  %v66 = vsel %vm63, 1, 0
  %v67 = vsel %vm64, 1, 0
  %v68 = vcvt.s32.f32 %v66
  %v69 = vcvt.s32.f32 %v67
  %72 = vset.pattern.permute.xlu0 3
  %73 = vperm.xlu0 %72, %v68
  %v74 = vpop.permute.xlu0 %73
  %75 = vset.pattern.permute.xlu0 3
  %76 = vperm.xlu0 %75, %v69
  %v77 = vpop.permute.xlu0 %76
  %v78 = vlaneseq
  %v79 = vand.u32 %v78, 127
  %v80 = vlaneseq
  %v81 = vshrl.u32 %v80, 7
  %v82 = vsub.s32 %v79, %v81
  %v83 = vrot.slane %v74, %v82
  %v84 = vlaneseq
  %v85 = vshrl.u32 %v84, 7
  %v86 = vsub.s32 %v79, %v85
  %v87 = vrot.slane %v77, %v86
  %vm88 = vcmask 1041409
  %v89 = vsel %vm88, %v87, %v83
  %vm91 = vcmask 58368
  %v92 = vsel %vm91, %v89, 0.0
  %93 = vadd.xlane.f32.xlu0 %v92
  %v94 = vpop.xlane.xlu0 %93
  %v95 = vadd.f32 %v65, %v94
  %vm96 = vcmask 1024
  %97 = vst.msk [vmem:[#allocation3] sm:$0x3] %vm96, %v95
  %v98 = vld [vmem:[%s1] sm:$0xf]
  %100 = vset.pattern.permute.xlu0 0
  %101 = vperm.xlu0 %100, %v61
  %v102 = vpop.permute.xlu0 %101
  %105 = vset.pattern.permute.xlu0 0
  %106 = vperm.xlu0 %105, %v62
  %v107 = vpop.permute.xlu0 %106
  %v109 = vlaneseq
  %v110 = vshrl.u32 %v109, 7
  %v111 = vsub.s32 0, %v110
  %v112 = vrot.slane %v98, %v111
  %v113 = vmul.f32 %v102, %v112
  %v114 = vmul.f32 %v107, %v112
  %115 = vset.pattern.permute.xlu0 1
  %116 = vperm.xlu0 %115, %v61
  %v117 = vpop.permute.xlu0 %116
  %119 = vset.pattern.permute.xlu0 1
  %120 = vperm.xlu0 %119, %v62
  %v121 = vpop.permute.xlu0 %120
  %v123 = vlaneseq
  %v124 = vshrl.u32 %v123, 7
  %v125 = vsub.s32 1, %v124
  %v126 = vrot.slane %v98, %v125
  %v127 = vmul.f32 %v117, %v126
  %v128 = vmul.f32 %v121, %v126
  %v129 = vadd.f32 %v113, %v127
  %v130 = vadd.f32 %v114, %v128
  %131 = vset.pattern.permute.xlu0 2
  %132 = vperm.xlu0 %131, %v61
  %v133 = vpop.permute.xlu0 %132
  %135 = vset.pattern.permute.xlu0 2
  %136 = vperm.xlu0 %135, %v62
  %v137 = vpop.permute.xlu0 %136
  %v139 = vlaneseq
  %v140 = vshrl.u32 %v139, 7
  %v141 = vsub.s32 2, %v140
  %v142 = vrot.slane %v98, %v141
  %v143 = vmul.f32 %v133, %v142
  %v144 = vmul.f32 %v137, %v142
  %v145 = vadd.f32 %v129, %v143
  %v146 = vadd.f32 %v130, %v144
  %147 = vset.pattern.permute.xlu0 3
  %148 = vperm.xlu0 %147, %v61
  %v149 = vpop.permute.xlu0 %148
  %151 = vset.pattern.permute.xlu0 3
  %152 = vperm.xlu0 %151, %v62
  %v153 = vpop.permute.xlu0 %152
  %v155 = vlaneseq
  %v156 = vshrl.u32 %v155, 7
  %v157 = vsub.s32 3, %v156
  %v158 = vrot.slane %v98, %v157
  %v159 = vmul.f32 %v149, %v158
  %v160 = vmul.f32 %v153, %v158
  %v161 = vadd.f32 %v145, %v159
  %v162 = vadd.f32 %v146, %v160
  %v163 = vld [vmem:[%s2] sm:$0x1]
  %v165 = vlaneseq
  %v166 = vshrl.u32 %v165, 7
  %v167 = vsub.s32 0, %v166
  %v168 = vrot.slane %v163, %v167
  %v170 = vadd.f32 %v161, %v168
  %v171 = vadd.f32 %v162, %v168
  %v172 = vmul.f32 %v170, 0.2
  %v173 = vmul.f32 %v171, 0.2
  %v174 = vmax.f32 %v170, %v172
  %v175 = vmax.f32 %v171, %v173
  %v176 = vld [vmem:[%s3] sm:$0xff]
  %v177 = vld [vmem:[%s3 + $0x8] sm:$0xff]
  %v178 = vld [vmem:[%s3 + $0x10] sm:$0xff]
  %v179 = vld [vmem:[%s3 + $0x18] sm:$0xff]
  %v180 = vld [vmem:[%s3 + $0x20] sm:$0xff]
  %v181 = vld [vmem:[%s3 + $0x28] sm:$0xff]
  %v182 = vld [vmem:[%s3 + $0x30] sm:$0xff]
  %v183 = vld [vmem:[%s3 + $0x38] sm:$0xff]
  %v184 = vld [vmem:[%s4] sm:$0x1]
  %v186 = vlaneseq
  %v187 = vshrl.u32 %v186, 7
  %v188 = vsub.s32 0, %v187
  %v189 = vrot.slane %v184, %v188
  %vm191 = vcmask 523264
  %v193 = vsel %vm191, %v174, 0
  %v196 = vsel %vm191, %v175, 0
  %198 = vmatprep.subr.mxu0 0.0
  %199 = vmatpush1.msra.mxu0 0.0
  %200 = vmatprep.subr.mxu0 0.0
  %201 = vmatpush1.msra.mxu0 0.0
  %202 = vmatprep.subr.mxu0 0.0
  %203 = vmatpush1.msra.mxu0 0.0
  %204 = vmatprep.subr.mxu0 0.0
  %205 = vmatpush1.msra.mxu0 0.0
  %206 = vmatprep.subr.mxu0 0.0
  %207 = vmatpush1.msra.mxu0 0.0
  %208 = vmatprep.subr.mxu0 0.0
  %209 = vmatpush1.msra.mxu0 0.0
  %210 = vmatprep.subr.mxu0 0.0
  %211 = vmatpush1.msra.mxu0 0.0
  %212 = vmatprep.subr.mxu0 0.0
  %213 = vmatpush1.msra.mxu0 0.0
  %214 = vmatprep.subr.mxu0 0.0
  %215 = vmatpush1.msra.mxu0 %v183
  %216 = vmatprep.subr.mxu0 0.0
  %217 = vmatpush1.msra.mxu0 %v182
  %218 = vmatprep.subr.mxu0 0.0
  %219 = vmatpush1.msra.mxu0 %v181
  %220 = vmatprep.subr.mxu0 0.0
  %221 = vmatpush1.msra.mxu0 %v180
  %222 = vmatprep.subr.mxu0 0.0
  %223 = vmatpush1.msra.mxu0 %v179
  %224 = vmatprep.subr.mxu0 0.0
  %225 = vmatpush1.msra.mxu0 %v178
  %226 = vmatprep.subr.mxu0 0.0
  %227 = vmatpush1.msra.mxu0 %v177
  %228 = vmatprep.subr.mxu0 0.0
  %229 = vmatpush1.msra.mxu0 %v176
  %230 = vmatprep.subr.mxu0 0.0
  %231 = vmatpush2.msra.mxu0 0.0
  %232 = vmatprep.subr.mxu0 0.0
  %233 = vmatpush2.msra.mxu0 0.0
  %234 = vmatprep.subr.mxu0 0.0
  %235 = vmatpush2.msra.mxu0 0.0
  %236 = vmatprep.subr.mxu0 0.0
  %237 = vmatpush2.msra.mxu0 0.0
  %238 = vmatprep.subr.mxu0 0.0
  %239 = vmatpush2.msra.mxu0 0.0
  %240 = vmatprep.subr.mxu0 0.0
  %241 = vmatpush2.msra.mxu0 0.0
  %242 = vmatprep.subr.mxu0 0.0
  %243 = vmatpush2.msra.mxu0 0.0
  %244 = vmatprep.subr.mxu0 0.0
  %245 = vmatpush2.msra.mxu0 0.0
  %246 = vmatprep.subr.mxu0 0.0
  %247 = vmatpush2.msra.mxu0 0.0
  %248 = vmatprep.subr.mxu0 0.0
  %249 = vmatpush2.msra.mxu0 0.0
  %250 = vmatprep.subr.mxu0 0.0
  %251 = vmatpush2.msra.mxu0 0.0
  %252 = vmatprep.subr.mxu0 0.0
  %253 = vmatpush2.msra.mxu0 0.0
  %254 = vmatprep.subr.mxu0 0.0
  %255 = vmatpush2.msra.mxu0 0.0
  %256 = vmatprep.subr.mxu0 0.0
  %257 = vmatpush2.msra.mxu0 0.0
  %258 = vmatprep.subr.mxu0 0.0
  %259 = vmatpush2.msra.mxu0 0.0
  %260 = vmatprep.subr.mxu0 0.0
  %261 = vmatpush2.msra.mxu0 0.0
  %262 = vmatprep.mubr.f32.mxu0 0.0
  %263 = vmatmul.mubr.f32.gmra.mxu0 %v193
  %v264 = vpop.f32.mrf.mxu0
  %v265 = vadd.f32 %v189, %v264
  %v266 = vpop.f32.mrf.mxu0
  %267 = vmatprep.mubr.f32.mxu0 0.0
  %268 = vmatmul.mubr.f32.gmra.mxu0 %v196
  %v269 = vpop.f32.mrf.mxu0
  %v270 = vadd.f32 %v189, %v269
  %v271 = vpop.f32.mrf.mxu0
  %272 = vdwg.mxu0
  %v273 = vmul.f32 %v265, 0.2
  %v274 = vmul.f32 %v270, 0.2
  %v275 = vmax.f32 %v265, %v273
  %v276 = vmax.f32 %v270, %v274
  %v277 = vpack.c.bf16 %v276, %v275
  %v278 = vld [vmem:[%s5] sm:$0xff]
  %v279 = vld [vmem:[%s5 + $0x8] sm:$0xff]
  %v280 = vld [vmem:[%s5 + $0x10] sm:$0xff]
  %v281 = vld [vmem:[%s5 + $0x18] sm:$0xff]
  %v282 = vld [vmem:[%s5 + $0x20] sm:$0xff]
  %v283 = vld [vmem:[%s5 + $0x28] sm:$0xff]
  %v284 = vld [vmem:[%s5 + $0x30] sm:$0xff]
  %v285 = vld [vmem:[%s5 + $0x38] sm:$0xff]
  %v286 = vld [vmem:[%s5 + $0x40] sm:$0xff]
  %v287 = vld [vmem:[%s5 + $0x48] sm:$0xff]
  %v288 = vld [vmem:[%s5 + $0x50] sm:$0xff]
  %v289 = vld [vmem:[%s5 + $0x58] sm:$0xff]
  %v290 = vld [vmem:[%s5 + $0x60] sm:$0xff]
  %v291 = vld [vmem:[%s5 + $0x68] sm:$0xff]
  %v292 = vld [vmem:[%s5 + $0x70] sm:$0xff]
  %v293 = vld [vmem:[%s5 + $0x78] sm:$0xff]
  %v294 = vld [vmem:[%s5 + $0x80] sm:$0xff]
  %v295 = vld [vmem:[%s5 + $0x88] sm:$0xff]
  %v296 = vld [vmem:[%s5 + $0x90] sm:$0xff]
  %v297 = vld [vmem:[%s5 + $0x98] sm:$0xff]
  %v298 = vld [vmem:[%s5 + $0xa0] sm:$0xff]
  %v299 = vld [vmem:[%s5 + $0xa8] sm:$0xff]
  %v300 = vld [vmem:[%s5 + $0xb0] sm:$0xff]
  %v301 = vld [vmem:[%s5 + $0xb8] sm:$0xff]
  %v302 = vld [vmem:[%s5 + $0xc0] sm:$0xff]
  %v303 = vld [vmem:[%s5 + $0xc8] sm:$0xff]
  %v304 = vld [vmem:[%s5 + $0xd0] sm:$0xff]
  %v305 = vld [vmem:[%s5 + $0xd8] sm:$0xff]
  %v306 = vld [vmem:[%s5 + $0xe0] sm:$0xff]
  %v307 = vld [vmem:[%s5 + $0xe8] sm:$0xff]
  %v308 = vld [vmem:[%s5 + $0xf0] sm:$0xff]
  %v309 = vld [vmem:[%s5 + $0xf8] sm:$0xff]
  %v310 = vld [vmem:[%s6] sm:$0xf]
  %v312 = vlaneseq
  %v313 = vshrl.u32 %v312, 7
  %v314 = vsub.s32 0, %v313
  %v315 = vrot.slane %v310, %v314
  %v316 = vlaneseq
  %v317 = vshrl.u32 %v316, 7
  %v318 = vsub.s32 1, %v317
  %v319 = vrot.slane %v310, %v318
  %v320 = vlaneseq
  %v321 = vshrl.u32 %v320, 7
  %v322 = vsub.s32 2, %v321
  %v323 = vrot.slane %v310, %v322
  %v324 = vlaneseq
  %v325 = vshrl.u32 %v324, 7
  %v326 = vsub.s32 3, %v325
  %v327 = vrot.slane %v310, %v326
  %v364 = vunpack.c.l.b16 %v278
  %v365 = vunpack.c.h.b16 %v278
  %v366 = vunpack.c.l.b16 %v279
  %v367 = vunpack.c.h.b16 %v279
  %v368 = vunpack.c.l.b16 %v280
  %v369 = vunpack.c.h.b16 %v280
  %v370 = vunpack.c.l.b16 %v281
  %v371 = vunpack.c.h.b16 %v281
  %v372 = vunpack.c.l.b16 %v282
  %v373 = vunpack.c.h.b16 %v282
  %v374 = vunpack.c.l.b16 %v283
  %v375 = vunpack.c.h.b16 %v283
  %v376 = vunpack.c.l.b16 %v284
  %v377 = vunpack.c.h.b16 %v284
  %v378 = vunpack.c.l.b16 %v285
  %v379 = vunpack.c.h.b16 %v285
  %v380 = vunpack.c.l.b16 %v286
  %v381 = vunpack.c.h.b16 %v286
  %v382 = vunpack.c.l.b16 %v287
  %v383 = vunpack.c.h.b16 %v287
  %v384 = vunpack.c.l.b16 %v288
  %v385 = vunpack.c.h.b16 %v288
  %v386 = vunpack.c.l.b16 %v289
  %v387 = vunpack.c.h.b16 %v289
  %v388 = vunpack.c.l.b16 %v290
  %v389 = vunpack.c.h.b16 %v290
  %v390 = vunpack.c.l.b16 %v291
  %v391 = vunpack.c.h.b16 %v291
  %v392 = vunpack.c.l.b16 %v292
  %v393 = vunpack.c.h.b16 %v292
  %v394 = vunpack.c.l.b16 %v293
  %v395 = vunpack.c.h.b16 %v293
  %v396 = vunpack.c.l.b16 %v294
  %v397 = vunpack.c.h.b16 %v294
  %v398 = vunpack.c.l.b16 %v295
  %v399 = vunpack.c.h.b16 %v295
  %v400 = vunpack.c.l.b16 %v296
  %v401 = vunpack.c.h.b16 %v296
  %v402 = vunpack.c.l.b16 %v297
  %v403 = vunpack.c.h.b16 %v297
  %v404 = vunpack.c.l.b16 %v298
  %v405 = vunpack.c.h.b16 %v298
  %v406 = vunpack.c.l.b16 %v299
  %v407 = vunpack.c.h.b16 %v299
  %v408 = vunpack.c.l.b16 %v300
  %v409 = vunpack.c.h.b16 %v300
  %v410 = vunpack.c.l.b16 %v301
  %v411 = vunpack.c.h.b16 %v301
  %v412 = vunpack.c.l.b16 %v302
  %v413 = vunpack.c.h.b16 %v302
  %v414 = vunpack.c.l.b16 %v303
  %v415 = vunpack.c.h.b16 %v303
  %v416 = vunpack.c.l.b16 %v304
  %v417 = vunpack.c.h.b16 %v304
  %v418 = vunpack.c.l.b16 %v305
  %v419 = vunpack.c.h.b16 %v305
  %v420 = vunpack.c.l.b16 %v306
  %v421 = vunpack.c.h.b16 %v306
  %v422 = vunpack.c.l.b16 %v307
  %v423 = vunpack.c.h.b16 %v307
  %v424 = vunpack.c.l.b16 %v308
  %v425 = vunpack.c.h.b16 %v308
  %v426 = vunpack.c.l.b16 %v309
  %v427 = vunpack.c.h.b16 %v309
  %v428 = vpack.c.b16 %v368, %v364
  %v429 = vpack.c.b16 %v369, %v365
  %v430 = vpack.c.b16 %v370, %v366
  %v431 = vpack.c.b16 %v371, %v367
  %v432 = vpack.c.b16 %v376, %v372
  %v433 = vpack.c.b16 %v377, %v373
  %v434 = vpack.c.b16 %v378, %v374
  %v435 = vpack.c.b16 %v379, %v375
  %v436 = vpack.c.b16 %v384, %v380
  %v437 = vpack.c.b16 %v385, %v381
  %v438 = vpack.c.b16 %v386, %v382
  %v439 = vpack.c.b16 %v387, %v383
  %v440 = vpack.c.b16 %v392, %v388
  %v441 = vpack.c.b16 %v393, %v389
  %v442 = vpack.c.b16 %v394, %v390
  %v443 = vpack.c.b16 %v395, %v391
  %v444 = vpack.c.b16 %v400, %v396
  %v445 = vpack.c.b16 %v401, %v397
  %v446 = vpack.c.b16 %v402, %v398
  %v447 = vpack.c.b16 %v403, %v399
  %v448 = vpack.c.b16 %v408, %v404
  %v449 = vpack.c.b16 %v409, %v405
  %v450 = vpack.c.b16 %v410, %v406
  %v451 = vpack.c.b16 %v411, %v407
  %v452 = vpack.c.b16 %v416, %v412
  %v453 = vpack.c.b16 %v417, %v413
  %v454 = vpack.c.b16 %v418, %v414
  %v455 = vpack.c.b16 %v419, %v415
  %v456 = vpack.c.b16 %v424, %v420
  %v457 = vpack.c.b16 %v425, %v421
  %v458 = vpack.c.b16 %v426, %v422
  %v459 = vpack.c.b16 %v427, %v423
  %492 = vmatprep.subr.bf16.mxu0 %v457
  %493 = vmatpush1.bf16.msra.mxu0 %v456
  %494 = vmatprep.subr.bf16.mxu0 %v453
  %495 = vmatpush1.bf16.msra.mxu0 %v452
  %496 = vmatprep.subr.bf16.mxu0 %v449
  %497 = vmatpush1.bf16.msra.mxu0 %v448
  %498 = vmatprep.subr.bf16.mxu0 %v445
  %499 = vmatpush1.bf16.msra.mxu0 %v444
  %500 = vmatprep.subr.bf16.mxu0 %v441
  %501 = vmatpush1.bf16.msra.mxu0 %v440
  %502 = vmatprep.subr.bf16.mxu0 %v437
  %503 = vmatpush1.bf16.msra.mxu0 %v436
  %504 = vmatprep.subr.bf16.mxu0 %v433
  %505 = vmatpush1.bf16.msra.mxu0 %v432
  %506 = vmatprep.subr.bf16.mxu0 %v429
  %507 = vmatpush1.bf16.msra.mxu0 %v428
  %508 = vmatprep.subr.bf16.mxu0 0
  %509 = vmatpush2.bf16.msra.mxu0 0
  %510 = vmatprep.subr.bf16.mxu0 0
  %511 = vmatpush2.bf16.msra.mxu0 0
  %512 = vmatprep.subr.bf16.mxu0 0
  %513 = vmatpush2.bf16.msra.mxu0 0
  %514 = vmatprep.subr.bf16.mxu0 0
  %515 = vmatpush2.bf16.msra.mxu0 0
  %516 = vmatprep.subr.bf16.mxu0 0
  %517 = vmatpush2.bf16.msra.mxu0 0
  %518 = vmatprep.subr.bf16.mxu0 0
  %519 = vmatpush2.bf16.msra.mxu0 0
  %520 = vmatprep.subr.bf16.mxu0 0
  %521 = vmatpush2.bf16.msra.mxu0 0
  %522 = vmatprep.subr.bf16.mxu0 0
  %523 = vmatpush2.bf16.msra.mxu0 0
  %524 = vmatprep.mubr.bf16.mxu0 0
  %525 = vmatmul.mubr.bf16.gmra.mxu0 %v277
  %v526 = vpop.f32.mrf.mxu0
  %v527 = vadd.f32 %v315, %v526
  %v528 = vpop.f32.mrf.mxu0
  %v529 = vadd.f32 %v319, %v528
  %v530 = vpop.f32.mrf.mxu0
  %v531 = vadd.f32 %v315, %v530
  %v532 = vpop.f32.mrf.mxu0
  %v533 = vadd.f32 %v319, %v532
  %534 = vdwg.mxu0
  %535 = vmatprep.subr.bf16.mxu0 %v459
  %536 = vmatpush1.bf16.msra.mxu0 %v458
  %537 = vmatprep.subr.bf16.mxu0 %v455
  %538 = vmatpush1.bf16.msra.mxu0 %v454
  %539 = vmatprep.subr.bf16.mxu0 %v451
  %540 = vmatpush1.bf16.msra.mxu0 %v450
  %541 = vmatprep.subr.bf16.mxu0 %v447
  %542 = vmatpush1.bf16.msra.mxu0 %v446
  %543 = vmatprep.subr.bf16.mxu0 %v443
  %544 = vmatpush1.bf16.msra.mxu0 %v442
  %545 = vmatprep.subr.bf16.mxu0 %v439
  %546 = vmatpush1.bf16.msra.mxu0 %v438
  %547 = vmatprep.subr.bf16.mxu0 %v435
  %548 = vmatpush1.bf16.msra.mxu0 %v434
  %549 = vmatprep.subr.bf16.mxu0 %v431
  %550 = vmatpush1.bf16.msra.mxu0 %v430
  %551 = vmatprep.subr.bf16.mxu0 0
  %552 = vmatpush2.bf16.msra.mxu0 0
  %553 = vmatprep.subr.bf16.mxu0 0
  %554 = vmatpush2.bf16.msra.mxu0 0
  %555 = vmatprep.subr.bf16.mxu0 0
  %556 = vmatpush2.bf16.msra.mxu0 0
  %557 = vmatprep.subr.bf16.mxu0 0
  %558 = vmatpush2.bf16.msra.mxu0 0
  %559 = vmatprep.subr.bf16.mxu0 0
  %560 = vmatpush2.bf16.msra.mxu0 0
  %561 = vmatprep.subr.bf16.mxu0 0
  %562 = vmatpush2.bf16.msra.mxu0 0
  %563 = vmatprep.subr.bf16.mxu0 0
  %564 = vmatpush2.bf16.msra.mxu0 0
  %565 = vmatprep.subr.bf16.mxu0 0
  %566 = vmatpush2.bf16.msra.mxu0 0
  %567 = vmatprep.mubr.bf16.mxu0 0
  %568 = vmatmul.mubr.bf16.gmra.mxu0 %v277
  %v569 = vpop.f32.mrf.mxu0
  %v570 = vadd.f32 %v323, %v569
  %v571 = vpop.f32.mrf.mxu0
  %v572 = vadd.f32 %v327, %v571
  %v573 = vpop.f32.mrf.mxu0
  %v574 = vadd.f32 %v323, %v573
  %v575 = vpop.f32.mrf.mxu0
  %v576 = vadd.f32 %v327, %v575
  %577 = vdwg.mxu0
  %v578 = vmul.f32 %v527, 0.2
  %v579 = vmul.f32 %v529, 0.2
  %v580 = vmul.f32 %v570, 0.2
  %v581 = vmul.f32 %v572, 0.2
  %v582 = vmul.f32 %v531, 0.2
  %v583 = vmul.f32 %v533, 0.2
  %v584 = vmul.f32 %v574, 0.2
  %v585 = vmul.f32 %v576, 0.2
  %v586 = vmax.f32 %v527, %v578
  %v587 = vmax.f32 %v529, %v579
  %v588 = vmax.f32 %v570, %v580
  %v589 = vmax.f32 %v572, %v581
  %v590 = vmax.f32 %v531, %v582
  %v591 = vmax.f32 %v533, %v583
  %v592 = vmax.f32 %v574, %v584
  %v593 = vmax.f32 %v576, %v585
  %v594 = vpack.c.bf16 %v590, %v586
  %v595 = vpack.c.bf16 %v591, %v587
  %v596 = vpack.c.bf16 %v592, %v588
  %v597 = vpack.c.bf16 %v593, %v589
  %v598 = vld [vmem:[%s7] sm:$0xff]
  %v599 = vld [vmem:[%s7 + $0x8] sm:$0xff]
  %v600 = vld [vmem:[%s7 + $0x10] sm:$0xff]
  %v601 = vld [vmem:[%s7 + $0x18] sm:$0xff]
  %v602 = vld [vmem:[%s7 + $0x20] sm:$0xff]
  %v603 = vld [vmem:[%s7 + $0x28] sm:$0xff]
  %v604 = vld [vmem:[%s7 + $0x30] sm:$0xff]
  %v605 = vld [vmem:[%s7 + $0x38] sm:$0xff]
  %v606 = vld [vmem:[%s7 + $0x40] sm:$0xff]
  %v607 = vld [vmem:[%s7 + $0x48] sm:$0xff]
  %v608 = vld [vmem:[%s7 + $0x50] sm:$0xff]
  %v609 = vld [vmem:[%s7 + $0x58] sm:$0xff]
  %v610 = vld [vmem:[%s7 + $0x60] sm:$0xff]
  %v611 = vld [vmem:[%s7 + $0x68] sm:$0xff]
  %v612 = vld [vmem:[%s7 + $0x70] sm:$0xff]
  %v613 = vld [vmem:[%s7 + $0x78] sm:$0xff]
  %v614 = vld [vmem:[%s7 + $0x80] sm:$0xff]
  %v615 = vld [vmem:[%s7 + $0x88] sm:$0xff]
  %v616 = vld [vmem:[%s7 + $0x90] sm:$0xff]
  %v617 = vld [vmem:[%s7 + $0x98] sm:$0xff]
  %v618 = vld [vmem:[%s7 + $0xa0] sm:$0xff]
  %v619 = vld [vmem:[%s7 + $0xa8] sm:$0xff]
  %v620 = vld [vmem:[%s7 + $0xb0] sm:$0xff]
  %v621 = vld [vmem:[%s7 + $0xb8] sm:$0xff]
  %v622 = vld [vmem:[%s7 + $0xc0] sm:$0xff]
  %v623 = vld [vmem:[%s7 + $0xc8] sm:$0xff]
  %v624 = vld [vmem:[%s7 + $0xd0] sm:$0xff]
  %v625 = vld [vmem:[%s7 + $0xd8] sm:$0xff]
  %v626 = vld [vmem:[%s7 + $0xe0] sm:$0xff]
  %v627 = vld [vmem:[%s7 + $0xe8] sm:$0xff]
  %v628 = vld [vmem:[%s7 + $0xf0] sm:$0xff]
  %v629 = vld [vmem:[%s7 + $0xf8] sm:$0xff]
  %v630 = vld [vmem:[%s7 + $0x100] sm:$0xff]
  %v631 = vld [vmem:[%s7 + $0x108] sm:$0xff]
  %v632 = vld [vmem:[%s7 + $0x110] sm:$0xff]
  %v633 = vld [vmem:[%s7 + $0x118] sm:$0xff]
  %v634 = vld [vmem:[%s7 + $0x120] sm:$0xff]
  %v635 = vld [vmem:[%s7 + $0x128] sm:$0xff]
  %v636 = vld [vmem:[%s7 + $0x130] sm:$0xff]
  %v637 = vld [vmem:[%s7 + $0x138] sm:$0xff]
  %v638 = vld [vmem:[%s7 + $0x140] sm:$0xff]
  %v639 = vld [vmem:[%s7 + $0x148] sm:$0xff]
  %v640 = vld [vmem:[%s7 + $0x150] sm:$0xff]
  %v641 = vld [vmem:[%s7 + $0x158] sm:$0xff]
  %v642 = vld [vmem:[%s7 + $0x160] sm:$0xff]
  %v643 = vld [vmem:[%s7 + $0x168] sm:$0xff]
  %v644 = vld [vmem:[%s7 + $0x170] sm:$0xff]
  %v645 = vld [vmem:[%s7 + $0x178] sm:$0xff]
  %v646 = vld [vmem:[%s7 + $0x180] sm:$0xff]
  %v647 = vld [vmem:[%s7 + $0x188] sm:$0xff]
  %v648 = vld [vmem:[%s7 + $0x190] sm:$0xff]
  %v649 = vld [vmem:[%s7 + $0x198] sm:$0xff]
  %v650 = vld [vmem:[%s7 + $0x1a0] sm:$0xff]
  %v651 = vld [vmem:[%s7 + $0x1a8] sm:$0xff]
  %v652 = vld [vmem:[%s7 + $0x1b0] sm:$0xff]
  %v653 = vld [vmem:[%s7 + $0x1b8] sm:$0xff]
  %v654 = vld [vmem:[%s7 + $0x1c0] sm:$0xff]
  %v655 = vld [vmem:[%s7 + $0x1c8] sm:$0xff]
  %v656 = vld [vmem:[%s7 + $0x1d0] sm:$0xff]
  %v657 = vld [vmem:[%s7 + $0x1d8] sm:$0xff]
  %v658 = vld [vmem:[%s7 + $0x1e0] sm:$0xff]
  %v659 = vld [vmem:[%s7 + $0x1e8] sm:$0xff]
  %v660 = vld [vmem:[%s7 + $0x1f0] sm:$0xff]
  %v661 = vld [vmem:[%s7 + $0x1f8] sm:$0xff]
  %v662 = vld [vmem:[%s7 + $0x200] sm:$0xff]
  %v663 = vld [vmem:[%s7 + $0x208] sm:$0xff]
  %v664 = vld [vmem:[%s7 + $0x210] sm:$0xff]
  %v665 = vld [vmem:[%s7 + $0x218] sm:$0xff]
  %v666 = vld [vmem:[%s7 + $0x220] sm:$0xff]
  %v667 = vld [vmem:[%s7 + $0x228] sm:$0xff]
  %v668 = vld [vmem:[%s7 + $0x230] sm:$0xff]
  %v669 = vld [vmem:[%s7 + $0x238] sm:$0xff]
  %v670 = vld [vmem:[%s7 + $0x240] sm:$0xff]
  %v671 = vld [vmem:[%s7 + $0x248] sm:$0xff]
  %v672 = vld [vmem:[%s7 + $0x250] sm:$0xff]
  %v673 = vld [vmem:[%s7 + $0x258] sm:$0xff]
  %v674 = vld [vmem:[%s7 + $0x260] sm:$0xff]
  %v675 = vld [vmem:[%s7 + $0x268] sm:$0xff]
  %v676 = vld [vmem:[%s7 + $0x270] sm:$0xff]
  %v677 = vld [vmem:[%s7 + $0x278] sm:$0xff]
  %v678 = vld [vmem:[%s7 + $0x280] sm:$0xff]
  %v679 = vld [vmem:[%s7 + $0x288] sm:$0xff]
  %v680 = vld [vmem:[%s7 + $0x290] sm:$0xff]
  %v681 = vld [vmem:[%s7 + $0x298] sm:$0xff]
  %v682 = vld [vmem:[%s7 + $0x2a0] sm:$0xff]
  %v683 = vld [vmem:[%s7 + $0x2a8] sm:$0xff]
  %v684 = vld [vmem:[%s7 + $0x2b0] sm:$0xff]
  %v685 = vld [vmem:[%s7 + $0x2b8] sm:$0xff]
  %v686 = vld [vmem:[%s7 + $0x2c0] sm:$0xff]
  %v687 = vld [vmem:[%s7 + $0x2c8] sm:$0xff]
  %v688 = vld [vmem:[%s7 + $0x2d0] sm:$0xff]
  %v689 = vld [vmem:[%s7 + $0x2d8] sm:$0xff]
  %v690 = vld [vmem:[%s7 + $0x2e0] sm:$0xff]
  %v691 = vld [vmem:[%s7 + $0x2e8] sm:$0xff]
  %v692 = vld [vmem:[%s7 + $0x2f0] sm:$0xff]
  %v693 = vld [vmem:[%s7 + $0x2f8] sm:$0xff]
  %v694 = vld [vmem:[%s7 + $0x300] sm:$0xff]
  %v695 = vld [vmem:[%s7 + $0x308] sm:$0xff]
  %v696 = vld [vmem:[%s7 + $0x310] sm:$0xff]
  %v697 = vld [vmem:[%s7 + $0x318] sm:$0xff]
  %v698 = vld [vmem:[%s7 + $0x320] sm:$0xff]
  %v699 = vld [vmem:[%s7 + $0x328] sm:$0xff]
  %v700 = vld [vmem:[%s7 + $0x330] sm:$0xff]
  %v701 = vld [vmem:[%s7 + $0x338] sm:$0xff]
  %v702 = vld [vmem:[%s7 + $0x340] sm:$0xff]
  %v703 = vld [vmem:[%s7 + $0x348] sm:$0xff]
  %v704 = vld [vmem:[%s7 + $0x350] sm:$0xff]
  %v705 = vld [vmem:[%s7 + $0x358] sm:$0xff]
  %v706 = vld [vmem:[%s7 + $0x360] sm:$0xff]
  %v707 = vld [vmem:[%s7 + $0x368] sm:$0xff]
  %v708 = vld [vmem:[%s7 + $0x370] sm:$0xff]
  %v709 = vld [vmem:[%s7 + $0x378] sm:$0xff]
  %v710 = vld [vmem:[%s7 + $0x380] sm:$0xff]
  %v711 = vld [vmem:[%s7 + $0x388] sm:$0xff]
  %v712 = vld [vmem:[%s7 + $0x390] sm:$0xff]
  %v713 = vld [vmem:[%s7 + $0x398] sm:$0xff]
  %v714 = vld [vmem:[%s7 + $0x3a0] sm:$0xff]
  %v715 = vld [vmem:[%s7 + $0x3a8] sm:$0xff]
  %v716 = vld [vmem:[%s7 + $0x3b0] sm:$0xff]
  %v717 = vld [vmem:[%s7 + $0x3b8] sm:$0xff]
  %v718 = vld [vmem:[%s7 + $0x3c0] sm:$0xff]
  %v719 = vld [vmem:[%s7 + $0x3c8] sm:$0xff]
  %v720 = vld [vmem:[%s7 + $0x3d0] sm:$0xff]
  %v721 = vld [vmem:[%s7 + $0x3d8] sm:$0xff]
  %v722 = vld [vmem:[%s7 + $0x3e0] sm:$0xff]
  %v723 = vld [vmem:[%s7 + $0x3e8] sm:$0xff]
  %v724 = vld [vmem:[%s7 + $0x3f0] sm:$0xff]
  %v725 = vld [vmem:[%s7 + $0x3f8] sm:$0xff]
  %v726 = vld [vmem:[%s7 + $0x400] sm:$0xff]
  %v727 = vld [vmem:[%s7 + $0x408] sm:$0xff]
  %v728 = vld [vmem:[%s7 + $0x410] sm:$0xff]
  %v729 = vld [vmem:[%s7 + $0x418] sm:$0xff]
  %v730 = vld [vmem:[%s7 + $0x420] sm:$0xff]
  %v731 = vld [vmem:[%s7 + $0x428] sm:$0xff]
  %v732 = vld [vmem:[%s7 + $0x430] sm:$0xff]
  %v733 = vld [vmem:[%s7 + $0x438] sm:$0xff]
  %v734 = vld [vmem:[%s7 + $0x440] sm:$0xff]
  %v735 = vld [vmem:[%s7 + $0x448] sm:$0xff]
  %v736 = vld [vmem:[%s7 + $0x450] sm:$0xff]
  %v737 = vld [vmem:[%s7 + $0x458] sm:$0xff]
  %v738 = vld [vmem:[%s7 + $0x460] sm:$0xff]
  %v739 = vld [vmem:[%s7 + $0x468] sm:$0xff]
  %v740 = vld [vmem:[%s7 + $0x470] sm:$0xff]
  %v741 = vld [vmem:[%s7 + $0x478] sm:$0xff]
  %v742 = vld [vmem:[%s7 + $0x480] sm:$0xff]
  %v743 = vld [vmem:[%s7 + $0x488] sm:$0xff]
  %v744 = vld [vmem:[%s7 + $0x490] sm:$0xff]
  %v745 = vld [vmem:[%s7 + $0x498] sm:$0xff]
  %v746 = vld [vmem:[%s7 + $0x4a0] sm:$0xff]
  %v747 = vld [vmem:[%s7 + $0x4a8] sm:$0xff]
  %v748 = vld [vmem:[%s7 + $0x4b0] sm:$0xff]
  %v749 = vld [vmem:[%s7 + $0x4b8] sm:$0xff]
  %v750 = vld [vmem:[%s7 + $0x4c0] sm:$0xff]
  %v751 = vld [vmem:[%s7 + $0x4c8] sm:$0xff]
  %v752 = vld [vmem:[%s7 + $0x4d0] sm:$0xff]
  %v753 = vld [vmem:[%s7 + $0x4d8] sm:$0xff]
  %v754 = vld [vmem:[%s7 + $0x4e0] sm:$0xff]
  %v755 = vld [vmem:[%s7 + $0x4e8] sm:$0xff]
  %v756 = vld [vmem:[%s7 + $0x4f0] sm:$0xff]
  %v757 = vld [vmem:[%s7 + $0x4f8] sm:$0xff]
  %v758 = vld [vmem:[%s7 + $0x500] sm:$0xff]
  %v759 = vld [vmem:[%s7 + $0x508] sm:$0xff]
  %v760 = vld [vmem:[%s7 + $0x510] sm:$0xff]
  %v761 = vld [vmem:[%s7 + $0x518] sm:$0xff]
  %v762 = vld [vmem:[%s7 + $0x520] sm:$0xff]
  %v763 = vld [vmem:[%s7 + $0x528] sm:$0xff]
  %v764 = vld [vmem:[%s7 + $0x530] sm:$0xff]
  %v765 = vld [vmem:[%s7 + $0x538] sm:$0xff]
  %v766 = vld [vmem:[%s7 + $0x540] sm:$0xff]
  %v767 = vld [vmem:[%s7 + $0x548] sm:$0xff]
  %v768 = vld [vmem:[%s7 + $0x550] sm:$0xff]
  %v769 = vld [vmem:[%s7 + $0x558] sm:$0xff]
  %v770 = vld [vmem:[%s7 + $0x560] sm:$0xff]
  %v771 = vld [vmem:[%s7 + $0x568] sm:$0xff]
  %v772 = vld [vmem:[%s7 + $0x570] sm:$0xff]
  %v773 = vld [vmem:[%s7 + $0x578] sm:$0xff]
  %v774 = vld [vmem:[%s7 + $0x580] sm:$0xff]
  %v775 = vld [vmem:[%s7 + $0x588] sm:$0xff]
  %v776 = vld [vmem:[%s7 + $0x590] sm:$0xff]
  %v777 = vld [vmem:[%s7 + $0x598] sm:$0xff]
  %v778 = vld [vmem:[%s7 + $0x5a0] sm:$0xff]
  %v779 = vld [vmem:[%s7 + $0x5a8] sm:$0xff]
  %v780 = vld [vmem:[%s7 + $0x5b0] sm:$0xff]
  %v781 = vld [vmem:[%s7 + $0x5b8] sm:$0xff]
  %v782 = vld [vmem:[%s7 + $0x5c0] sm:$0xff]
  %v783 = vld [vmem:[%s7 + $0x5c8] sm:$0xff]
  %v784 = vld [vmem:[%s7 + $0x5d0] sm:$0xff]
  %v785 = vld [vmem:[%s7 + $0x5d8] sm:$0xff]
  %v786 = vld [vmem:[%s7 + $0x5e0] sm:$0xff]
  %v787 = vld [vmem:[%s7 + $0x5e8] sm:$0xff]
  %v788 = vld [vmem:[%s7 + $0x5f0] sm:$0xff]
  %v789 = vld [vmem:[%s7 + $0x5f8] sm:$0xff]
  %v790 = vld [vmem:[%s7 + $0x600] sm:$0xff]
  %v791 = vld [vmem:[%s7 + $0x608] sm:$0xff]
  %v792 = vld [vmem:[%s7 + $0x610] sm:$0xff]
  %v793 = vld [vmem:[%s7 + $0x618] sm:$0xff]
  %v794 = vld [vmem:[%s7 + $0x620] sm:$0xff]
  %v795 = vld [vmem:[%s7 + $0x628] sm:$0xff]
  %v796 = vld [vmem:[%s7 + $0x630] sm:$0xff]
  %v797 = vld [vmem:[%s7 + $0x638] sm:$0xff]
  %v798 = vld [vmem:[%s7 + $0x640] sm:$0xff]
  %v799 = vld [vmem:[%s7 + $0x648] sm:$0xff]
  %v800 = vld [vmem:[%s7 + $0x650] sm:$0xff]
  %v801 = vld [vmem:[%s7 + $0x658] sm:$0xff]
  %v802 = vld [vmem:[%s7 + $0x660] sm:$0xff]
  %v803 = vld [vmem:[%s7 + $0x668] sm:$0xff]
  %v804 = vld [vmem:[%s7 + $0x670] sm:$0xff]
  %v805 = vld [vmem:[%s7 + $0x678] sm:$0xff]
  %v806 = vld [vmem:[%s7 + $0x680] sm:$0xff]
  %v807 = vld [vmem:[%s7 + $0x688] sm:$0xff]
  %v808 = vld [vmem:[%s7 + $0x690] sm:$0xff]
  %v809 = vld [vmem:[%s7 + $0x698] sm:$0xff]
  %v810 = vld [vmem:[%s7 + $0x6a0] sm:$0xff]
  %v811 = vld [vmem:[%s7 + $0x6a8] sm:$0xff]
  %v812 = vld [vmem:[%s7 + $0x6b0] sm:$0xff]
  %v813 = vld [vmem:[%s7 + $0x6b8] sm:$0xff]
  %v814 = vld [vmem:[%s7 + $0x6c0] sm:$0xff]
  %v815 = vld [vmem:[%s7 + $0x6c8] sm:$0xff]
  %v816 = vld [vmem:[%s7 + $0x6d0] sm:$0xff]
  %v817 = vld [vmem:[%s7 + $0x6d8] sm:$0xff]
  %v818 = vld [vmem:[%s7 + $0x6e0] sm:$0xff]
  %v819 = vld [vmem:[%s7 + $0x6e8] sm:$0xff]
  %v820 = vld [vmem:[%s7 + $0x6f0] sm:$0xff]
  %v821 = vld [vmem:[%s7 + $0x6f8] sm:$0xff]
  %v822 = vld [vmem:[%s7 + $0x700] sm:$0xff]
  %v823 = vld [vmem:[%s7 + $0x708] sm:$0xff]
  %v824 = vld [vmem:[%s7 + $0x710] sm:$0xff]
  %v825 = vld [vmem:[%s7 + $0x718] sm:$0xff]
  %v826 = vld [vmem:[%s7 + $0x720] sm:$0xff]
  %v827 = vld [vmem:[%s7 + $0x728] sm:$0xff]
  %v828 = vld [vmem:[%s7 + $0x730] sm:$0xff]
  %v829 = vld [vmem:[%s7 + $0x738] sm:$0xff]
  %v830 = vld [vmem:[%s7 + $0x740] sm:$0xff]
  %v831 = vld [vmem:[%s7 + $0x748] sm:$0xff]
  %v832 = vld [vmem:[%s7 + $0x750] sm:$0xff]
  %v833 = vld [vmem:[%s7 + $0x758] sm:$0xff]
  %v834 = vld [vmem:[%s7 + $0x760] sm:$0xff]
  %v835 = vld [vmem:[%s7 + $0x768] sm:$0xff]
  %v836 = vld [vmem:[%s7 + $0x770] sm:$0xff]
  %v837 = vld [vmem:[%s7 + $0x778] sm:$0xff]
  %v838 = vld [vmem:[%s7 + $0x780] sm:$0xff]
  %v839 = vld [vmem:[%s7 + $0x788] sm:$0xff]
  %v840 = vld [vmem:[%s7 + $0x790] sm:$0xff]
  %v841 = vld [vmem:[%s7 + $0x798] sm:$0xff]
  %v842 = vld [vmem:[%s7 + $0x7a0] sm:$0xff]
  %v843 = vld [vmem:[%s7 + $0x7a8] sm:$0xff]
  %v844 = vld [vmem:[%s7 + $0x7b0] sm:$0xff]
  %v845 = vld [vmem:[%s7 + $0x7b8] sm:$0xff]
  %v846 = vld [vmem:[%s7 + $0x7c0] sm:$0xff]
  %v847 = vld [vmem:[%s7 + $0x7c8] sm:$0xff]
  %v848 = vld [vmem:[%s7 + $0x7d0] sm:$0xff]
  %v849 = vld [vmem:[%s7 + $0x7d8] sm:$0xff]
  %v850 = vld [vmem:[%s7 + $0x7e0] sm:$0xff]
  %v851 = vld [vmem:[%s7 + $0x7e8] sm:$0xff]
  %v852 = vld [vmem:[%s7 + $0x7f0] sm:$0xff]
  %v853 = vld [vmem:[%s7 + $0x7f8] sm:$0xff]
  %v854 = vld [vmem:[%s8] sm:$0xff]
  %v856 = vlaneseq
  %v857 = vshrl.u32 %v856, 7
  %v858 = vsub.s32 0, %v857
  %v859 = vrot.slane %v854, %v858
  %v860 = vlaneseq
  %v861 = vshrl.u32 %v860, 7
  %v862 = vsub.s32 1, %v861
  %v863 = vrot.slane %v854, %v862
  %v864 = vlaneseq
  %v865 = vshrl.u32 %v864, 7
  %v866 = vsub.s32 2, %v865
  %v867 = vrot.slane %v854, %v866
  %v868 = vlaneseq
  %v869 = vshrl.u32 %v868, 7
  %v870 = vsub.s32 3, %v869
  %v871 = vrot.slane %v854, %v870
  %v872 = vlaneseq
  %v873 = vshrl.u32 %v872, 7
  %v874 = vsub.s32 4, %v873
  %v875 = vrot.slane %v854, %v874
  %v876 = vlaneseq
  %v877 = vshrl.u32 %v876, 7
  %v878 = vsub.s32 5, %v877
  %v879 = vrot.slane %v854, %v878
  %v880 = vlaneseq
  %v881 = vshrl.u32 %v880, 7
  %v882 = vsub.s32 6, %v881
  %v883 = vrot.slane %v854, %v882
  %v884 = vlaneseq
  %v885 = vshrl.u32 %v884, 7
  %v886 = vsub.s32 7, %v885
  %v887 = vrot.slane %v854, %v886
  %v1152 = vunpack.c.l.b16 %v598
  %v1153 = vunpack.c.h.b16 %v598
  %v1154 = vunpack.c.l.b16 %v599
  %v1155 = vunpack.c.h.b16 %v599
  %v1156 = vunpack.c.l.b16 %v600
  %v1157 = vunpack.c.h.b16 %v600
  %v1158 = vunpack.c.l.b16 %v601
  %v1159 = vunpack.c.h.b16 %v601
  %v1160 = vunpack.c.l.b16 %v602
  %v1161 = vunpack.c.h.b16 %v602
  %v1162 = vunpack.c.l.b16 %v603
  %v1163 = vunpack.c.h.b16 %v603
  %v1164 = vunpack.c.l.b16 %v604
  %v1165 = vunpack.c.h.b16 %v604
  %v1166 = vunpack.c.l.b16 %v605
  %v1167 = vunpack.c.h.b16 %v605
  %v1168 = vunpack.c.l.b16 %v606
  %v1169 = vunpack.c.h.b16 %v606
  %v1170 = vunpack.c.l.b16 %v607
  %v1171 = vunpack.c.h.b16 %v607
  %v1172 = vunpack.c.l.b16 %v608
  %v1173 = vunpack.c.h.b16 %v608
  %v1174 = vunpack.c.l.b16 %v609
  %v1175 = vunpack.c.h.b16 %v609
  %v1176 = vunpack.c.l.b16 %v610
  %v1177 = vunpack.c.h.b16 %v610
  %v1178 = vunpack.c.l.b16 %v611
  %v1179 = vunpack.c.h.b16 %v611
  %v1180 = vunpack.c.l.b16 %v612
  %v1181 = vunpack.c.h.b16 %v612
  %v1182 = vunpack.c.l.b16 %v613
  %v1183 = vunpack.c.h.b16 %v613
  %v1184 = vunpack.c.l.b16 %v614
  %v1185 = vunpack.c.h.b16 %v614
  %v1186 = vunpack.c.l.b16 %v615
  %v1187 = vunpack.c.h.b16 %v615
  %v1188 = vunpack.c.l.b16 %v616
  %v1189 = vunpack.c.h.b16 %v616
  %v1190 = vunpack.c.l.b16 %v617
  %v1191 = vunpack.c.h.b16 %v617
  %v1192 = vunpack.c.l.b16 %v618
  %v1193 = vunpack.c.h.b16 %v618
  %v1194 = vunpack.c.l.b16 %v619
  %v1195 = vunpack.c.h.b16 %v619
  %v1196 = vunpack.c.l.b16 %v620
  %v1197 = vunpack.c.h.b16 %v620
  %v1198 = vunpack.c.l.b16 %v621
  %v1199 = vunpack.c.h.b16 %v621
  %v1200 = vunpack.c.l.b16 %v622
  %v1201 = vunpack.c.h.b16 %v622
  %v1202 = vunpack.c.l.b16 %v623
  %v1203 = vunpack.c.h.b16 %v623
  %v1204 = vunpack.c.l.b16 %v624
  %v1205 = vunpack.c.h.b16 %v624
  %v1206 = vunpack.c.l.b16 %v625
  %v1207 = vunpack.c.h.b16 %v625
  %v1208 = vunpack.c.l.b16 %v626
  %v1209 = vunpack.c.h.b16 %v626
  %v1210 = vunpack.c.l.b16 %v627
  %v1211 = vunpack.c.h.b16 %v627
  %v1212 = vunpack.c.l.b16 %v628
  %v1213 = vunpack.c.h.b16 %v628
  %v1214 = vunpack.c.l.b16 %v629
  %v1215 = vunpack.c.h.b16 %v629
  %v1216 = vunpack.c.l.b16 %v630
  %v1217 = vunpack.c.h.b16 %v630
  %v1218 = vunpack.c.l.b16 %v631
  %v1219 = vunpack.c.h.b16 %v631
  %v1220 = vunpack.c.l.b16 %v632
  %v1221 = vunpack.c.h.b16 %v632
  %v1222 = vunpack.c.l.b16 %v633
  %v1223 = vunpack.c.h.b16 %v633
  %v1224 = vunpack.c.l.b16 %v634
  %v1225 = vunpack.c.h.b16 %v634
  %v1226 = vunpack.c.l.b16 %v635
  %v1227 = vunpack.c.h.b16 %v635
  %v1228 = vunpack.c.l.b16 %v636
  %v1229 = vunpack.c.h.b16 %v636
  %v1230 = vunpack.c.l.b16 %v637
  %v1231 = vunpack.c.h.b16 %v637
  %v1232 = vunpack.c.l.b16 %v638
  %v1233 = vunpack.c.h.b16 %v638
  %v1234 = vunpack.c.l.b16 %v639
  %v1235 = vunpack.c.h.b16 %v639
  %v1236 = vunpack.c.l.b16 %v640
  %v1237 = vunpack.c.h.b16 %v640
  %v1238 = vunpack.c.l.b16 %v641
  %v1239 = vunpack.c.h.b16 %v641
  %v1240 = vunpack.c.l.b16 %v642
  %v1241 = vunpack.c.h.b16 %v642
  %v1242 = vunpack.c.l.b16 %v643
  %v1243 = vunpack.c.h.b16 %v643
  %v1244 = vunpack.c.l.b16 %v644
  %v1245 = vunpack.c.h.b16 %v644
  %v1246 = vunpack.c.l.b16 %v645
  %v1247 = vunpack.c.h.b16 %v645
  %v1248 = vunpack.c.l.b16 %v646
  %v1249 = vunpack.c.h.b16 %v646
  %v1250 = vunpack.c.l.b16 %v647
  %v1251 = vunpack.c.h.b16 %v647
  %v1252 = vunpack.c.l.b16 %v648
  %v1253 = vunpack.c.h.b16 %v648
  %v1254 = vunpack.c.l.b16 %v649
  %v1255 = vunpack.c.h.b16 %v649
  %v1256 = vunpack.c.l.b16 %v650
  %v1257 = vunpack.c.h.b16 %v650
  %v1258 = vunpack.c.l.b16 %v651
  %v1259 = vunpack.c.h.b16 %v651
  %v1260 = vunpack.c.l.b16 %v652
  %v1261 = vunpack.c.h.b16 %v652
  %v1262 = vunpack.c.l.b16 %v653
  %v1263 = vunpack.c.h.b16 %v653
  %v1264 = vunpack.c.l.b16 %v654
  %v1265 = vunpack.c.h.b16 %v654
  %v1266 = vunpack.c.l.b16 %v655
  %v1267 = vunpack.c.h.b16 %v655
  %v1268 = vunpack.c.l.b16 %v656
  %v1269 = vunpack.c.h.b16 %v656
  %v1270 = vunpack.c.l.b16 %v657
  %v1271 = vunpack.c.h.b16 %v657
  %v1272 = vunpack.c.l.b16 %v658
  %v1273 = vunpack.c.h.b16 %v658
  %v1274 = vunpack.c.l.b16 %v659
  %v1275 = vunpack.c.h.b16 %v659
  %v1276 = vunpack.c.l.b16 %v660
  %v1277 = vunpack.c.h.b16 %v660
  %v1278 = vunpack.c.l.b16 %v661
  %v1279 = vunpack.c.h.b16 %v661
  %v1280 = vunpack.c.l.b16 %v662
  %v1281 = vunpack.c.h.b16 %v662
  %v1282 = vunpack.c.l.b16 %v663
  %v1283 = vunpack.c.h.b16 %v663
  %v1284 = vunpack.c.l.b16 %v664
  %v1285 = vunpack.c.h.b16 %v664
  %v1286 = vunpack.c.l.b16 %v665
  %v1287 = vunpack.c.h.b16 %v665
  %v1288 = vunpack.c.l.b16 %v666
  %v1289 = vunpack.c.h.b16 %v666
  %v1290 = vunpack.c.l.b16 %v667
  %v1291 = vunpack.c.h.b16 %v667
  %v1292 = vunpack.c.l.b16 %v668
  %v1293 = vunpack.c.h.b16 %v668
  %v1294 = vunpack.c.l.b16 %v669
  %v1295 = vunpack.c.h.b16 %v669
  %v1296 = vunpack.c.l.b16 %v670
  %v1297 = vunpack.c.h.b16 %v670
  %v1298 = vunpack.c.l.b16 %v671
  %v1299 = vunpack.c.h.b16 %v671
  %v1300 = vunpack.c.l.b16 %v672
  %v1301 = vunpack.c.h.b16 %v672
  %v1302 = vunpack.c.l.b16 %v673
  %v1303 = vunpack.c.h.b16 %v673
  %v1304 = vunpack.c.l.b16 %v674
  %v1305 = vunpack.c.h.b16 %v674
  %v1306 = vunpack.c.l.b16 %v675
  %v1307 = vunpack.c.h.b16 %v675
  %v1308 = vunpack.c.l.b16 %v676
  %v1309 = vunpack.c.h.b16 %v676
  %v1310 = vunpack.c.l.b16 %v677
  %v1311 = vunpack.c.h.b16 %v677
  %v1312 = vunpack.c.l.b16 %v678
  %v1313 = vunpack.c.h.b16 %v678
  %v1314 = vunpack.c.l.b16 %v679
  %v1315 = vunpack.c.h.b16 %v679
  %v1316 = vunpack.c.l.b16 %v680
  %v1317 = vunpack.c.h.b16 %v680
  %v1318 = vunpack.c.l.b16 %v681
  %v1319 = vunpack.c.h.b16 %v681
  %v1320 = vunpack.c.l.b16 %v682
  %v1321 = vunpack.c.h.b16 %v682
  %v1322 = vunpack.c.l.b16 %v683
  %v1323 = vunpack.c.h.b16 %v683
  %v1324 = vunpack.c.l.b16 %v684
  %v1325 = vunpack.c.h.b16 %v684
  %v1326 = vunpack.c.l.b16 %v685
  %v1327 = vunpack.c.h.b16 %v685
  %v1328 = vunpack.c.l.b16 %v686
  %v1329 = vunpack.c.h.b16 %v686
  %v1330 = vunpack.c.l.b16 %v687
  %v1331 = vunpack.c.h.b16 %v687
  %v1332 = vunpack.c.l.b16 %v688
  %v1333 = vunpack.c.h.b16 %v688
  %v1334 = vunpack.c.l.b16 %v689
  %v1335 = vunpack.c.h.b16 %v689
  %v1336 = vunpack.c.l.b16 %v690
  %v1337 = vunpack.c.h.b16 %v690
  %v1338 = vunpack.c.l.b16 %v691
  %v1339 = vunpack.c.h.b16 %v691
  %v1340 = vunpack.c.l.b16 %v692
  %v1341 = vunpack.c.h.b16 %v692
  %v1342 = vunpack.c.l.b16 %v693
  %v1343 = vunpack.c.h.b16 %v693
  %v1344 = vunpack.c.l.b16 %v694
  %v1345 = vunpack.c.h.b16 %v694
  %v1346 = vunpack.c.l.b16 %v695
  %v1347 = vunpack.c.h.b16 %v695
  %v1348 = vunpack.c.l.b16 %v696
  %v1349 = vunpack.c.h.b16 %v696
  %v1350 = vunpack.c.l.b16 %v697
  %v1351 = vunpack.c.h.b16 %v697
  %v1352 = vunpack.c.l.b16 %v698
  %v1353 = vunpack.c.h.b16 %v698
  %v1354 = vunpack.c.l.b16 %v699
  %v1355 = vunpack.c.h.b16 %v699
  %v1356 = vunpack.c.l.b16 %v700
  %v1357 = vunpack.c.h.b16 %v700
  %v1358 = vunpack.c.l.b16 %v701
  %v1359 = vunpack.c.h.b16 %v701
  %v1360 = vunpack.c.l.b16 %v702
  %v1361 = vunpack.c.h.b16 %v702
  %v1362 = vunpack.c.l.b16 %v703
  %v1363 = vunpack.c.h.b16 %v703
  %v1364 = vunpack.c.l.b16 %v704
  %v1365 = vunpack.c.h.b16 %v704
  %v1366 = vunpack.c.l.b16 %v705
  %v1367 = vunpack.c.h.b16 %v705
  %v1368 = vunpack.c.l.b16 %v706
  %v1369 = vunpack.c.h.b16 %v706
  %v1370 = vunpack.c.l.b16 %v707
  %v1371 = vunpack.c.h.b16 %v707
  %v1372 = vunpack.c.l.b16 %v708
  %v1373 = vunpack.c.h.b16 %v708
  %v1374 = vunpack.c.l.b16 %v709
  %v1375 = vunpack.c.h.b16 %v709
  %v1376 = vunpack.c.l.b16 %v710
  %v1377 = vunpack.c.h.b16 %v710
  %v1378 = vunpack.c.l.b16 %v711
  %v1379 = vunpack.c.h.b16 %v711
  %v1380 = vunpack.c.l.b16 %v712
  %v1381 = vunpack.c.h.b16 %v712
  %v1382 = vunpack.c.l.b16 %v713
  %v1383 = vunpack.c.h.b16 %v713
  %v1384 = vunpack.c.l.b16 %v714
  %v1385 = vunpack.c.h.b16 %v714
  %v1386 = vunpack.c.l.b16 %v715
  %v1387 = vunpack.c.h.b16 %v715
  %v1388 = vunpack.c.l.b16 %v716
  %v1389 = vunpack.c.h.b16 %v716
  %v1390 = vunpack.c.l.b16 %v717
  %v1391 = vunpack.c.h.b16 %v717
  %v1392 = vunpack.c.l.b16 %v718
  %v1393 = vunpack.c.h.b16 %v718
  %v1394 = vunpack.c.l.b16 %v719
  %v1395 = vunpack.c.h.b16 %v719
  %v1396 = vunpack.c.l.b16 %v720
  %v1397 = vunpack.c.h.b16 %v720
  %v1398 = vunpack.c.l.b16 %v721
  %v1399 = vunpack.c.h.b16 %v721
  %v1400 = vunpack.c.l.b16 %v722
  %v1401 = vunpack.c.h.b16 %v722
  %v1402 = vunpack.c.l.b16 %v723
  %v1403 = vunpack.c.h.b16 %v723
  %v1404 = vunpack.c.l.b16 %v724
  %v1405 = vunpack.c.h.b16 %v724
  %v1406 = vunpack.c.l.b16 %v725
  %v1407 = vunpack.c.h.b16 %v725
  %v1408 = vunpack.c.l.b16 %v726
  %v1409 = vunpack.c.h.b16 %v726
  %v1410 = vunpack.c.l.b16 %v727
  %v1411 = vunpack.c.h.b16 %v727
  %v1412 = vunpack.c.l.b16 %v728
  %v1413 = vunpack.c.h.b16 %v728
  %v1414 = vunpack.c.l.b16 %v729
  %v1415 = vunpack.c.h.b16 %v729
  %v1416 = vunpack.c.l.b16 %v730
  %v1417 = vunpack.c.h.b16 %v730
  %v1418 = vunpack.c.l.b16 %v731
  %v1419 = vunpack.c.h.b16 %v731
  %v1420 = vunpack.c.l.b16 %v732
  %v1421 = vunpack.c.h.b16 %v732
  %v1422 = vunpack.c.l.b16 %v733
  %v1423 = vunpack.c.h.b16 %v733
  %v1424 = vunpack.c.l.b16 %v734
  %v1425 = vunpack.c.h.b16 %v734
  %v1426 = vunpack.c.l.b16 %v735
  %v1427 = vunpack.c.h.b16 %v735
  %v1428 = vunpack.c.l.b16 %v736
  %v1429 = vunpack.c.h.b16 %v736
  %v1430 = vunpack.c.l.b16 %v737
  %v1431 = vunpack.c.h.b16 %v737
  %v1432 = vunpack.c.l.b16 %v738
  %v1433 = vunpack.c.h.b16 %v738
  %v1434 = vunpack.c.l.b16 %v739
  %v1435 = vunpack.c.h.b16 %v739
  %v1436 = vunpack.c.l.b16 %v740
  %v1437 = vunpack.c.h.b16 %v740
  %v1438 = vunpack.c.l.b16 %v741
  %v1439 = vunpack.c.h.b16 %v741
  %v1440 = vunpack.c.l.b16 %v742
  %v1441 = vunpack.c.h.b16 %v742
  %v1442 = vunpack.c.l.b16 %v743
  %v1443 = vunpack.c.h.b16 %v743
  %v1444 = vunpack.c.l.b16 %v744
  %v1445 = vunpack.c.h.b16 %v744
  %v1446 = vunpack.c.l.b16 %v745
  %v1447 = vunpack.c.h.b16 %v745
  %v1448 = vunpack.c.l.b16 %v746
  %v1449 = vunpack.c.h.b16 %v746
  %v1450 = vunpack.c.l.b16 %v747
  %v1451 = vunpack.c.h.b16 %v747
  %v1452 = vunpack.c.l.b16 %v748
  %v1453 = vunpack.c.h.b16 %v748
  %v1454 = vunpack.c.l.b16 %v749
  %v1455 = vunpack.c.h.b16 %v749
  %v1456 = vunpack.c.l.b16 %v750
  %v1457 = vunpack.c.h.b16 %v750
  %v1458 = vunpack.c.l.b16 %v751
  %v1459 = vunpack.c.h.b16 %v751
  %v1460 = vunpack.c.l.b16 %v752
  %v1461 = vunpack.c.h.b16 %v752
  %v1462 = vunpack.c.l.b16 %v753
  %v1463 = vunpack.c.h.b16 %v753
  %v1464 = vunpack.c.l.b16 %v754
  %v1465 = vunpack.c.h.b16 %v754
  %v1466 = vunpack.c.l.b16 %v755
  %v1467 = vunpack.c.h.b16 %v755
  %v1468 = vunpack.c.l.b16 %v756
  %v1469 = vunpack.c.h.b16 %v756
  %v1470 = vunpack.c.l.b16 %v757
  %v1471 = vunpack.c.h.b16 %v757
  %v1472 = vunpack.c.l.b16 %v758
  %v1473 = vunpack.c.h.b16 %v758
  %v1474 = vunpack.c.l.b16 %v759
  %v1475 = vunpack.c.h.b16 %v759
  %v1476 = vunpack.c.l.b16 %v760
  %v1477 = vunpack.c.h.b16 %v760
  %v1478 = vunpack.c.l.b16 %v761
  %v1479 = vunpack.c.h.b16 %v761
  %v1480 = vunpack.c.l.b16 %v762
  %v1481 = vunpack.c.h.b16 %v762
  %v1482 = vunpack.c.l.b16 %v763
  %v1483 = vunpack.c.h.b16 %v763
  %v1484 = vunpack.c.l.b16 %v764
  %v1485 = vunpack.c.h.b16 %v764
  %v1486 = vunpack.c.l.b16 %v765
  %v1487 = vunpack.c.h.b16 %v765
  %v1488 = vunpack.c.l.b16 %v766
  %v1489 = vunpack.c.h.b16 %v766
  %v1490 = vunpack.c.l.b16 %v767
  %v1491 = vunpack.c.h.b16 %v767
  %v1492 = vunpack.c.l.b16 %v768
  %v1493 = vunpack.c.h.b16 %v768
  %v1494 = vunpack.c.l.b16 %v769
  %v1495 = vunpack.c.h.b16 %v769
  %v1496 = vunpack.c.l.b16 %v770
  %v1497 = vunpack.c.h.b16 %v770
  %v1498 = vunpack.c.l.b16 %v771
  %v1499 = vunpack.c.h.b16 %v771
  %v1500 = vunpack.c.l.b16 %v772
  %v1501 = vunpack.c.h.b16 %v772
  %v1502 = vunpack.c.l.b16 %v773
  %v1503 = vunpack.c.h.b16 %v773
  %v1504 = vunpack.c.l.b16 %v774
  %v1505 = vunpack.c.h.b16 %v774
  %v1506 = vunpack.c.l.b16 %v775
  %v1507 = vunpack.c.h.b16 %v775
  %v1508 = vunpack.c.l.b16 %v776
  %v1509 = vunpack.c.h.b16 %v776
  %v1510 = vunpack.c.l.b16 %v777
  %v1511 = vunpack.c.h.b16 %v777
  %v1512 = vunpack.c.l.b16 %v778
  %v1513 = vunpack.c.h.b16 %v778
  %v1514 = vunpack.c.l.b16 %v779
  %v1515 = vunpack.c.h.b16 %v779
  %v1516 = vunpack.c.l.b16 %v780
  %v1517 = vunpack.c.h.b16 %v780
  %v1518 = vunpack.c.l.b16 %v781
  %v1519 = vunpack.c.h.b16 %v781
  %v1520 = vunpack.c.l.b16 %v782
  %v1521 = vunpack.c.h.b16 %v782
  %v1522 = vunpack.c.l.b16 %v783
  %v1523 = vunpack.c.h.b16 %v783
  %v1524 = vunpack.c.l.b16 %v784
  %v1525 = vunpack.c.h.b16 %v784
  %v1526 = vunpack.c.l.b16 %v785
  %v1527 = vunpack.c.h.b16 %v785
  %v1528 = vunpack.c.l.b16 %v786
  %v1529 = vunpack.c.h.b16 %v786
  %v1530 = vunpack.c.l.b16 %v787
  %v1531 = vunpack.c.h.b16 %v787
  %v1532 = vunpack.c.l.b16 %v788
  %v1533 = vunpack.c.h.b16 %v788
  %v1534 = vunpack.c.l.b16 %v789
  %v1535 = vunpack.c.h.b16 %v789
  %v1536 = vunpack.c.l.b16 %v790
  %v1537 = vunpack.c.h.b16 %v790
  %v1538 = vunpack.c.l.b16 %v791
  %v1539 = vunpack.c.h.b16 %v791
  %v1540 = vunpack.c.l.b16 %v792
  %v1541 = vunpack.c.h.b16 %v792
  %v1542 = vunpack.c.l.b16 %v793
  %v1543 = vunpack.c.h.b16 %v793
  %v1544 = vunpack.c.l.b16 %v794
  %v1545 = vunpack.c.h.b16 %v794
  %v1546 = vunpack.c.l.b16 %v795
  %v1547 = vunpack.c.h.b16 %v795
  %v1548 = vunpack.c.l.b16 %v796
  %v1549 = vunpack.c.h.b16 %v796
  %v1550 = vunpack.c.l.b16 %v797
  %v1551 = vunpack.c.h.b16 %v797
  %v1552 = vunpack.c.l.b16 %v798
  %v1553 = vunpack.c.h.b16 %v798
  %v1554 = vunpack.c.l.b16 %v799
  %v1555 = vunpack.c.h.b16 %v799
  %v1556 = vunpack.c.l.b16 %v800
  %v1557 = vunpack.c.h.b16 %v800
  %v1558 = vunpack.c.l.b16 %v801
  %v1559 = vunpack.c.h.b16 %v801
  %v1560 = vunpack.c.l.b16 %v802
  %v1561 = vunpack.c.h.b16 %v802
  %v1562 = vunpack.c.l.b16 %v803
  %v1563 = vunpack.c.h.b16 %v803
  %v1564 = vunpack.c.l.b16 %v804
  %v1565 = vunpack.c.h.b16 %v804
  %v1566 = vunpack.c.l.b16 %v805
  %v1567 = vunpack.c.h.b16 %v805
  %v1568 = vunpack.c.l.b16 %v806
  %v1569 = vunpack.c.h.b16 %v806
  %v1570 = vunpack.c.l.b16 %v807
  %v1571 = vunpack.c.h.b16 %v807
  %v1572 = vunpack.c.l.b16 %v808
  %v1573 = vunpack.c.h.b16 %v808
  %v1574 = vunpack.c.l.b16 %v809
  %v1575 = vunpack.c.h.b16 %v809
  %v1576 = vunpack.c.l.b16 %v810
  %v1577 = vunpack.c.h.b16 %v810
  %v1578 = vunpack.c.l.b16 %v811
  %v1579 = vunpack.c.h.b16 %v811
  %v1580 = vunpack.c.l.b16 %v812
  %v1581 = vunpack.c.h.b16 %v812
  %v1582 = vunpack.c.l.b16 %v813
  %v1583 = vunpack.c.h.b16 %v813
  %v1584 = vunpack.c.l.b16 %v814
  %v1585 = vunpack.c.h.b16 %v814
  %v1586 = vunpack.c.l.b16 %v815
  %v1587 = vunpack.c.h.b16 %v815
  %v1588 = vunpack.c.l.b16 %v816
  %v1589 = vunpack.c.h.b16 %v816
  %v1590 = vunpack.c.l.b16 %v817
  %v1591 = vunpack.c.h.b16 %v817
  %v1592 = vunpack.c.l.b16 %v818
  %v1593 = vunpack.c.h.b16 %v818
  %v1594 = vunpack.c.l.b16 %v819
  %v1595 = vunpack.c.h.b16 %v819
  %v1596 = vunpack.c.l.b16 %v820
  %v1597 = vunpack.c.h.b16 %v820
  %v1598 = vunpack.c.l.b16 %v821
  %v1599 = vunpack.c.h.b16 %v821
  %v1600 = vunpack.c.l.b16 %v822
  %v1601 = vunpack.c.h.b16 %v822
  %v1602 = vunpack.c.l.b16 %v823
  %v1603 = vunpack.c.h.b16 %v823
  %v1604 = vunpack.c.l.b16 %v824
  %v1605 = vunpack.c.h.b16 %v824
  %v1606 = vunpack.c.l.b16 %v825
  %v1607 = vunpack.c.h.b16 %v825
  %v1608 = vunpack.c.l.b16 %v826
  %v1609 = vunpack.c.h.b16 %v826
  %v1610 = vunpack.c.l.b16 %v827
  %v1611 = vunpack.c.h.b16 %v827
  %v1612 = vunpack.c.l.b16 %v828
  %v1613 = vunpack.c.h.b16 %v828
  %v1614 = vunpack.c.l.b16 %v829
  %v1615 = vunpack.c.h.b16 %v829
  %v1616 = vunpack.c.l.b16 %v830
  %v1617 = vunpack.c.h.b16 %v830
  %v1618 = vunpack.c.l.b16 %v831
  %v1619 = vunpack.c.h.b16 %v831
  %v1620 = vunpack.c.l.b16 %v832
  %v1621 = vunpack.c.h.b16 %v832
  %v1622 = vunpack.c.l.b16 %v833
  %v1623 = vunpack.c.h.b16 %v833
  %v1624 = vunpack.c.l.b16 %v834
  %v1625 = vunpack.c.h.b16 %v834
  %v1626 = vunpack.c.l.b16 %v835
  %v1627 = vunpack.c.h.b16 %v835
  %v1628 = vunpack.c.l.b16 %v836
  %v1629 = vunpack.c.h.b16 %v836
  %v1630 = vunpack.c.l.b16 %v837
  %v1631 = vunpack.c.h.b16 %v837
  %v1632 = vunpack.c.l.b16 %v838
  %v1633 = vunpack.c.h.b16 %v838
  %v1634 = vunpack.c.l.b16 %v839
  %v1635 = vunpack.c.h.b16 %v839
  %v1636 = vunpack.c.l.b16 %v840
  %v1637 = vunpack.c.h.b16 %v840
  %v1638 = vunpack.c.l.b16 %v841
  %v1639 = vunpack.c.h.b16 %v841
  %v1640 = vunpack.c.l.b16 %v842
  %v1641 = vunpack.c.h.b16 %v842
  %v1642 = vunpack.c.l.b16 %v843
  %v1643 = vunpack.c.h.b16 %v843
  %v1644 = vunpack.c.l.b16 %v844
  %v1645 = vunpack.c.h.b16 %v844
  %v1646 = vunpack.c.l.b16 %v845
  %v1647 = vunpack.c.h.b16 %v845
  %v1648 = vunpack.c.l.b16 %v846
  %v1649 = vunpack.c.h.b16 %v846
  %v1650 = vunpack.c.l.b16 %v847
  %v1651 = vunpack.c.h.b16 %v847
  %v1652 = vunpack.c.l.b16 %v848
  %v1653 = vunpack.c.h.b16 %v848
  %v1654 = vunpack.c.l.b16 %v849
  %v1655 = vunpack.c.h.b16 %v849
  %v1656 = vunpack.c.l.b16 %v850
  %v1657 = vunpack.c.h.b16 %v850
  %v1658 = vunpack.c.l.b16 %v851
  %v1659 = vunpack.c.h.b16 %v851
  %v1660 = vunpack.c.l.b16 %v852
  %v1661 = vunpack.c.h.b16 %v852
  %v1662 = vunpack.c.l.b16 %v853
  %v1663 = vunpack.c.h.b16 %v853
  %v1664 = vpack.c.b16 %v1160, %v1152
  %v1665 = vpack.c.b16 %v1161, %v1153
  %v1666 = vpack.c.b16 %v1162, %v1154
  %v1667 = vpack.c.b16 %v1163, %v1155
  %v1668 = vpack.c.b16 %v1164, %v1156
  %v1669 = vpack.c.b16 %v1165, %v1157
  %v1670 = vpack.c.b16 %v1166, %v1158
  %v1671 = vpack.c.b16 %v1167, %v1159
  %v1672 = vpack.c.b16 %v1176, %v1168
  %v1673 = vpack.c.b16 %v1177, %v1169
  %v1674 = vpack.c.b16 %v1178, %v1170
  %v1675 = vpack.c.b16 %v1179, %v1171
  %v1676 = vpack.c.b16 %v1180, %v1172
  %v1677 = vpack.c.b16 %v1181, %v1173
  %v1678 = vpack.c.b16 %v1182, %v1174
  %v1679 = vpack.c.b16 %v1183, %v1175
  %v1680 = vpack.c.b16 %v1192, %v1184
  %v1681 = vpack.c.b16 %v1193, %v1185
  %v1682 = vpack.c.b16 %v1194, %v1186
  %v1683 = vpack.c.b16 %v1195, %v1187
  %v1684 = vpack.c.b16 %v1196, %v1188
  %v1685 = vpack.c.b16 %v1197, %v1189
  %v1686 = vpack.c.b16 %v1198, %v1190
  %v1687 = vpack.c.b16 %v1199, %v1191
  %v1688 = vpack.c.b16 %v1208, %v1200
  %v1689 = vpack.c.b16 %v1209, %v1201
  %v1690 = vpack.c.b16 %v1210, %v1202
  %v1691 = vpack.c.b16 %v1211, %v1203
  %v1692 = vpack.c.b16 %v1212, %v1204
  %v1693 = vpack.c.b16 %v1213, %v1205
  %v1694 = vpack.c.b16 %v1214, %v1206
  %v1695 = vpack.c.b16 %v1215, %v1207
  %v1696 = vpack.c.b16 %v1224, %v1216
  %v1697 = vpack.c.b16 %v1225, %v1217
  %v1698 = vpack.c.b16 %v1226, %v1218
  %v1699 = vpack.c.b16 %v1227, %v1219
  %v1700 = vpack.c.b16 %v1228, %v1220
  %v1701 = vpack.c.b16 %v1229, %v1221
  %v1702 = vpack.c.b16 %v1230, %v1222
  %v1703 = vpack.c.b16 %v1231, %v1223
  %v1704 = vpack.c.b16 %v1240, %v1232
  %v1705 = vpack.c.b16 %v1241, %v1233
  %v1706 = vpack.c.b16 %v1242, %v1234
  %v1707 = vpack.c.b16 %v1243, %v1235
  %v1708 = vpack.c.b16 %v1244, %v1236
  %v1709 = vpack.c.b16 %v1245, %v1237
  %v1710 = vpack.c.b16 %v1246, %v1238
  %v1711 = vpack.c.b16 %v1247, %v1239
  %v1712 = vpack.c.b16 %v1256, %v1248
  %v1713 = vpack.c.b16 %v1257, %v1249
  %v1714 = vpack.c.b16 %v1258, %v1250
  %v1715 = vpack.c.b16 %v1259, %v1251
  %v1716 = vpack.c.b16 %v1260, %v1252
  %v1717 = vpack.c.b16 %v1261, %v1253
  %v1718 = vpack.c.b16 %v1262, %v1254
  %v1719 = vpack.c.b16 %v1263, %v1255
  %v1720 = vpack.c.b16 %v1272, %v1264
  %v1721 = vpack.c.b16 %v1273, %v1265
  %v1722 = vpack.c.b16 %v1274, %v1266
  %v1723 = vpack.c.b16 %v1275, %v1267
  %v1724 = vpack.c.b16 %v1276, %v1268
  %v1725 = vpack.c.b16 %v1277, %v1269
  %v1726 = vpack.c.b16 %v1278, %v1270
  %v1727 = vpack.c.b16 %v1279, %v1271
  %v1728 = vpack.c.b16 %v1288, %v1280
  %v1729 = vpack.c.b16 %v1289, %v1281
  %v1730 = vpack.c.b16 %v1290, %v1282
  %v1731 = vpack.c.b16 %v1291, %v1283
  %v1732 = vpack.c.b16 %v1292, %v1284
  %v1733 = vpack.c.b16 %v1293, %v1285
  %v1734 = vpack.c.b16 %v1294, %v1286
  %v1735 = vpack.c.b16 %v1295, %v1287
  %v1736 = vpack.c.b16 %v1304, %v1296
  %v1737 = vpack.c.b16 %v1305, %v1297
  %v1738 = vpack.c.b16 %v1306, %v1298
  %v1739 = vpack.c.b16 %v1307, %v1299
  %v1740 = vpack.c.b16 %v1308, %v1300
  %v1741 = vpack.c.b16 %v1309, %v1301
  %v1742 = vpack.c.b16 %v1310, %v1302
  %v1743 = vpack.c.b16 %v1311, %v1303
  %v1744 = vpack.c.b16 %v1320, %v1312
  %v1745 = vpack.c.b16 %v1321, %v1313
  %v1746 = vpack.c.b16 %v1322, %v1314
  %v1747 = vpack.c.b16 %v1323, %v1315
  %v1748 = vpack.c.b16 %v1324, %v1316
  %v1749 = vpack.c.b16 %v1325, %v1317
  %v1750 = vpack.c.b16 %v1326, %v1318
  %v1751 = vpack.c.b16 %v1327, %v1319
  %v1752 = vpack.c.b16 %v1336, %v1328
  %v1753 = vpack.c.b16 %v1337, %v1329
  %v1754 = vpack.c.b16 %v1338, %v1330
  %v1755 = vpack.c.b16 %v1339, %v1331
  %v1756 = vpack.c.b16 %v1340, %v1332
  %v1757 = vpack.c.b16 %v1341, %v1333
  %v1758 = vpack.c.b16 %v1342, %v1334
  %v1759 = vpack.c.b16 %v1343, %v1335
  %v1760 = vpack.c.b16 %v1352, %v1344
  %v1761 = vpack.c.b16 %v1353, %v1345
  %v1762 = vpack.c.b16 %v1354, %v1346
  %v1763 = vpack.c.b16 %v1355, %v1347
  %v1764 = vpack.c.b16 %v1356, %v1348
  %v1765 = vpack.c.b16 %v1357, %v1349
  %v1766 = vpack.c.b16 %v1358, %v1350
  %v1767 = vpack.c.b16 %v1359, %v1351
  %v1768 = vpack.c.b16 %v1368, %v1360
  %v1769 = vpack.c.b16 %v1369, %v1361
  %v1770 = vpack.c.b16 %v1370, %v1362
  %v1771 = vpack.c.b16 %v1371, %v1363
  %v1772 = vpack.c.b16 %v1372, %v1364
  %v1773 = vpack.c.b16 %v1373, %v1365
  %v1774 = vpack.c.b16 %v1374, %v1366
  %v1775 = vpack.c.b16 %v1375, %v1367
  %v1776 = vpack.c.b16 %v1384, %v1376
  %v1777 = vpack.c.b16 %v1385, %v1377
  %v1778 = vpack.c.b16 %v1386, %v1378
  %v1779 = vpack.c.b16 %v1387, %v1379
  %v1780 = vpack.c.b16 %v1388, %v1380
  %v1781 = vpack.c.b16 %v1389, %v1381
  %v1782 = vpack.c.b16 %v1390, %v1382
  %v1783 = vpack.c.b16 %v1391, %v1383
  %v1784 = vpack.c.b16 %v1400, %v1392
  %v1785 = vpack.c.b16 %v1401, %v1393
  %v1786 = vpack.c.b16 %v1402, %v1394
  %v1787 = vpack.c.b16 %v1403, %v1395
  %v1788 = vpack.c.b16 %v1404, %v1396
  %v1789 = vpack.c.b16 %v1405, %v1397
  %v1790 = vpack.c.b16 %v1406, %v1398
  %v1791 = vpack.c.b16 %v1407, %v1399
  %v1792 = vpack.c.b16 %v1416, %v1408
  %v1793 = vpack.c.b16 %v1417, %v1409
  %v1794 = vpack.c.b16 %v1418, %v1410
  %v1795 = vpack.c.b16 %v1419, %v1411
  %v1796 = vpack.c.b16 %v1420, %v1412
  %v1797 = vpack.c.b16 %v1421, %v1413
  %v1798 = vpack.c.b16 %v1422, %v1414
  %v1799 = vpack.c.b16 %v1423, %v1415
  %v1800 = vpack.c.b16 %v1432, %v1424
  %v1801 = vpack.c.b16 %v1433, %v1425
  %v1802 = vpack.c.b16 %v1434, %v1426
  %v1803 = vpack.c.b16 %v1435, %v1427
  %v1804 = vpack.c.b16 %v1436, %v1428
  %v1805 = vpack.c.b16 %v1437, %v1429
  %v1806 = vpack.c.b16 %v1438, %v1430
  %v1807 = vpack.c.b16 %v1439, %v1431
  %v1808 = vpack.c.b16 %v1448, %v1440
  %v1809 = vpack.c.b16 %v1449, %v1441
  %v1810 = vpack.c.b16 %v1450, %v1442
  %v1811 = vpack.c.b16 %v1451, %v1443
  %v1812 = vpack.c.b16 %v1452, %v1444
  %v1813 = vpack.c.b16 %v1453, %v1445
  %v1814 = vpack.c.b16 %v1454, %v1446
  %v1815 = vpack.c.b16 %v1455, %v1447
  %v1816 = vpack.c.b16 %v1464, %v1456
  %v1817 = vpack.c.b16 %v1465, %v1457
  %v1818 = vpack.c.b16 %v1466, %v1458
  %v1819 = vpack.c.b16 %v1467, %v1459
  %v1820 = vpack.c.b16 %v1468, %v1460
  %v1821 = vpack.c.b16 %v1469, %v1461
  %v1822 = vpack.c.b16 %v1470, %v1462
  %v1823 = vpack.c.b16 %v1471, %v1463
  %v1824 = vpack.c.b16 %v1480, %v1472
  %v1825 = vpack.c.b16 %v1481, %v1473
  %v1826 = vpack.c.b16 %v1482, %v1474
  %v1827 = vpack.c.b16 %v1483, %v1475
  %v1828 = vpack.c.b16 %v1484, %v1476
  %v1829 = vpack.c.b16 %v1485, %v1477
  %v1830 = vpack.c.b16 %v1486, %v1478
  %v1831 = vpack.c.b16 %v1487, %v1479
  %v1832 = vpack.c.b16 %v1496, %v1488
  %v1833 = vpack.c.b16 %v1497, %v1489
  %v1834 = vpack.c.b16 %v1498, %v1490
  %v1835 = vpack.c.b16 %v1499, %v1491
  %v1836 = vpack.c.b16 %v1500, %v1492
  %v1837 = vpack.c.b16 %v1501, %v1493
  %v1838 = vpack.c.b16 %v1502, %v1494
  %v1839 = vpack.c.b16 %v1503, %v1495
  %v1840 = vpack.c.b16 %v1512, %v1504
  %v1841 = vpack.c.b16 %v1513, %v1505
  %v1842 = vpack.c.b16 %v1514, %v1506
  %v1843 = vpack.c.b16 %v1515, %v1507
  %v1844 = vpack.c.b16 %v1516, %v1508
  %v1845 = vpack.c.b16 %v1517, %v1509
  %v1846 = vpack.c.b16 %v1518, %v1510
  %v1847 = vpack.c.b16 %v1519, %v1511
  %v1848 = vpack.c.b16 %v1528, %v1520
  %v1849 = vpack.c.b16 %v1529, %v1521
  %v1850 = vpack.c.b16 %v1530, %v1522
  %v1851 = vpack.c.b16 %v1531, %v1523
  %v1852 = vpack.c.b16 %v1532, %v1524
  %v1853 = vpack.c.b16 %v1533, %v1525
  %v1854 = vpack.c.b16 %v1534, %v1526
  %v1855 = vpack.c.b16 %v1535, %v1527
  %v1856 = vpack.c.b16 %v1544, %v1536
  %v1857 = vpack.c.b16 %v1545, %v1537
  %v1858 = vpack.c.b16 %v1546, %v1538
  %v1859 = vpack.c.b16 %v1547, %v1539
  %v1860 = vpack.c.b16 %v1548, %v1540
  %v1861 = vpack.c.b16 %v1549, %v1541
  %v1862 = vpack.c.b16 %v1550, %v1542
  %v1863 = vpack.c.b16 %v1551, %v1543
  %v1864 = vpack.c.b16 %v1560, %v1552
  %v1865 = vpack.c.b16 %v1561, %v1553
  %v1866 = vpack.c.b16 %v1562, %v1554
  %v1867 = vpack.c.b16 %v1563, %v1555
  %v1868 = vpack.c.b16 %v1564, %v1556
  %v1869 = vpack.c.b16 %v1565, %v1557
  %v1870 = vpack.c.b16 %v1566, %v1558
  %v1871 = vpack.c.b16 %v1567, %v1559
  %v1872 = vpack.c.b16 %v1576, %v1568
  %v1873 = vpack.c.b16 %v1577, %v1569
  %v1874 = vpack.c.b16 %v1578, %v1570
  %v1875 = vpack.c.b16 %v1579, %v1571
  %v1876 = vpack.c.b16 %v1580, %v1572
  %v1877 = vpack.c.b16 %v1581, %v1573
  %v1878 = vpack.c.b16 %v1582, %v1574
  %v1879 = vpack.c.b16 %v1583, %v1575
  %v1880 = vpack.c.b16 %v1592, %v1584
  %v1881 = vpack.c.b16 %v1593, %v1585
  %v1882 = vpack.c.b16 %v1594, %v1586
  %v1883 = vpack.c.b16 %v1595, %v1587
  %v1884 = vpack.c.b16 %v1596, %v1588
  %v1885 = vpack.c.b16 %v1597, %v1589
  %v1886 = vpack.c.b16 %v1598, %v1590
  %v1887 = vpack.c.b16 %v1599, %v1591
  %v1888 = vpack.c.b16 %v1608, %v1600
  %v1889 = vpack.c.b16 %v1609, %v1601
  %v1890 = vpack.c.b16 %v1610, %v1602
  %v1891 = vpack.c.b16 %v1611, %v1603
  %v1892 = vpack.c.b16 %v1612, %v1604
  %v1893 = vpack.c.b16 %v1613, %v1605
  %v1894 = vpack.c.b16 %v1614, %v1606
  %v1895 = vpack.c.b16 %v1615, %v1607
  %v1896 = vpack.c.b16 %v1624, %v1616
  %v1897 = vpack.c.b16 %v1625, %v1617
  %v1898 = vpack.c.b16 %v1626, %v1618
  %v1899 = vpack.c.b16 %v1627, %v1619
  %v1900 = vpack.c.b16 %v1628, %v1620
  %v1901 = vpack.c.b16 %v1629, %v1621
  %v1902 = vpack.c.b16 %v1630, %v1622
  %v1903 = vpack.c.b16 %v1631, %v1623
  %v1904 = vpack.c.b16 %v1640, %v1632
  %v1905 = vpack.c.b16 %v1641, %v1633
  %v1906 = vpack.c.b16 %v1642, %v1634
  %v1907 = vpack.c.b16 %v1643, %v1635
  %v1908 = vpack.c.b16 %v1644, %v1636
  %v1909 = vpack.c.b16 %v1645, %v1637
  %v1910 = vpack.c.b16 %v1646, %v1638
  %v1911 = vpack.c.b16 %v1647, %v1639
  %v1912 = vpack.c.b16 %v1656, %v1648
  %v1913 = vpack.c.b16 %v1657, %v1649
  %v1914 = vpack.c.b16 %v1658, %v1650
  %v1915 = vpack.c.b16 %v1659, %v1651
  %v1916 = vpack.c.b16 %v1660, %v1652
  %v1917 = vpack.c.b16 %v1661, %v1653
  %v1918 = vpack.c.b16 %v1662, %v1654
  %v1919 = vpack.c.b16 %v1663, %v1655
  %2176 = vmatprep.subr.bf16.mxu0 %v1721
  %2177 = vmatpush1.bf16.msra.mxu0 %v1720
  %2178 = vmatprep.subr.bf16.mxu0 %v1713
  %2179 = vmatpush1.bf16.msra.mxu0 %v1712
  %2180 = vmatprep.subr.bf16.mxu0 %v1705
  %2181 = vmatpush1.bf16.msra.mxu0 %v1704
  %2182 = vmatprep.subr.bf16.mxu0 %v1697
  %2183 = vmatpush1.bf16.msra.mxu0 %v1696
  %2184 = vmatprep.subr.bf16.mxu0 %v1689
  %2185 = vmatpush1.bf16.msra.mxu0 %v1688
  %2186 = vmatprep.subr.bf16.mxu0 %v1681
  %2187 = vmatpush1.bf16.msra.mxu0 %v1680
  %2188 = vmatprep.subr.bf16.mxu0 %v1673
  %2189 = vmatpush1.bf16.msra.mxu0 %v1672
  %2190 = vmatprep.subr.bf16.mxu0 %v1665
  %2191 = vmatpush1.bf16.msra.mxu0 %v1664
  %2192 = vmatprep.subr.bf16.mxu0 %v1785
  %2193 = vmatpush2.bf16.msra.mxu0 %v1784
  %2194 = vmatprep.subr.bf16.mxu0 %v1777
  %2195 = vmatpush2.bf16.msra.mxu0 %v1776
  %2196 = vmatprep.subr.bf16.mxu0 %v1769
  %2197 = vmatpush2.bf16.msra.mxu0 %v1768
  %2198 = vmatprep.subr.bf16.mxu0 %v1761
  %2199 = vmatpush2.bf16.msra.mxu0 %v1760
  %2200 = vmatprep.subr.bf16.mxu0 %v1753
  %2201 = vmatpush2.bf16.msra.mxu0 %v1752
  %2202 = vmatprep.subr.bf16.mxu0 %v1745
  %2203 = vmatpush2.bf16.msra.mxu0 %v1744
  %2204 = vmatprep.subr.bf16.mxu0 %v1737
  %2205 = vmatpush2.bf16.msra.mxu0 %v1736
  %2206 = vmatprep.subr.bf16.mxu0 %v1729
  %2207 = vmatpush2.bf16.msra.mxu0 %v1728
  %2208 = vmatprep.mubr.bf16.mxu0 %v595
  %2209 = vmatmul.mubr.bf16.gmra.mxu0 %v594
  %v2210 = vpop.f32.mrf.mxu0
  %v2211 = vadd.f32 %v859, %v2210
  %v2212 = vpop.f32.mrf.mxu0
  %v2213 = vadd.f32 %v863, %v2212
  %v2214 = vpop.f32.mrf.mxu0
  %v2215 = vadd.f32 %v859, %v2214
  %v2216 = vpop.f32.mrf.mxu0
  %v2217 = vadd.f32 %v863, %v2216
  %2218 = vdwg.mxu0
  %2219 = vmatprep.subr.bf16.mxu0 %v1849
  %2220 = vmatpush1.bf16.msra.mxu0 %v1848
  %2221 = vmatprep.subr.bf16.mxu0 %v1841
  %2222 = vmatpush1.bf16.msra.mxu0 %v1840
  %2223 = vmatprep.subr.bf16.mxu0 %v1833
  %2224 = vmatpush1.bf16.msra.mxu0 %v1832
  %2225 = vmatprep.subr.bf16.mxu0 %v1825
  %2226 = vmatpush1.bf16.msra.mxu0 %v1824
  %2227 = vmatprep.subr.bf16.mxu0 %v1817
  %2228 = vmatpush1.bf16.msra.mxu0 %v1816
  %2229 = vmatprep.subr.bf16.mxu0 %v1809
  %2230 = vmatpush1.bf16.msra.mxu0 %v1808
  %2231 = vmatprep.subr.bf16.mxu0 %v1801
  %2232 = vmatpush1.bf16.msra.mxu0 %v1800
  %2233 = vmatprep.subr.bf16.mxu0 %v1793
  %2234 = vmatpush1.bf16.msra.mxu0 %v1792
  %2235 = vmatprep.subr.bf16.mxu0 %v1913
  %2236 = vmatpush2.bf16.msra.mxu0 %v1912
  %2237 = vmatprep.subr.bf16.mxu0 %v1905
  %2238 = vmatpush2.bf16.msra.mxu0 %v1904
  %2239 = vmatprep.subr.bf16.mxu0 %v1897
  %2240 = vmatpush2.bf16.msra.mxu0 %v1896
  %2241 = vmatprep.subr.bf16.mxu0 %v1889
  %2242 = vmatpush2.bf16.msra.mxu0 %v1888
  %2243 = vmatprep.subr.bf16.mxu0 %v1881
  %2244 = vmatpush2.bf16.msra.mxu0 %v1880
  %2245 = vmatprep.subr.bf16.mxu0 %v1873
  %2246 = vmatpush2.bf16.msra.mxu0 %v1872
  %2247 = vmatprep.subr.bf16.mxu0 %v1865
  %2248 = vmatpush2.bf16.msra.mxu0 %v1864
  %2249 = vmatprep.subr.bf16.mxu0 %v1857
  %2250 = vmatpush2.bf16.msra.mxu0 %v1856
  %2251 = vmatprep.mubr.bf16.mxu0 %v597
  %2252 = vmatmul.mubr.bf16.gmra.mxu0 %v596
  %v2253 = vpop.f32.mrf.mxu0
  %v2254 = vadd.f32 %v2211, %v2253
  %v2255 = vpop.f32.mrf.mxu0
  %v2256 = vadd.f32 %v2213, %v2255
  %v2257 = vpop.f32.mrf.mxu0
  %v2258 = vadd.f32 %v2215, %v2257
  %v2259 = vpop.f32.mrf.mxu0
  %v2260 = vadd.f32 %v2217, %v2259
  %2261 = vdwg.mxu0
  %2262 = vmatprep.subr.bf16.mxu0 %v1723
  %2263 = vmatpush1.bf16.msra.mxu0 %v1722
  %2264 = vmatprep.subr.bf16.mxu0 %v1715
  %2265 = vmatpush1.bf16.msra.mxu0 %v1714
  %2266 = vmatprep.subr.bf16.mxu0 %v1707
  %2267 = vmatpush1.bf16.msra.mxu0 %v1706
  %2268 = vmatprep.subr.bf16.mxu0 %v1699
  %2269 = vmatpush1.bf16.msra.mxu0 %v1698
  %2270 = vmatprep.subr.bf16.mxu0 %v1691
  %2271 = vmatpush1.bf16.msra.mxu0 %v1690
  %2272 = vmatprep.subr.bf16.mxu0 %v1683
  %2273 = vmatpush1.bf16.msra.mxu0 %v1682
  %2274 = vmatprep.subr.bf16.mxu0 %v1675
  %2275 = vmatpush1.bf16.msra.mxu0 %v1674
  %2276 = vmatprep.subr.bf16.mxu0 %v1667
  %2277 = vmatpush1.bf16.msra.mxu0 %v1666
  %2278 = vmatprep.subr.bf16.mxu0 %v1787
  %2279 = vmatpush2.bf16.msra.mxu0 %v1786
  %2280 = vmatprep.subr.bf16.mxu0 %v1779
  %2281 = vmatpush2.bf16.msra.mxu0 %v1778
  %2282 = vmatprep.subr.bf16.mxu0 %v1771
  %2283 = vmatpush2.bf16.msra.mxu0 %v1770
  %2284 = vmatprep.subr.bf16.mxu0 %v1763
  %2285 = vmatpush2.bf16.msra.mxu0 %v1762
  %2286 = vmatprep.subr.bf16.mxu0 %v1755
  %2287 = vmatpush2.bf16.msra.mxu0 %v1754
  %2288 = vmatprep.subr.bf16.mxu0 %v1747
  %2289 = vmatpush2.bf16.msra.mxu0 %v1746
  %2290 = vmatprep.subr.bf16.mxu0 %v1739
  %2291 = vmatpush2.bf16.msra.mxu0 %v1738
  %2292 = vmatprep.subr.bf16.mxu0 %v1731
  %2293 = vmatpush2.bf16.msra.mxu0 %v1730
  %2294 = vmatprep.mubr.bf16.mxu0 %v595
  %2295 = vmatmul.mubr.bf16.gmra.mxu0 %v594
  %v2296 = vpop.f32.mrf.mxu0
  %v2297 = vadd.f32 %v867, %v2296
  %v2298 = vpop.f32.mrf.mxu0
  %v2299 = vadd.f32 %v871, %v2298
  %v2300 = vpop.f32.mrf.mxu0
  %v2301 = vadd.f32 %v867, %v2300
  %v2302 = vpop.f32.mrf.mxu0
  %v2303 = vadd.f32 %v871, %v2302
  %2304 = vdwg.mxu0
  %2305 = vmatprep.subr.bf16.mxu0 %v1851
  %2306 = vmatpush1.bf16.msra.mxu0 %v1850
  %2307 = vmatprep.subr.bf16.mxu0 %v1843
  %2308 = vmatpush1.bf16.msra.mxu0 %v1842
  %2309 = vmatprep.subr.bf16.mxu0 %v1835
  %2310 = vmatpush1.bf16.msra.mxu0 %v1834
  %2311 = vmatprep.subr.bf16.mxu0 %v1827
  %2312 = vmatpush1.bf16.msra.mxu0 %v1826
  %2313 = vmatprep.subr.bf16.mxu0 %v1819
  %2314 = vmatpush1.bf16.msra.mxu0 %v1818
  %2315 = vmatprep.subr.bf16.mxu0 %v1811
  %2316 = vmatpush1.bf16.msra.mxu0 %v1810
  %2317 = vmatprep.subr.bf16.mxu0 %v1803
  %2318 = vmatpush1.bf16.msra.mxu0 %v1802
  %2319 = vmatprep.subr.bf16.mxu0 %v1795
  %2320 = vmatpush1.bf16.msra.mxu0 %v1794
  %2321 = vmatprep.subr.bf16.mxu0 %v1915
  %2322 = vmatpush2.bf16.msra.mxu0 %v1914
  %2323 = vmatprep.subr.bf16.mxu0 %v1907
  %2324 = vmatpush2.bf16.msra.mxu0 %v1906
  %2325 = vmatprep.subr.bf16.mxu0 %v1899
  %2326 = vmatpush2.bf16.msra.mxu0 %v1898
  %2327 = vmatprep.subr.bf16.mxu0 %v1891
  %2328 = vmatpush2.bf16.msra.mxu0 %v1890
  %2329 = vmatprep.subr.bf16.mxu0 %v1883
  %2330 = vmatpush2.bf16.msra.mxu0 %v1882
  %2331 = vmatprep.subr.bf16.mxu0 %v1875
  %2332 = vmatpush2.bf16.msra.mxu0 %v1874
  %2333 = vmatprep.subr.bf16.mxu0 %v1867
  %2334 = vmatpush2.bf16.msra.mxu0 %v1866
  %2335 = vmatprep.subr.bf16.mxu0 %v1859
  %2336 = vmatpush2.bf16.msra.mxu0 %v1858
  %2337 = vmatprep.mubr.bf16.mxu0 %v597
  %2338 = vmatmul.mubr.bf16.gmra.mxu0 %v596
  %v2339 = vpop.f32.mrf.mxu0
  %v2340 = vadd.f32 %v2297, %v2339
  %v2341 = vpop.f32.mrf.mxu0
  %v2342 = vadd.f32 %v2299, %v2341
  %v2343 = vpop.f32.mrf.mxu0
  %v2344 = vadd.f32 %v2301, %v2343
  %v2345 = vpop.f32.mrf.mxu0
  %v2346 = vadd.f32 %v2303, %v2345
  %2347 = vdwg.mxu0
  %2348 = vmatprep.subr.bf16.mxu0 %v1725
  %2349 = vmatpush1.bf16.msra.mxu0 %v1724
  %2350 = vmatprep.subr.bf16.mxu0 %v1717
  %2351 = vmatpush1.bf16.msra.mxu0 %v1716
  %2352 = vmatprep.subr.bf16.mxu0 %v1709
  %2353 = vmatpush1.bf16.msra.mxu0 %v1708
  %2354 = vmatprep.subr.bf16.mxu0 %v1701
  %2355 = vmatpush1.bf16.msra.mxu0 %v1700
  %2356 = vmatprep.subr.bf16.mxu0 %v1693
  %2357 = vmatpush1.bf16.msra.mxu0 %v1692
  %2358 = vmatprep.subr.bf16.mxu0 %v1685
  %2359 = vmatpush1.bf16.msra.mxu0 %v1684
  %2360 = vmatprep.subr.bf16.mxu0 %v1677
  %2361 = vmatpush1.bf16.msra.mxu0 %v1676
  %2362 = vmatprep.subr.bf16.mxu0 %v1669
  %2363 = vmatpush1.bf16.msra.mxu0 %v1668
  %2364 = vmatprep.subr.bf16.mxu0 %v1789
  %2365 = vmatpush2.bf16.msra.mxu0 %v1788
  %2366 = vmatprep.subr.bf16.mxu0 %v1781
  %2367 = vmatpush2.bf16.msra.mxu0 %v1780
  %2368 = vmatprep.subr.bf16.mxu0 %v1773
  %2369 = vmatpush2.bf16.msra.mxu0 %v1772
  %2370 = vmatprep.subr.bf16.mxu0 %v1765
  %2371 = vmatpush2.bf16.msra.mxu0 %v1764
  %2372 = vmatprep.subr.bf16.mxu0 %v1757
  %2373 = vmatpush2.bf16.msra.mxu0 %v1756
  %2374 = vmatprep.subr.bf16.mxu0 %v1749
  %2375 = vmatpush2.bf16.msra.mxu0 %v1748
  %2376 = vmatprep.subr.bf16.mxu0 %v1741
  %2377 = vmatpush2.bf16.msra.mxu0 %v1740
  %2378 = vmatprep.subr.bf16.mxu0 %v1733
  %2379 = vmatpush2.bf16.msra.mxu0 %v1732
  %2380 = vmatprep.mubr.bf16.mxu0 %v595
  %2381 = vmatmul.mubr.bf16.gmra.mxu0 %v594
  %v2382 = vpop.f32.mrf.mxu0
  %v2383 = vadd.f32 %v875, %v2382
  %v2384 = vpop.f32.mrf.mxu0
  %v2385 = vadd.f32 %v879, %v2384
  %v2386 = vpop.f32.mrf.mxu0
  %v2387 = vadd.f32 %v875, %v2386
  %v2388 = vpop.f32.mrf.mxu0
  %v2389 = vadd.f32 %v879, %v2388
  %2390 = vdwg.mxu0
  %2391 = vmatprep.subr.bf16.mxu0 %v1853
  %2392 = vmatpush1.bf16.msra.mxu0 %v1852
  %2393 = vmatprep.subr.bf16.mxu0 %v1845
  %2394 = vmatpush1.bf16.msra.mxu0 %v1844
  %2395 = vmatprep.subr.bf16.mxu0 %v1837
  %2396 = vmatpush1.bf16.msra.mxu0 %v1836
  %2397 = vmatprep.subr.bf16.mxu0 %v1829
  %2398 = vmatpush1.bf16.msra.mxu0 %v1828
  %2399 = vmatprep.subr.bf16.mxu0 %v1821
  %2400 = vmatpush1.bf16.msra.mxu0 %v1820
  %2401 = vmatprep.subr.bf16.mxu0 %v1813
  %2402 = vmatpush1.bf16.msra.mxu0 %v1812
  %2403 = vmatprep.subr.bf16.mxu0 %v1805
  %2404 = vmatpush1.bf16.msra.mxu0 %v1804
  %2405 = vmatprep.subr.bf16.mxu0 %v1797
  %2406 = vmatpush1.bf16.msra.mxu0 %v1796
  %2407 = vmatprep.subr.bf16.mxu0 %v1917
  %2408 = vmatpush2.bf16.msra.mxu0 %v1916
  %2409 = vmatprep.subr.bf16.mxu0 %v1909
  %2410 = vmatpush2.bf16.msra.mxu0 %v1908
  %2411 = vmatprep.subr.bf16.mxu0 %v1901
  %2412 = vmatpush2.bf16.msra.mxu0 %v1900
  %2413 = vmatprep.subr.bf16.mxu0 %v1893
  %2414 = vmatpush2.bf16.msra.mxu0 %v1892
  %2415 = vmatprep.subr.bf16.mxu0 %v1885
  %2416 = vmatpush2.bf16.msra.mxu0 %v1884
  %2417 = vmatprep.subr.bf16.mxu0 %v1877
  %2418 = vmatpush2.bf16.msra.mxu0 %v1876
  %2419 = vmatprep.subr.bf16.mxu0 %v1869
  %2420 = vmatpush2.bf16.msra.mxu0 %v1868
  %2421 = vmatprep.subr.bf16.mxu0 %v1861
  %2422 = vmatpush2.bf16.msra.mxu0 %v1860
  %2423 = vmatprep.mubr.bf16.mxu0 %v597
  %2424 = vmatmul.mubr.bf16.gmra.mxu0 %v596
  %v2425 = vpop.f32.mrf.mxu0
  %v2426 = vadd.f32 %v2383, %v2425
  %v2427 = vpop.f32.mrf.mxu0
  %v2428 = vadd.f32 %v2385, %v2427
  %v2429 = vpop.f32.mrf.mxu0
  %v2430 = vadd.f32 %v2387, %v2429
  %v2431 = vpop.f32.mrf.mxu0
  %v2432 = vadd.f32 %v2389, %v2431
  %2433 = vdwg.mxu0
  %2434 = vmatprep.subr.bf16.mxu0 %v1727
  %2435 = vmatpush1.bf16.msra.mxu0 %v1726
  %2436 = vmatprep.subr.bf16.mxu0 %v1719
  %2437 = vmatpush1.bf16.msra.mxu0 %v1718
  %2438 = vmatprep.subr.bf16.mxu0 %v1711
  %2439 = vmatpush1.bf16.msra.mxu0 %v1710
  %2440 = vmatprep.subr.bf16.mxu0 %v1703
  %2441 = vmatpush1.bf16.msra.mxu0 %v1702
  %2442 = vmatprep.subr.bf16.mxu0 %v1695
  %2443 = vmatpush1.bf16.msra.mxu0 %v1694
  %2444 = vmatprep.subr.bf16.mxu0 %v1687
  %2445 = vmatpush1.bf16.msra.mxu0 %v1686
  %2446 = vmatprep.subr.bf16.mxu0 %v1679
  %2447 = vmatpush1.bf16.msra.mxu0 %v1678
  %2448 = vmatprep.subr.bf16.mxu0 %v1671
  %2449 = vmatpush1.bf16.msra.mxu0 %v1670
  %2450 = vmatprep.subr.bf16.mxu0 %v1791
  %2451 = vmatpush2.bf16.msra.mxu0 %v1790
  %2452 = vmatprep.subr.bf16.mxu0 %v1783
  %2453 = vmatpush2.bf16.msra.mxu0 %v1782
  %2454 = vmatprep.subr.bf16.mxu0 %v1775
  %2455 = vmatpush2.bf16.msra.mxu0 %v1774
  %2456 = vmatprep.subr.bf16.mxu0 %v1767
  %2457 = vmatpush2.bf16.msra.mxu0 %v1766
  %2458 = vmatprep.subr.bf16.mxu0 %v1759
  %2459 = vmatpush2.bf16.msra.mxu0 %v1758
  %2460 = vmatprep.subr.bf16.mxu0 %v1751
  %2461 = vmatpush2.bf16.msra.mxu0 %v1750
  %2462 = vmatprep.subr.bf16.mxu0 %v1743
  %2463 = vmatpush2.bf16.msra.mxu0 %v1742
  %2464 = vmatprep.subr.bf16.mxu0 %v1735
  %2465 = vmatpush2.bf16.msra.mxu0 %v1734
  %2466 = vmatprep.mubr.bf16.mxu0 %v595
  %2467 = vmatmul.mubr.bf16.gmra.mxu0 %v594
  %v2468 = vpop.f32.mrf.mxu0
  %v2469 = vadd.f32 %v883, %v2468
  %v2470 = vpop.f32.mrf.mxu0
  %v2471 = vadd.f32 %v887, %v2470
  %v2472 = vpop.f32.mrf.mxu0
  %v2473 = vadd.f32 %v883, %v2472
  %v2474 = vpop.f32.mrf.mxu0
  %v2475 = vadd.f32 %v887, %v2474
  %2476 = vdwg.mxu0
  %2477 = vmatprep.subr.bf16.mxu0 %v1855
  %2478 = vmatpush1.bf16.msra.mxu0 %v1854
  %2479 = vmatprep.subr.bf16.mxu0 %v1847
  %2480 = vmatpush1.bf16.msra.mxu0 %v1846
  %2481 = vmatprep.subr.bf16.mxu0 %v1839
  %2482 = vmatpush1.bf16.msra.mxu0 %v1838
  %2483 = vmatprep.subr.bf16.mxu0 %v1831
  %2484 = vmatpush1.bf16.msra.mxu0 %v1830
  %2485 = vmatprep.subr.bf16.mxu0 %v1823
  %2486 = vmatpush1.bf16.msra.mxu0 %v1822
  %2487 = vmatprep.subr.bf16.mxu0 %v1815
  %2488 = vmatpush1.bf16.msra.mxu0 %v1814
  %2489 = vmatprep.subr.bf16.mxu0 %v1807
  %2490 = vmatpush1.bf16.msra.mxu0 %v1806
  %2491 = vmatprep.subr.bf16.mxu0 %v1799
  %2492 = vmatpush1.bf16.msra.mxu0 %v1798
  %2493 = vmatprep.subr.bf16.mxu0 %v1919
  %2494 = vmatpush2.bf16.msra.mxu0 %v1918
  %2495 = vmatprep.subr.bf16.mxu0 %v1911
  %2496 = vmatpush2.bf16.msra.mxu0 %v1910
  %2497 = vmatprep.subr.bf16.mxu0 %v1903
  %2498 = vmatpush2.bf16.msra.mxu0 %v1902
  %2499 = vmatprep.subr.bf16.mxu0 %v1895
  %2500 = vmatpush2.bf16.msra.mxu0 %v1894
  %2501 = vmatprep.subr.bf16.mxu0 %v1887
  %2502 = vmatpush2.bf16.msra.mxu0 %v1886
  %2503 = vmatprep.subr.bf16.mxu0 %v1879
  %2504 = vmatpush2.bf16.msra.mxu0 %v1878
  %2505 = vmatprep.subr.bf16.mxu0 %v1871
  %2506 = vmatpush2.bf16.msra.mxu0 %v1870
  %2507 = vmatprep.subr.bf16.mxu0 %v1863
  %2508 = vmatpush2.bf16.msra.mxu0 %v1862
  %2509 = vmatprep.mubr.bf16.mxu0 %v597
  %2510 = vmatmul.mubr.bf16.gmra.mxu0 %v596
  %v2511 = vpop.f32.mrf.mxu0
  %v2512 = vadd.f32 %v2469, %v2511
  %v2513 = vpop.f32.mrf.mxu0
  %v2514 = vadd.f32 %v2471, %v2513
  %v2515 = vpop.f32.mrf.mxu0
  %v2516 = vadd.f32 %v2473, %v2515
  %v2517 = vpop.f32.mrf.mxu0
  %v2518 = vadd.f32 %v2475, %v2517
  %2519 = vdwg.mxu0
  %v2520 = vmul.f32 %v2254, 0.2
  %v2521 = vmul.f32 %v2256, 0.2
  %v2522 = vmul.f32 %v2340, 0.2
  %v2523 = vmul.f32 %v2342, 0.2
  %v2524 = vmul.f32 %v2426, 0.2
  %v2525 = vmul.f32 %v2428, 0.2
  %v2526 = vmul.f32 %v2512, 0.2
  %v2527 = vmul.f32 %v2514, 0.2
  %v2528 = vmul.f32 %v2258, 0.2
  %v2529 = vmul.f32 %v2260, 0.2
  %v2530 = vmul.f32 %v2344, 0.2
  %v2531 = vmul.f32 %v2346, 0.2
  %v2532 = vmul.f32 %v2430, 0.2
  %v2533 = vmul.f32 %v2432, 0.2
  %v2534 = vmul.f32 %v2516, 0.2
  %v2535 = vmul.f32 %v2518, 0.2
  %v2536 = vmax.f32 %v2254, %v2520
  %v2537 = vmax.f32 %v2256, %v2521
  %v2538 = vmax.f32 %v2340, %v2522
  %v2539 = vmax.f32 %v2342, %v2523
  %v2540 = vmax.f32 %v2426, %v2524
  %v2541 = vmax.f32 %v2428, %v2525
  %v2542 = vmax.f32 %v2512, %v2526
  %v2543 = vmax.f32 %v2514, %v2527
  %v2544 = vmax.f32 %v2258, %v2528
  %v2545 = vmax.f32 %v2260, %v2529
  %v2546 = vmax.f32 %v2344, %v2530
  %v2547 = vmax.f32 %v2346, %v2531
  %v2548 = vmax.f32 %v2430, %v2532
  %v2549 = vmax.f32 %v2432, %v2533
  %v2550 = vmax.f32 %v2516, %v2534
  %v2551 = vmax.f32 %v2518, %v2535
  %v2552 = vld [vmem:[#allocation2] sm:$0xff]
  %v2553 = vld [vmem:[#allocation2 + $0x8] sm:$0xff]
  %v2554 = vrot.slane %v2536, 4
  %v2555 = vadd.f32 %v2536, %v2554
  %v2556 = vrot.slane %v2555, 2
  %v2557 = vadd.f32 %v2555, %v2556
  %v2558 = vrot.slane %v2557, 1
  %v2559 = vadd.f32 %v2557, %v2558
  %v2560 = vrot.slane %v2537, 4
  %v2561 = vadd.f32 %v2537, %v2560
  %v2562 = vrot.slane %v2561, 2
  %v2563 = vadd.f32 %v2561, %v2562
  %v2564 = vrot.slane %v2563, 1
  %v2565 = vadd.f32 %v2563, %v2564
  %v2566 = vrot.slane %v2538, 4
  %v2567 = vadd.f32 %v2538, %v2566
  %v2568 = vrot.slane %v2567, 2
  %v2569 = vadd.f32 %v2567, %v2568
  %v2570 = vrot.slane %v2569, 1
  %v2571 = vadd.f32 %v2569, %v2570
  %v2572 = vrot.slane %v2539, 4
  %v2573 = vadd.f32 %v2539, %v2572
  %v2574 = vrot.slane %v2573, 2
  %v2575 = vadd.f32 %v2573, %v2574
  %v2576 = vrot.slane %v2575, 1
  %v2577 = vadd.f32 %v2575, %v2576
  %v2578 = vrot.slane %v2540, 4
  %v2579 = vadd.f32 %v2540, %v2578
  %v2580 = vrot.slane %v2579, 2
  %v2581 = vadd.f32 %v2579, %v2580
  %v2582 = vrot.slane %v2581, 1
  %v2583 = vadd.f32 %v2581, %v2582
  %v2584 = vrot.slane %v2541, 4
  %v2585 = vadd.f32 %v2541, %v2584
  %v2586 = vrot.slane %v2585, 2
  %v2587 = vadd.f32 %v2585, %v2586
  %v2588 = vrot.slane %v2587, 1
  %v2589 = vadd.f32 %v2587, %v2588
  %v2590 = vrot.slane %v2542, 4
  %v2591 = vadd.f32 %v2542, %v2590
  %v2592 = vrot.slane %v2591, 2
  %v2593 = vadd.f32 %v2591, %v2592
  %v2594 = vrot.slane %v2593, 1
  %v2595 = vadd.f32 %v2593, %v2594
  %v2596 = vrot.slane %v2543, 4
  %v2597 = vadd.f32 %v2543, %v2596
  %v2598 = vrot.slane %v2597, 2
  %v2599 = vadd.f32 %v2597, %v2598
  %v2600 = vrot.slane %v2599, 1
  %v2601 = vadd.f32 %v2599, %v2600
  %v2602 = vrot.slane %v2544, 4
  %v2603 = vadd.f32 %v2544, %v2602
  %v2604 = vrot.slane %v2603, 2
  %v2605 = vadd.f32 %v2603, %v2604
  %v2606 = vrot.slane %v2605, 1
  %v2607 = vadd.f32 %v2605, %v2606
  %v2608 = vrot.slane %v2545, 4
  %v2609 = vadd.f32 %v2545, %v2608
  %v2610 = vrot.slane %v2609, 2
  %v2611 = vadd.f32 %v2609, %v2610
  %v2612 = vrot.slane %v2611, 1
  %v2613 = vadd.f32 %v2611, %v2612
  %v2614 = vrot.slane %v2546, 4
  %v2615 = vadd.f32 %v2546, %v2614
  %v2616 = vrot.slane %v2615, 2
  %v2617 = vadd.f32 %v2615, %v2616
  %v2618 = vrot.slane %v2617, 1
  %v2619 = vadd.f32 %v2617, %v2618
  %v2620 = vrot.slane %v2547, 4
  %v2621 = vadd.f32 %v2547, %v2620
  %v2622 = vrot.slane %v2621, 2
  %v2623 = vadd.f32 %v2621, %v2622
  %v2624 = vrot.slane %v2623, 1
  %v2625 = vadd.f32 %v2623, %v2624
  %v2626 = vrot.slane %v2548, 4
  %v2627 = vadd.f32 %v2548, %v2626
  %v2628 = vrot.slane %v2627, 2
  %v2629 = vadd.f32 %v2627, %v2628
  %v2630 = vrot.slane %v2629, 1
  %v2631 = vadd.f32 %v2629, %v2630
  %v2632 = vrot.slane %v2549, 4
  %v2633 = vadd.f32 %v2549, %v2632
  %v2634 = vrot.slane %v2633, 2
  %v2635 = vadd.f32 %v2633, %v2634
  %v2636 = vrot.slane %v2635, 1
  %v2637 = vadd.f32 %v2635, %v2636
  %v2638 = vrot.slane %v2550, 4
  %v2639 = vadd.f32 %v2550, %v2638
  %v2640 = vrot.slane %v2639, 2
  %v2641 = vadd.f32 %v2639, %v2640
  %v2642 = vrot.slane %v2641, 1
  %v2643 = vadd.f32 %v2641, %v2642
  %v2644 = vrot.slane %v2551, 4
  %v2645 = vadd.f32 %v2551, %v2644
  %v2646 = vrot.slane %v2645, 2
  %v2647 = vadd.f32 %v2645, %v2646
  %v2648 = vrot.slane %v2647, 1
  %v2649 = vadd.f32 %v2647, %v2648
  %v2666 = vcombine.low %v2559, %v2565
  %v2667 = vcombine.low %v2571, %v2577
  %v2669 = vunpack.c.l.s4 1983009808
  %v2670 = vunpack.c.0.s8 %v2669
  %v2671 = vlaneseq
  %v2672 = vshrl.u32 %v2671, 7
  %v2673 = vsub.s32 %v2670, %v2672
  %v2674 = vrot.slane %v2666, %v2673
  %v2676 = vunpack.c.l.s4 1983009808
  %v2677 = vunpack.c.0.s8 %v2676
  %v2678 = vlaneseq
  %v2679 = vshrl.u32 %v2678, 7
  %v2680 = vsub.s32 %v2677, %v2679
  %v2681 = vrot.slane %v2667, %v2680
  %v2682 = vcombine.low %v2674, %v2681
  %v2683 = vcombine.low %v2583, %v2589
  %v2684 = vcombine.low %v2595, %v2601
  %v2686 = vunpack.c.l.s4 1983009808
  %v2687 = vunpack.c.0.s8 %v2686
  %v2688 = vlaneseq
  %v2689 = vshrl.u32 %v2688, 7
  %v2690 = vsub.s32 %v2687, %v2689
  %v2691 = vrot.slane %v2683, %v2690
  %v2693 = vunpack.c.l.s4 1983009808
  %v2694 = vunpack.c.0.s8 %v2693
  %v2695 = vlaneseq
  %v2696 = vshrl.u32 %v2695, 7
  %v2697 = vsub.s32 %v2694, %v2696
  %v2698 = vrot.slane %v2684, %v2697
  %v2699 = vcombine.low %v2691, %v2698
  %v2700 = vcombine.low %v2607, %v2613
  %v2701 = vcombine.low %v2619, %v2625
  %v2703 = vunpack.c.l.s4 1983009808
  %v2704 = vunpack.c.0.s8 %v2703
  %v2705 = vlaneseq
  %v2706 = vshrl.u32 %v2705, 7
  %v2707 = vsub.s32 %v2704, %v2706
  %v2708 = vrot.slane %v2700, %v2707
  %v2710 = vunpack.c.l.s4 1983009808
  %v2711 = vunpack.c.0.s8 %v2710
  %v2712 = vlaneseq
  %v2713 = vshrl.u32 %v2712, 7
  %v2714 = vsub.s32 %v2711, %v2713
  %v2715 = vrot.slane %v2701, %v2714
  %v2716 = vcombine.low %v2708, %v2715
  %v2717 = vcombine.low %v2631, %v2637
  %v2718 = vcombine.low %v2643, %v2649
  %v2720 = vunpack.c.l.s4 1983009808
  %v2721 = vunpack.c.0.s8 %v2720
  %v2722 = vlaneseq
  %v2723 = vshrl.u32 %v2722, 7
  %v2724 = vsub.s32 %v2721, %v2723
  %v2725 = vrot.slane %v2717, %v2724
  %v2727 = vunpack.c.l.s4 1983009808
  %v2728 = vunpack.c.0.s8 %v2727
  %v2729 = vlaneseq
  %v2730 = vshrl.u32 %v2729, 7
  %v2731 = vsub.s32 %v2728, %v2730
  %v2732 = vrot.slane %v2718, %v2731
  %v2733 = vcombine.low %v2725, %v2732
  %vm2734 = vcmask 1044484
  %v2735 = vsel %vm2734, %v2682, %v2682
  %vm2736 = vcmask 1046534
  %v2737 = vsel %vm2736, %v2682, %v2735
  %v2738 = vrot.slane %v2716, 7
  %v2739 = vsel %vm88, %v2738, %v2737
  %vm2740 = vcmask 1043459
  %v2741 = vsel %vm2740, %v2738, %v2739
  %vm2742 = vcmask 1045509
  %v2743 = vsel %vm2742, %v2738, %v2741
  %vm2744 = vcmask 1047559
  %v2745 = vsel %vm2744, %v2738, %v2743
  %v2746 = vsel %vm2734, %v2699, %v2699
  %v2747 = vsel %vm2736, %v2699, %v2746
  %v2748 = vrot.slane %v2733, 7
  %v2749 = vsel %vm88, %v2748, %v2747
  %v2750 = vsel %vm2740, %v2748, %v2749
  %v2751 = vsel %vm2742, %v2748, %v2750
  %v2752 = vsel %vm2744, %v2748, %v2751
  %v2755 = vadd.f32 %v2552, %v2745
  %v2756 = vadd.f32 %v2553, %v2752
  %2757 = vst [vmem:[#allocation2] sm:$0xff] %v2755
  %2758 = vst [vmem:[#allocation2 + $0x8] sm:$0xff] %v2756
  // Predicated region
  $region66: #{mesh_des_forward.1} parent=0 // pred_check
    %p2759 = pneg %p53
  $region67: #{mesh_des_forward.1} parent=0 // pred_check_branch
    %2761 = sbr.rel (%p2759) target = $region69
  $region68: #{mesh_des_forward.1} parent=0 // pred_region
    %v2762 = vld [vmem:[#allocation3] sm:$0x3]
    %v2763 = vrcp.pop %v2762
    %v2764 = vld [vmem:[#allocation2] sm:$0xff]
    %v2765 = vld [vmem:[#allocation2 + $0x8] sm:$0xff]
    %2767 = vset.pattern.permute.xlu0 0
    %2768 = vperm.xlu0 %2767, %v2763
    %v2769 = vpop.permute.xlu0 %2768
    %v2771 = vunpack.c.l.s4 269488144
    %v2772 = vunpack.c.0.s8 %v2771
    %v2773 = vlaneseq
    %v2774 = vshrl.u32 %v2773, 7
    %v2775 = vsub.s32 %v2772, %v2774
    %v2776 = vrot.slane %v2769, %v2775
    %v2778 = vmul.f32 %v2764, %v2776
    %v2779 = vmul.f32 %v2765, %v2776
    %v2782 = vcombine.high %v2778, %v2778
    %v2784 = vunpack.c.l.s4 1983009808
    %v2785 = vunpack.c.0.s8 %v2784
    %v2786 = vlaneseq
    %v2787 = vshrl.u32 %v2786, 7
    %v2788 = vsub.s32 %v2785, %v2787
    %v2789 = vrot.slane %v2778, %v2788
    %v2791 = vunpack.c.l.s4 1983009808
    %v2792 = vunpack.c.0.s8 %v2791
    %v2793 = vlaneseq
    %v2794 = vshrl.u32 %v2793, 7
    %v2795 = vsub.s32 %v2792, %v2794
    %v2796 = vrot.slane %v2782, %v2795
    %v2797 = vcombine.high %v2789, %v2789
    %v2798 = vcombine.high %v2796, %v2796
    %v2799 = vcombine.high %v2779, %v2779
    %v2801 = vunpack.c.l.s4 1983009808
    %v2802 = vunpack.c.0.s8 %v2801
    %v2803 = vlaneseq
    %v2804 = vshrl.u32 %v2803, 7
    %v2805 = vsub.s32 %v2802, %v2804
    %v2806 = vrot.slane %v2779, %v2805
    %v2808 = vunpack.c.l.s4 1983009808
    %v2809 = vunpack.c.0.s8 %v2808
    %v2810 = vlaneseq
    %v2811 = vshrl.u32 %v2810, 7
    %v2812 = vsub.s32 %v2809, %v2811
    %v2813 = vrot.slane %v2799, %v2812
    %v2814 = vcombine.high %v2806, %v2806
    %v2815 = vcombine.high %v2813, %v2813
    %v2824 = vpack.c.bf16 %v2789, %v2789
    %v2825 = vpack.c.bf16 %v2797, %v2797
    %v2826 = vpack.c.bf16 %v2796, %v2796
    %v2827 = vpack.c.bf16 %v2798, %v2798
    %v2828 = vpack.c.bf16 %v2806, %v2806
    %v2829 = vpack.c.bf16 %v2814, %v2814
    %v2830 = vpack.c.bf16 %v2813, %v2813
    %v2831 = vpack.c.bf16 %v2815, %v2815
    %v2832 = vld [vmem:[%s9] sm:$0xff]
    %v2833 = vld [vmem:[%s9 + $0x8] sm:$0xff]
    %v2834 = vld [vmem:[%s9 + $0x10] sm:$0xff]
    %v2835 = vld [vmem:[%s9 + $0x18] sm:$0xff]
    %v2836 = vld [vmem:[%s9 + $0x20] sm:$0xff]
    %v2837 = vld [vmem:[%s9 + $0x28] sm:$0xff]
    %v2838 = vld [vmem:[%s9 + $0x30] sm:$0xff]
    %v2839 = vld [vmem:[%s9 + $0x38] sm:$0xff]
    %v2840 = vld [vmem:[%s9 + $0x40] sm:$0xff]
    %v2841 = vld [vmem:[%s9 + $0x48] sm:$0xff]
    %v2842 = vld [vmem:[%s9 + $0x50] sm:$0xff]
    %v2843 = vld [vmem:[%s9 + $0x58] sm:$0xff]
    %v2844 = vld [vmem:[%s9 + $0x60] sm:$0xff]
    %v2845 = vld [vmem:[%s9 + $0x68] sm:$0xff]
    %v2846 = vld [vmem:[%s9 + $0x70] sm:$0xff]
    %v2847 = vld [vmem:[%s9 + $0x78] sm:$0xff]
    %v2848 = vld [vmem:[%s9 + $0x80] sm:$0xff]
    %v2849 = vld [vmem:[%s9 + $0x88] sm:$0xff]
    %v2850 = vld [vmem:[%s9 + $0x90] sm:$0xff]
    %v2851 = vld [vmem:[%s9 + $0x98] sm:$0xff]
    %v2852 = vld [vmem:[%s9 + $0xa0] sm:$0xff]
    %v2853 = vld [vmem:[%s9 + $0xa8] sm:$0xff]
    %v2854 = vld [vmem:[%s9 + $0xb0] sm:$0xff]
    %v2855 = vld [vmem:[%s9 + $0xb8] sm:$0xff]
    %v2856 = vld [vmem:[%s9 + $0xc0] sm:$0xff]
    %v2857 = vld [vmem:[%s9 + $0xc8] sm:$0xff]
    %v2858 = vld [vmem:[%s9 + $0xd0] sm:$0xff]
    %v2859 = vld [vmem:[%s9 + $0xd8] sm:$0xff]
    %v2860 = vld [vmem:[%s9 + $0xe0] sm:$0xff]
    %v2861 = vld [vmem:[%s9 + $0xe8] sm:$0xff]
    %v2862 = vld [vmem:[%s9 + $0xf0] sm:$0xff]
    %v2863 = vld [vmem:[%s9 + $0xf8] sm:$0xff]
    %v2864 = vld [vmem:[%s9 + $0x100] sm:$0xff]
    %v2865 = vld [vmem:[%s9 + $0x108] sm:$0xff]
    %v2866 = vld [vmem:[%s9 + $0x110] sm:$0xff]
    %v2867 = vld [vmem:[%s9 + $0x118] sm:$0xff]
    %v2868 = vld [vmem:[%s9 + $0x120] sm:$0xff]
    %v2869 = vld [vmem:[%s9 + $0x128] sm:$0xff]
    %v2870 = vld [vmem:[%s9 + $0x130] sm:$0xff]
    %v2871 = vld [vmem:[%s9 + $0x138] sm:$0xff]
    %v2872 = vld [vmem:[%s9 + $0x140] sm:$0xff]
    %v2873 = vld [vmem:[%s9 + $0x148] sm:$0xff]
    %v2874 = vld [vmem:[%s9 + $0x150] sm:$0xff]
    %v2875 = vld [vmem:[%s9 + $0x158] sm:$0xff]
    %v2876 = vld [vmem:[%s9 + $0x160] sm:$0xff]
    %v2877 = vld [vmem:[%s9 + $0x168] sm:$0xff]
    %v2878 = vld [vmem:[%s9 + $0x170] sm:$0xff]
    %v2879 = vld [vmem:[%s9 + $0x178] sm:$0xff]
    %v2880 = vld [vmem:[%s9 + $0x180] sm:$0xff]
    %v2881 = vld [vmem:[%s9 + $0x188] sm:$0xff]
    %v2882 = vld [vmem:[%s9 + $0x190] sm:$0xff]
    %v2883 = vld [vmem:[%s9 + $0x198] sm:$0xff]
    %v2884 = vld [vmem:[%s9 + $0x1a0] sm:$0xff]
    %v2885 = vld [vmem:[%s9 + $0x1a8] sm:$0xff]
    %v2886 = vld [vmem:[%s9 + $0x1b0] sm:$0xff]
    %v2887 = vld [vmem:[%s9 + $0x1b8] sm:$0xff]
    %v2888 = vld [vmem:[%s9 + $0x1c0] sm:$0xff]
    %v2889 = vld [vmem:[%s9 + $0x1c8] sm:$0xff]
    %v2890 = vld [vmem:[%s9 + $0x1d0] sm:$0xff]
    %v2891 = vld [vmem:[%s9 + $0x1d8] sm:$0xff]
    %v2892 = vld [vmem:[%s9 + $0x1e0] sm:$0xff]
    %v2893 = vld [vmem:[%s9 + $0x1e8] sm:$0xff]
    %v2894 = vld [vmem:[%s9 + $0x1f0] sm:$0xff]
    %v2895 = vld [vmem:[%s9 + $0x1f8] sm:$0xff]
    %v2896 = vld [vmem:[%s9 + $0x200] sm:$0xff]
    %v2897 = vld [vmem:[%s9 + $0x208] sm:$0xff]
    %v2898 = vld [vmem:[%s9 + $0x210] sm:$0xff]
    %v2899 = vld [vmem:[%s9 + $0x218] sm:$0xff]
    %v2900 = vld [vmem:[%s9 + $0x220] sm:$0xff]
    %v2901 = vld [vmem:[%s9 + $0x228] sm:$0xff]
    %v2902 = vld [vmem:[%s9 + $0x230] sm:$0xff]
    %v2903 = vld [vmem:[%s9 + $0x238] sm:$0xff]
    %v2904 = vld [vmem:[%s9 + $0x240] sm:$0xff]
    %v2905 = vld [vmem:[%s9 + $0x248] sm:$0xff]
    %v2906 = vld [vmem:[%s9 + $0x250] sm:$0xff]
    %v2907 = vld [vmem:[%s9 + $0x258] sm:$0xff]
    %v2908 = vld [vmem:[%s9 + $0x260] sm:$0xff]
    %v2909 = vld [vmem:[%s9 + $0x268] sm:$0xff]
    %v2910 = vld [vmem:[%s9 + $0x270] sm:$0xff]
    %v2911 = vld [vmem:[%s9 + $0x278] sm:$0xff]
    %v2912 = vld [vmem:[%s9 + $0x280] sm:$0xff]
    %v2913 = vld [vmem:[%s9 + $0x288] sm:$0xff]
    %v2914 = vld [vmem:[%s9 + $0x290] sm:$0xff]
    %v2915 = vld [vmem:[%s9 + $0x298] sm:$0xff]
    %v2916 = vld [vmem:[%s9 + $0x2a0] sm:$0xff]
    %v2917 = vld [vmem:[%s9 + $0x2a8] sm:$0xff]
    %v2918 = vld [vmem:[%s9 + $0x2b0] sm:$0xff]
    %v2919 = vld [vmem:[%s9 + $0x2b8] sm:$0xff]
    %v2920 = vld [vmem:[%s9 + $0x2c0] sm:$0xff]
    %v2921 = vld [vmem:[%s9 + $0x2c8] sm:$0xff]
    %v2922 = vld [vmem:[%s9 + $0x2d0] sm:$0xff]
    %v2923 = vld [vmem:[%s9 + $0x2d8] sm:$0xff]
    %v2924 = vld [vmem:[%s9 + $0x2e0] sm:$0xff]
    %v2925 = vld [vmem:[%s9 + $0x2e8] sm:$0xff]
    %v2926 = vld [vmem:[%s9 + $0x2f0] sm:$0xff]
    %v2927 = vld [vmem:[%s9 + $0x2f8] sm:$0xff]
    %v2928 = vld [vmem:[%s9 + $0x300] sm:$0xff]
    %v2929 = vld [vmem:[%s9 + $0x308] sm:$0xff]
    %v2930 = vld [vmem:[%s9 + $0x310] sm:$0xff]
    %v2931 = vld [vmem:[%s9 + $0x318] sm:$0xff]
    %v2932 = vld [vmem:[%s9 + $0x320] sm:$0xff]
    %v2933 = vld [vmem:[%s9 + $0x328] sm:$0xff]
    %v2934 = vld [vmem:[%s9 + $0x330] sm:$0xff]
    %v2935 = vld [vmem:[%s9 + $0x338] sm:$0xff]
    %v2936 = vld [vmem:[%s9 + $0x340] sm:$0xff]
    %v2937 = vld [vmem:[%s9 + $0x348] sm:$0xff]
    %v2938 = vld [vmem:[%s9 + $0x350] sm:$0xff]
    %v2939 = vld [vmem:[%s9 + $0x358] sm:$0xff]
    %v2940 = vld [vmem:[%s9 + $0x360] sm:$0xff]
    %v2941 = vld [vmem:[%s9 + $0x368] sm:$0xff]
    %v2942 = vld [vmem:[%s9 + $0x370] sm:$0xff]
    %v2943 = vld [vmem:[%s9 + $0x378] sm:$0xff]
    %v2944 = vld [vmem:[%s9 + $0x380] sm:$0xff]
    %v2945 = vld [vmem:[%s9 + $0x388] sm:$0xff]
    %v2946 = vld [vmem:[%s9 + $0x390] sm:$0xff]
    %v2947 = vld [vmem:[%s9 + $0x398] sm:$0xff]
    %v2948 = vld [vmem:[%s9 + $0x3a0] sm:$0xff]
    %v2949 = vld [vmem:[%s9 + $0x3a8] sm:$0xff]
    %v2950 = vld [vmem:[%s9 + $0x3b0] sm:$0xff]
    %v2951 = vld [vmem:[%s9 + $0x3b8] sm:$0xff]
    %v2952 = vld [vmem:[%s9 + $0x3c0] sm:$0xff]
    %v2953 = vld [vmem:[%s9 + $0x3c8] sm:$0xff]
    %v2954 = vld [vmem:[%s9 + $0x3d0] sm:$0xff]
    %v2955 = vld [vmem:[%s9 + $0x3d8] sm:$0xff]
    %v2956 = vld [vmem:[%s9 + $0x3e0] sm:$0xff]
    %v2957 = vld [vmem:[%s9 + $0x3e8] sm:$0xff]
    %v2958 = vld [vmem:[%s9 + $0x3f0] sm:$0xff]
    %v2959 = vld [vmem:[%s9 + $0x3f8] sm:$0xff]
    %v2960 = vld [vmem:[%s9 + $0x400] sm:$0xff]
    %v2961 = vld [vmem:[%s9 + $0x408] sm:$0xff]
    %v2962 = vld [vmem:[%s9 + $0x410] sm:$0xff]
    %v2963 = vld [vmem:[%s9 + $0x418] sm:$0xff]
    %v2964 = vld [vmem:[%s9 + $0x420] sm:$0xff]
    %v2965 = vld [vmem:[%s9 + $0x428] sm:$0xff]
    %v2966 = vld [vmem:[%s9 + $0x430] sm:$0xff]
    %v2967 = vld [vmem:[%s9 + $0x438] sm:$0xff]
    %v2968 = vld [vmem:[%s9 + $0x440] sm:$0xff]
    %v2969 = vld [vmem:[%s9 + $0x448] sm:$0xff]
    %v2970 = vld [vmem:[%s9 + $0x450] sm:$0xff]
    %v2971 = vld [vmem:[%s9 + $0x458] sm:$0xff]
    %v2972 = vld [vmem:[%s9 + $0x460] sm:$0xff]
    %v2973 = vld [vmem:[%s9 + $0x468] sm:$0xff]
    %v2974 = vld [vmem:[%s9 + $0x470] sm:$0xff]
    %v2975 = vld [vmem:[%s9 + $0x478] sm:$0xff]
    %v2976 = vld [vmem:[%s9 + $0x480] sm:$0xff]
    %v2977 = vld [vmem:[%s9 + $0x488] sm:$0xff]
    %v2978 = vld [vmem:[%s9 + $0x490] sm:$0xff]
    %v2979 = vld [vmem:[%s9 + $0x498] sm:$0xff]
    %v2980 = vld [vmem:[%s9 + $0x4a0] sm:$0xff]
    %v2981 = vld [vmem:[%s9 + $0x4a8] sm:$0xff]
    %v2982 = vld [vmem:[%s9 + $0x4b0] sm:$0xff]
    %v2983 = vld [vmem:[%s9 + $0x4b8] sm:$0xff]
    %v2984 = vld [vmem:[%s9 + $0x4c0] sm:$0xff]
    %v2985 = vld [vmem:[%s9 + $0x4c8] sm:$0xff]
    %v2986 = vld [vmem:[%s9 + $0x4d0] sm:$0xff]
    %v2987 = vld [vmem:[%s9 + $0x4d8] sm:$0xff]
    %v2988 = vld [vmem:[%s9 + $0x4e0] sm:$0xff]
    %v2989 = vld [vmem:[%s9 + $0x4e8] sm:$0xff]
    %v2990 = vld [vmem:[%s9 + $0x4f0] sm:$0xff]
    %v2991 = vld [vmem:[%s9 + $0x4f8] sm:$0xff]
    %v2992 = vld [vmem:[%s9 + $0x500] sm:$0xff]
    %v2993 = vld [vmem:[%s9 + $0x508] sm:$0xff]
    %v2994 = vld [vmem:[%s9 + $0x510] sm:$0xff]
    %v2995 = vld [vmem:[%s9 + $0x518] sm:$0xff]
    %v2996 = vld [vmem:[%s9 + $0x520] sm:$0xff]
    %v2997 = vld [vmem:[%s9 + $0x528] sm:$0xff]
    %v2998 = vld [vmem:[%s9 + $0x530] sm:$0xff]
    %v2999 = vld [vmem:[%s9 + $0x538] sm:$0xff]
    %v3000 = vld [vmem:[%s9 + $0x540] sm:$0xff]
    %v3001 = vld [vmem:[%s9 + $0x548] sm:$0xff]
    %v3002 = vld [vmem:[%s9 + $0x550] sm:$0xff]
    %v3003 = vld [vmem:[%s9 + $0x558] sm:$0xff]
    %v3004 = vld [vmem:[%s9 + $0x560] sm:$0xff]
    %v3005 = vld [vmem:[%s9 + $0x568] sm:$0xff]
    %v3006 = vld [vmem:[%s9 + $0x570] sm:$0xff]
    %v3007 = vld [vmem:[%s9 + $0x578] sm:$0xff]
    %v3008 = vld [vmem:[%s9 + $0x580] sm:$0xff]
    %v3009 = vld [vmem:[%s9 + $0x588] sm:$0xff]
    %v3010 = vld [vmem:[%s9 + $0x590] sm:$0xff]
    %v3011 = vld [vmem:[%s9 + $0x598] sm:$0xff]
    %v3012 = vld [vmem:[%s9 + $0x5a0] sm:$0xff]
    %v3013 = vld [vmem:[%s9 + $0x5a8] sm:$0xff]
    %v3014 = vld [vmem:[%s9 + $0x5b0] sm:$0xff]
    %v3015 = vld [vmem:[%s9 + $0x5b8] sm:$0xff]
    %v3016 = vld [vmem:[%s9 + $0x5c0] sm:$0xff]
    %v3017 = vld [vmem:[%s9 + $0x5c8] sm:$0xff]
    %v3018 = vld [vmem:[%s9 + $0x5d0] sm:$0xff]
    %v3019 = vld [vmem:[%s9 + $0x5d8] sm:$0xff]
    %v3020 = vld [vmem:[%s9 + $0x5e0] sm:$0xff]
    %v3021 = vld [vmem:[%s9 + $0x5e8] sm:$0xff]
    %v3022 = vld [vmem:[%s9 + $0x5f0] sm:$0xff]
    %v3023 = vld [vmem:[%s9 + $0x5f8] sm:$0xff]
    %v3024 = vld [vmem:[%s9 + $0x600] sm:$0xff]
    %v3025 = vld [vmem:[%s9 + $0x608] sm:$0xff]
    %v3026 = vld [vmem:[%s9 + $0x610] sm:$0xff]
    %v3027 = vld [vmem:[%s9 + $0x618] sm:$0xff]
    %v3028 = vld [vmem:[%s9 + $0x620] sm:$0xff]
    %v3029 = vld [vmem:[%s9 + $0x628] sm:$0xff]
    %v3030 = vld [vmem:[%s9 + $0x630] sm:$0xff]
    %v3031 = vld [vmem:[%s9 + $0x638] sm:$0xff]
    %v3032 = vld [vmem:[%s9 + $0x640] sm:$0xff]
    %v3033 = vld [vmem:[%s9 + $0x648] sm:$0xff]
    %v3034 = vld [vmem:[%s9 + $0x650] sm:$0xff]
    %v3035 = vld [vmem:[%s9 + $0x658] sm:$0xff]
    %v3036 = vld [vmem:[%s9 + $0x660] sm:$0xff]
    %v3037 = vld [vmem:[%s9 + $0x668] sm:$0xff]
    %v3038 = vld [vmem:[%s9 + $0x670] sm:$0xff]
    %v3039 = vld [vmem:[%s9 + $0x678] sm:$0xff]
    %v3040 = vld [vmem:[%s9 + $0x680] sm:$0xff]
    %v3041 = vld [vmem:[%s9 + $0x688] sm:$0xff]
    %v3042 = vld [vmem:[%s9 + $0x690] sm:$0xff]
    %v3043 = vld [vmem:[%s9 + $0x698] sm:$0xff]
    %v3044 = vld [vmem:[%s9 + $0x6a0] sm:$0xff]
    %v3045 = vld [vmem:[%s9 + $0x6a8] sm:$0xff]
    %v3046 = vld [vmem:[%s9 + $0x6b0] sm:$0xff]
    %v3047 = vld [vmem:[%s9 + $0x6b8] sm:$0xff]
    %v3048 = vld [vmem:[%s9 + $0x6c0] sm:$0xff]
    %v3049 = vld [vmem:[%s9 + $0x6c8] sm:$0xff]
    %v3050 = vld [vmem:[%s9 + $0x6d0] sm:$0xff]
    %v3051 = vld [vmem:[%s9 + $0x6d8] sm:$0xff]
    %v3052 = vld [vmem:[%s9 + $0x6e0] sm:$0xff]
    %v3053 = vld [vmem:[%s9 + $0x6e8] sm:$0xff]
    %v3054 = vld [vmem:[%s9 + $0x6f0] sm:$0xff]
    %v3055 = vld [vmem:[%s9 + $0x6f8] sm:$0xff]
    %v3056 = vld [vmem:[%s9 + $0x700] sm:$0xff]
    %v3057 = vld [vmem:[%s9 + $0x708] sm:$0xff]
    %v3058 = vld [vmem:[%s9 + $0x710] sm:$0xff]
    %v3059 = vld [vmem:[%s9 + $0x718] sm:$0xff]
    %v3060 = vld [vmem:[%s9 + $0x720] sm:$0xff]
    %v3061 = vld [vmem:[%s9 + $0x728] sm:$0xff]
    %v3062 = vld [vmem:[%s9 + $0x730] sm:$0xff]
    %v3063 = vld [vmem:[%s9 + $0x738] sm:$0xff]
    %v3064 = vld [vmem:[%s9 + $0x740] sm:$0xff]
    %v3065 = vld [vmem:[%s9 + $0x748] sm:$0xff]
    %v3066 = vld [vmem:[%s9 + $0x750] sm:$0xff]
    %v3067 = vld [vmem:[%s9 + $0x758] sm:$0xff]
    %v3068 = vld [vmem:[%s9 + $0x760] sm:$0xff]
    %v3069 = vld [vmem:[%s9 + $0x768] sm:$0xff]
    %v3070 = vld [vmem:[%s9 + $0x770] sm:$0xff]
    %v3071 = vld [vmem:[%s9 + $0x778] sm:$0xff]
    %v3072 = vld [vmem:[%s9 + $0x780] sm:$0xff]
    %v3073 = vld [vmem:[%s9 + $0x788] sm:$0xff]
    %v3074 = vld [vmem:[%s9 + $0x790] sm:$0xff]
    %v3075 = vld [vmem:[%s9 + $0x798] sm:$0xff]
    %v3076 = vld [vmem:[%s9 + $0x7a0] sm:$0xff]
    %v3077 = vld [vmem:[%s9 + $0x7a8] sm:$0xff]
    %v3078 = vld [vmem:[%s9 + $0x7b0] sm:$0xff]
    %v3079 = vld [vmem:[%s9 + $0x7b8] sm:$0xff]
    %v3080 = vld [vmem:[%s9 + $0x7c0] sm:$0xff]
    %v3081 = vld [vmem:[%s9 + $0x7c8] sm:$0xff]
    %v3082 = vld [vmem:[%s9 + $0x7d0] sm:$0xff]
    %v3083 = vld [vmem:[%s9 + $0x7d8] sm:$0xff]
    %v3084 = vld [vmem:[%s9 + $0x7e0] sm:$0xff]
    %v3085 = vld [vmem:[%s9 + $0x7e8] sm:$0xff]
    %v3086 = vld [vmem:[%s9 + $0x7f0] sm:$0xff]
    %v3087 = vld [vmem:[%s9 + $0x7f8] sm:$0xff]
    %v3088 = vld [vmem:[%s10] sm:$0xf]
    %v3090 = vlaneseq
    %v3091 = vshrl.u32 %v3090, 7
    %v3092 = vsub.s32 0, %v3091
    %v3093 = vrot.slane %v3088, %v3092
    %v3094 = vlaneseq
    %v3095 = vshrl.u32 %v3094, 7
    %v3096 = vsub.s32 1, %v3095
    %v3097 = vrot.slane %v3088, %v3096
    %v3098 = vlaneseq
    %v3099 = vshrl.u32 %v3098, 7
    %v3100 = vsub.s32 2, %v3099
    %v3101 = vrot.slane %v3088, %v3100
    %v3102 = vlaneseq
    %v3103 = vshrl.u32 %v3102, 7
    %v3104 = vsub.s32 3, %v3103
    %v3105 = vrot.slane %v3088, %v3104
    %v3366 = vunpack.c.l.b16 %v2832
    %v3367 = vunpack.c.h.b16 %v2832
    %v3368 = vunpack.c.l.b16 %v2833
    %v3369 = vunpack.c.h.b16 %v2833
    %v3370 = vunpack.c.l.b16 %v2834
    %v3371 = vunpack.c.h.b16 %v2834
    %v3372 = vunpack.c.l.b16 %v2835
    %v3373 = vunpack.c.h.b16 %v2835
    %v3374 = vunpack.c.l.b16 %v2836
    %v3375 = vunpack.c.h.b16 %v2836
    %v3376 = vunpack.c.l.b16 %v2837
    %v3377 = vunpack.c.h.b16 %v2837
    %v3378 = vunpack.c.l.b16 %v2838
    %v3379 = vunpack.c.h.b16 %v2838
    %v3380 = vunpack.c.l.b16 %v2839
    %v3381 = vunpack.c.h.b16 %v2839
    %v3382 = vunpack.c.l.b16 %v2840
    %v3383 = vunpack.c.h.b16 %v2840
    %v3384 = vunpack.c.l.b16 %v2841
    %v3385 = vunpack.c.h.b16 %v2841
    %v3386 = vunpack.c.l.b16 %v2842
    %v3387 = vunpack.c.h.b16 %v2842
    %v3388 = vunpack.c.l.b16 %v2843
    %v3389 = vunpack.c.h.b16 %v2843
    %v3390 = vunpack.c.l.b16 %v2844
    %v3391 = vunpack.c.h.b16 %v2844
    %v3392 = vunpack.c.l.b16 %v2845
    %v3393 = vunpack.c.h.b16 %v2845
    %v3394 = vunpack.c.l.b16 %v2846
    %v3395 = vunpack.c.h.b16 %v2846
    %v3396 = vunpack.c.l.b16 %v2847
    %v3397 = vunpack.c.h.b16 %v2847
    %v3398 = vunpack.c.l.b16 %v2848
    %v3399 = vunpack.c.h.b16 %v2848
    %v3400 = vunpack.c.l.b16 %v2849
    %v3401 = vunpack.c.h.b16 %v2849
    %v3402 = vunpack.c.l.b16 %v2850
    %v3403 = vunpack.c.h.b16 %v2850
    %v3404 = vunpack.c.l.b16 %v2851
    %v3405 = vunpack.c.h.b16 %v2851
    %v3406 = vunpack.c.l.b16 %v2852
    %v3407 = vunpack.c.h.b16 %v2852
    %v3408 = vunpack.c.l.b16 %v2853
    %v3409 = vunpack.c.h.b16 %v2853
    %v3410 = vunpack.c.l.b16 %v2854
    %v3411 = vunpack.c.h.b16 %v2854
    %v3412 = vunpack.c.l.b16 %v2855
    %v3413 = vunpack.c.h.b16 %v2855
    %v3414 = vunpack.c.l.b16 %v2856
    %v3415 = vunpack.c.h.b16 %v2856
    %v3416 = vunpack.c.l.b16 %v2857
    %v3417 = vunpack.c.h.b16 %v2857
    %v3418 = vunpack.c.l.b16 %v2858
    %v3419 = vunpack.c.h.b16 %v2858
    %v3420 = vunpack.c.l.b16 %v2859
    %v3421 = vunpack.c.h.b16 %v2859
    %v3422 = vunpack.c.l.b16 %v2860
    %v3423 = vunpack.c.h.b16 %v2860
    %v3424 = vunpack.c.l.b16 %v2861
    %v3425 = vunpack.c.h.b16 %v2861
    %v3426 = vunpack.c.l.b16 %v2862
    %v3427 = vunpack.c.h.b16 %v2862
    %v3428 = vunpack.c.l.b16 %v2863
    %v3429 = vunpack.c.h.b16 %v2863
    %v3430 = vunpack.c.l.b16 %v2864
    %v3431 = vunpack.c.h.b16 %v2864
    %v3432 = vunpack.c.l.b16 %v2865
    %v3433 = vunpack.c.h.b16 %v2865
    %v3434 = vunpack.c.l.b16 %v2866
    %v3435 = vunpack.c.h.b16 %v2866
    %v3436 = vunpack.c.l.b16 %v2867
    %v3437 = vunpack.c.h.b16 %v2867
    %v3438 = vunpack.c.l.b16 %v2868
    %v3439 = vunpack.c.h.b16 %v2868
    %v3440 = vunpack.c.l.b16 %v2869
    %v3441 = vunpack.c.h.b16 %v2869
    %v3442 = vunpack.c.l.b16 %v2870
    %v3443 = vunpack.c.h.b16 %v2870
    %v3444 = vunpack.c.l.b16 %v2871
    %v3445 = vunpack.c.h.b16 %v2871
    %v3446 = vunpack.c.l.b16 %v2872
    %v3447 = vunpack.c.h.b16 %v2872
    %v3448 = vunpack.c.l.b16 %v2873
    %v3449 = vunpack.c.h.b16 %v2873
    %v3450 = vunpack.c.l.b16 %v2874
    %v3451 = vunpack.c.h.b16 %v2874
    %v3452 = vunpack.c.l.b16 %v2875
    %v3453 = vunpack.c.h.b16 %v2875
    %v3454 = vunpack.c.l.b16 %v2876
    %v3455 = vunpack.c.h.b16 %v2876
    %v3456 = vunpack.c.l.b16 %v2877
    %v3457 = vunpack.c.h.b16 %v2877
    %v3458 = vunpack.c.l.b16 %v2878
    %v3459 = vunpack.c.h.b16 %v2878
    %v3460 = vunpack.c.l.b16 %v2879
    %v3461 = vunpack.c.h.b16 %v2879
    %v3462 = vunpack.c.l.b16 %v2880
    %v3463 = vunpack.c.h.b16 %v2880
    %v3464 = vunpack.c.l.b16 %v2881
    %v3465 = vunpack.c.h.b16 %v2881
    %v3466 = vunpack.c.l.b16 %v2882
    %v3467 = vunpack.c.h.b16 %v2882
    %v3468 = vunpack.c.l.b16 %v2883
    %v3469 = vunpack.c.h.b16 %v2883
    %v3470 = vunpack.c.l.b16 %v2884
    %v3471 = vunpack.c.h.b16 %v2884
    %v3472 = vunpack.c.l.b16 %v2885
    %v3473 = vunpack.c.h.b16 %v2885
    %v3474 = vunpack.c.l.b16 %v2886
    %v3475 = vunpack.c.h.b16 %v2886
    %v3476 = vunpack.c.l.b16 %v2887
    %v3477 = vunpack.c.h.b16 %v2887
    %v3478 = vunpack.c.l.b16 %v2888
    %v3479 = vunpack.c.h.b16 %v2888
    %v3480 = vunpack.c.l.b16 %v2889
    %v3481 = vunpack.c.h.b16 %v2889
    %v3482 = vunpack.c.l.b16 %v2890
    %v3483 = vunpack.c.h.b16 %v2890
    %v3484 = vunpack.c.l.b16 %v2891
    %v3485 = vunpack.c.h.b16 %v2891
    %v3486 = vunpack.c.l.b16 %v2892
    %v3487 = vunpack.c.h.b16 %v2892
    %v3488 = vunpack.c.l.b16 %v2893
    %v3489 = vunpack.c.h.b16 %v2893
    %v3490 = vunpack.c.l.b16 %v2894
    %v3491 = vunpack.c.h.b16 %v2894
    %v3492 = vunpack.c.l.b16 %v2895
    %v3493 = vunpack.c.h.b16 %v2895
    %v3494 = vunpack.c.l.b16 %v2896
    %v3495 = vunpack.c.h.b16 %v2896
    %v3496 = vunpack.c.l.b16 %v2897
    %v3497 = vunpack.c.h.b16 %v2897
    %v3498 = vunpack.c.l.b16 %v2898
    %v3499 = vunpack.c.h.b16 %v2898
    %v3500 = vunpack.c.l.b16 %v2899
    %v3501 = vunpack.c.h.b16 %v2899
    %v3502 = vunpack.c.l.b16 %v2900
    %v3503 = vunpack.c.h.b16 %v2900
    %v3504 = vunpack.c.l.b16 %v2901
    %v3505 = vunpack.c.h.b16 %v2901
    %v3506 = vunpack.c.l.b16 %v2902
    %v3507 = vunpack.c.h.b16 %v2902
    %v3508 = vunpack.c.l.b16 %v2903
    %v3509 = vunpack.c.h.b16 %v2903
    %v3510 = vunpack.c.l.b16 %v2904
    %v3511 = vunpack.c.h.b16 %v2904
    %v3512 = vunpack.c.l.b16 %v2905
    %v3513 = vunpack.c.h.b16 %v2905
    %v3514 = vunpack.c.l.b16 %v2906
    %v3515 = vunpack.c.h.b16 %v2906
    %v3516 = vunpack.c.l.b16 %v2907
    %v3517 = vunpack.c.h.b16 %v2907
    %v3518 = vunpack.c.l.b16 %v2908
    %v3519 = vunpack.c.h.b16 %v2908
    %v3520 = vunpack.c.l.b16 %v2909
    %v3521 = vunpack.c.h.b16 %v2909
    %v3522 = vunpack.c.l.b16 %v2910
    %v3523 = vunpack.c.h.b16 %v2910
    %v3524 = vunpack.c.l.b16 %v2911
    %v3525 = vunpack.c.h.b16 %v2911
    %v3526 = vunpack.c.l.b16 %v2912
    %v3527 = vunpack.c.h.b16 %v2912
    %v3528 = vunpack.c.l.b16 %v2913
    %v3529 = vunpack.c.h.b16 %v2913
    %v3530 = vunpack.c.l.b16 %v2914
    %v3531 = vunpack.c.h.b16 %v2914
    %v3532 = vunpack.c.l.b16 %v2915
    %v3533 = vunpack.c.h.b16 %v2915
    %v3534 = vunpack.c.l.b16 %v2916
    %v3535 = vunpack.c.h.b16 %v2916
    %v3536 = vunpack.c.l.b16 %v2917
    %v3537 = vunpack.c.h.b16 %v2917
    %v3538 = vunpack.c.l.b16 %v2918
    %v3539 = vunpack.c.h.b16 %v2918
    %v3540 = vunpack.c.l.b16 %v2919
    %v3541 = vunpack.c.h.b16 %v2919
    %v3542 = vunpack.c.l.b16 %v2920
    %v3543 = vunpack.c.h.b16 %v2920
    %v3544 = vunpack.c.l.b16 %v2921
    %v3545 = vunpack.c.h.b16 %v2921
    %v3546 = vunpack.c.l.b16 %v2922
    %v3547 = vunpack.c.h.b16 %v2922
    %v3548 = vunpack.c.l.b16 %v2923
    %v3549 = vunpack.c.h.b16 %v2923
    %v3550 = vunpack.c.l.b16 %v2924
    %v3551 = vunpack.c.h.b16 %v2924
    %v3552 = vunpack.c.l.b16 %v2925
    %v3553 = vunpack.c.h.b16 %v2925
    %v3554 = vunpack.c.l.b16 %v2926
    %v3555 = vunpack.c.h.b16 %v2926
    %v3556 = vunpack.c.l.b16 %v2927
    %v3557 = vunpack.c.h.b16 %v2927
    %v3558 = vunpack.c.l.b16 %v2928
    %v3559 = vunpack.c.h.b16 %v2928
    %v3560 = vunpack.c.l.b16 %v2929
    %v3561 = vunpack.c.h.b16 %v2929
    %v3562 = vunpack.c.l.b16 %v2930
    %v3563 = vunpack.c.h.b16 %v2930
    %v3564 = vunpack.c.l.b16 %v2931
    %v3565 = vunpack.c.h.b16 %v2931
    %v3566 = vunpack.c.l.b16 %v2932
    %v3567 = vunpack.c.h.b16 %v2932
    %v3568 = vunpack.c.l.b16 %v2933
    %v3569 = vunpack.c.h.b16 %v2933
    %v3570 = vunpack.c.l.b16 %v2934
    %v3571 = vunpack.c.h.b16 %v2934
    %v3572 = vunpack.c.l.b16 %v2935
    %v3573 = vunpack.c.h.b16 %v2935
    %v3574 = vunpack.c.l.b16 %v2936
    %v3575 = vunpack.c.h.b16 %v2936
    %v3576 = vunpack.c.l.b16 %v2937
    %v3577 = vunpack.c.h.b16 %v2937
    %v3578 = vunpack.c.l.b16 %v2938
    %v3579 = vunpack.c.h.b16 %v2938
    %v3580 = vunpack.c.l.b16 %v2939
    %v3581 = vunpack.c.h.b16 %v2939
    %v3582 = vunpack.c.l.b16 %v2940
    %v3583 = vunpack.c.h.b16 %v2940
    %v3584 = vunpack.c.l.b16 %v2941
    %v3585 = vunpack.c.h.b16 %v2941
    %v3586 = vunpack.c.l.b16 %v2942
    %v3587 = vunpack.c.h.b16 %v2942
    %v3588 = vunpack.c.l.b16 %v2943
    %v3589 = vunpack.c.h.b16 %v2943
    %v3590 = vunpack.c.l.b16 %v2944
    %v3591 = vunpack.c.h.b16 %v2944
    %v3592 = vunpack.c.l.b16 %v2945
    %v3593 = vunpack.c.h.b16 %v2945
    %v3594 = vunpack.c.l.b16 %v2946
    %v3595 = vunpack.c.h.b16 %v2946
    %v3596 = vunpack.c.l.b16 %v2947
    %v3597 = vunpack.c.h.b16 %v2947
    %v3598 = vunpack.c.l.b16 %v2948
    %v3599 = vunpack.c.h.b16 %v2948
    %v3600 = vunpack.c.l.b16 %v2949
    %v3601 = vunpack.c.h.b16 %v2949
    %v3602 = vunpack.c.l.b16 %v2950
    %v3603 = vunpack.c.h.b16 %v2950
    %v3604 = vunpack.c.l.b16 %v2951
    %v3605 = vunpack.c.h.b16 %v2951
    %v3606 = vunpack.c.l.b16 %v2952
    %v3607 = vunpack.c.h.b16 %v2952
    %v3608 = vunpack.c.l.b16 %v2953
    %v3609 = vunpack.c.h.b16 %v2953
    %v3610 = vunpack.c.l.b16 %v2954
    %v3611 = vunpack.c.h.b16 %v2954
    %v3612 = vunpack.c.l.b16 %v2955
    %v3613 = vunpack.c.h.b16 %v2955
    %v3614 = vunpack.c.l.b16 %v2956
    %v3615 = vunpack.c.h.b16 %v2956
    %v3616 = vunpack.c.l.b16 %v2957
    %v3617 = vunpack.c.h.b16 %v2957
    %v3618 = vunpack.c.l.b16 %v2958
    %v3619 = vunpack.c.h.b16 %v2958
    %v3620 = vunpack.c.l.b16 %v2959
    %v3621 = vunpack.c.h.b16 %v2959
    %v3622 = vunpack.c.l.b16 %v2960
    %v3623 = vunpack.c.h.b16 %v2960
    %v3624 = vunpack.c.l.b16 %v2961
    %v3625 = vunpack.c.h.b16 %v2961
    %v3626 = vunpack.c.l.b16 %v2962
    %v3627 = vunpack.c.h.b16 %v2962
    %v3628 = vunpack.c.l.b16 %v2963
    %v3629 = vunpack.c.h.b16 %v2963
    %v3630 = vunpack.c.l.b16 %v2964
    %v3631 = vunpack.c.h.b16 %v2964
    %v3632 = vunpack.c.l.b16 %v2965
    %v3633 = vunpack.c.h.b16 %v2965
    %v3634 = vunpack.c.l.b16 %v2966
    %v3635 = vunpack.c.h.b16 %v2966
    %v3636 = vunpack.c.l.b16 %v2967
    %v3637 = vunpack.c.h.b16 %v2967
    %v3638 = vunpack.c.l.b16 %v2968
    %v3639 = vunpack.c.h.b16 %v2968
    %v3640 = vunpack.c.l.b16 %v2969
    %v3641 = vunpack.c.h.b16 %v2969
    %v3642 = vunpack.c.l.b16 %v2970
    %v3643 = vunpack.c.h.b16 %v2970
    %v3644 = vunpack.c.l.b16 %v2971
    %v3645 = vunpack.c.h.b16 %v2971
    %v3646 = vunpack.c.l.b16 %v2972
    %v3647 = vunpack.c.h.b16 %v2972
    %v3648 = vunpack.c.l.b16 %v2973
    %v3649 = vunpack.c.h.b16 %v2973
    %v3650 = vunpack.c.l.b16 %v2974
    %v3651 = vunpack.c.h.b16 %v2974
    %v3652 = vunpack.c.l.b16 %v2975
    %v3653 = vunpack.c.h.b16 %v2975
    %v3654 = vunpack.c.l.b16 %v2976
    %v3655 = vunpack.c.h.b16 %v2976
    %v3656 = vunpack.c.l.b16 %v2977
    %v3657 = vunpack.c.h.b16 %v2977
    %v3658 = vunpack.c.l.b16 %v2978
    %v3659 = vunpack.c.h.b16 %v2978
    %v3660 = vunpack.c.l.b16 %v2979
    %v3661 = vunpack.c.h.b16 %v2979
    %v3662 = vunpack.c.l.b16 %v2980
    %v3663 = vunpack.c.h.b16 %v2980
    %v3664 = vunpack.c.l.b16 %v2981
    %v3665 = vunpack.c.h.b16 %v2981
    %v3666 = vunpack.c.l.b16 %v2982
    %v3667 = vunpack.c.h.b16 %v2982
    %v3668 = vunpack.c.l.b16 %v2983
    %v3669 = vunpack.c.h.b16 %v2983
    %v3670 = vunpack.c.l.b16 %v2984
    %v3671 = vunpack.c.h.b16 %v2984
    %v3672 = vunpack.c.l.b16 %v2985
    %v3673 = vunpack.c.h.b16 %v2985
    %v3674 = vunpack.c.l.b16 %v2986
    %v3675 = vunpack.c.h.b16 %v2986
    %v3676 = vunpack.c.l.b16 %v2987
    %v3677 = vunpack.c.h.b16 %v2987
    %v3678 = vunpack.c.l.b16 %v2988
    %v3679 = vunpack.c.h.b16 %v2988
    %v3680 = vunpack.c.l.b16 %v2989
    %v3681 = vunpack.c.h.b16 %v2989
    %v3682 = vunpack.c.l.b16 %v2990
    %v3683 = vunpack.c.h.b16 %v2990
    %v3684 = vunpack.c.l.b16 %v2991
    %v3685 = vunpack.c.h.b16 %v2991
    %v3686 = vunpack.c.l.b16 %v2992
    %v3687 = vunpack.c.h.b16 %v2992
    %v3688 = vunpack.c.l.b16 %v2993
    %v3689 = vunpack.c.h.b16 %v2993
    %v3690 = vunpack.c.l.b16 %v2994
    %v3691 = vunpack.c.h.b16 %v2994
    %v3692 = vunpack.c.l.b16 %v2995
    %v3693 = vunpack.c.h.b16 %v2995
    %v3694 = vunpack.c.l.b16 %v2996
    %v3695 = vunpack.c.h.b16 %v2996
    %v3696 = vunpack.c.l.b16 %v2997
    %v3697 = vunpack.c.h.b16 %v2997
    %v3698 = vunpack.c.l.b16 %v2998
    %v3699 = vunpack.c.h.b16 %v2998
    %v3700 = vunpack.c.l.b16 %v2999
    %v3701 = vunpack.c.h.b16 %v2999
    %v3702 = vunpack.c.l.b16 %v3000
    %v3703 = vunpack.c.h.b16 %v3000
    %v3704 = vunpack.c.l.b16 %v3001
    %v3705 = vunpack.c.h.b16 %v3001
    %v3706 = vunpack.c.l.b16 %v3002
    %v3707 = vunpack.c.h.b16 %v3002
    %v3708 = vunpack.c.l.b16 %v3003
    %v3709 = vunpack.c.h.b16 %v3003
    %v3710 = vunpack.c.l.b16 %v3004
    %v3711 = vunpack.c.h.b16 %v3004
    %v3712 = vunpack.c.l.b16 %v3005
    %v3713 = vunpack.c.h.b16 %v3005
    %v3714 = vunpack.c.l.b16 %v3006
    %v3715 = vunpack.c.h.b16 %v3006
    %v3716 = vunpack.c.l.b16 %v3007
    %v3717 = vunpack.c.h.b16 %v3007
    %v3718 = vunpack.c.l.b16 %v3008
    %v3719 = vunpack.c.h.b16 %v3008
    %v3720 = vunpack.c.l.b16 %v3009
    %v3721 = vunpack.c.h.b16 %v3009
    %v3722 = vunpack.c.l.b16 %v3010
    %v3723 = vunpack.c.h.b16 %v3010
    %v3724 = vunpack.c.l.b16 %v3011
    %v3725 = vunpack.c.h.b16 %v3011
    %v3726 = vunpack.c.l.b16 %v3012
    %v3727 = vunpack.c.h.b16 %v3012
    %v3728 = vunpack.c.l.b16 %v3013
    %v3729 = vunpack.c.h.b16 %v3013
    %v3730 = vunpack.c.l.b16 %v3014
    %v3731 = vunpack.c.h.b16 %v3014
    %v3732 = vunpack.c.l.b16 %v3015
    %v3733 = vunpack.c.h.b16 %v3015
    %v3734 = vunpack.c.l.b16 %v3016
    %v3735 = vunpack.c.h.b16 %v3016
    %v3736 = vunpack.c.l.b16 %v3017
    %v3737 = vunpack.c.h.b16 %v3017
    %v3738 = vunpack.c.l.b16 %v3018
    %v3739 = vunpack.c.h.b16 %v3018
    %v3740 = vunpack.c.l.b16 %v3019
    %v3741 = vunpack.c.h.b16 %v3019
    %v3742 = vunpack.c.l.b16 %v3020
    %v3743 = vunpack.c.h.b16 %v3020
    %v3744 = vunpack.c.l.b16 %v3021
    %v3745 = vunpack.c.h.b16 %v3021
    %v3746 = vunpack.c.l.b16 %v3022
    %v3747 = vunpack.c.h.b16 %v3022
    %v3748 = vunpack.c.l.b16 %v3023
    %v3749 = vunpack.c.h.b16 %v3023
    %v3750 = vunpack.c.l.b16 %v3024
    %v3751 = vunpack.c.h.b16 %v3024
    %v3752 = vunpack.c.l.b16 %v3025
    %v3753 = vunpack.c.h.b16 %v3025
    %v3754 = vunpack.c.l.b16 %v3026
    %v3755 = vunpack.c.h.b16 %v3026
    %v3756 = vunpack.c.l.b16 %v3027
    %v3757 = vunpack.c.h.b16 %v3027
    %v3758 = vunpack.c.l.b16 %v3028
    %v3759 = vunpack.c.h.b16 %v3028
    %v3760 = vunpack.c.l.b16 %v3029
    %v3761 = vunpack.c.h.b16 %v3029
    %v3762 = vunpack.c.l.b16 %v3030
    %v3763 = vunpack.c.h.b16 %v3030
    %v3764 = vunpack.c.l.b16 %v3031
    %v3765 = vunpack.c.h.b16 %v3031
    %v3766 = vunpack.c.l.b16 %v3032
    %v3767 = vunpack.c.h.b16 %v3032
    %v3768 = vunpack.c.l.b16 %v3033
    %v3769 = vunpack.c.h.b16 %v3033
    %v3770 = vunpack.c.l.b16 %v3034
    %v3771 = vunpack.c.h.b16 %v3034
    %v3772 = vunpack.c.l.b16 %v3035
    %v3773 = vunpack.c.h.b16 %v3035
    %v3774 = vunpack.c.l.b16 %v3036
    %v3775 = vunpack.c.h.b16 %v3036
    %v3776 = vunpack.c.l.b16 %v3037
    %v3777 = vunpack.c.h.b16 %v3037
    %v3778 = vunpack.c.l.b16 %v3038
    %v3779 = vunpack.c.h.b16 %v3038
    %v3780 = vunpack.c.l.b16 %v3039
    %v3781 = vunpack.c.h.b16 %v3039
    %v3782 = vunpack.c.l.b16 %v3040
    %v3783 = vunpack.c.h.b16 %v3040
    %v3784 = vunpack.c.l.b16 %v3041
    %v3785 = vunpack.c.h.b16 %v3041
    %v3786 = vunpack.c.l.b16 %v3042
    %v3787 = vunpack.c.h.b16 %v3042
    %v3788 = vunpack.c.l.b16 %v3043
    %v3789 = vunpack.c.h.b16 %v3043
    %v3790 = vunpack.c.l.b16 %v3044
    %v3791 = vunpack.c.h.b16 %v3044
    %v3792 = vunpack.c.l.b16 %v3045
    %v3793 = vunpack.c.h.b16 %v3045
    %v3794 = vunpack.c.l.b16 %v3046
    %v3795 = vunpack.c.h.b16 %v3046
    %v3796 = vunpack.c.l.b16 %v3047
    %v3797 = vunpack.c.h.b16 %v3047
    %v3798 = vunpack.c.l.b16 %v3048
    %v3799 = vunpack.c.h.b16 %v3048
    %v3800 = vunpack.c.l.b16 %v3049
    %v3801 = vunpack.c.h.b16 %v3049
    %v3802 = vunpack.c.l.b16 %v3050
    %v3803 = vunpack.c.h.b16 %v3050
    %v3804 = vunpack.c.l.b16 %v3051
    %v3805 = vunpack.c.h.b16 %v3051
    %v3806 = vunpack.c.l.b16 %v3052
    %v3807 = vunpack.c.h.b16 %v3052
    %v3808 = vunpack.c.l.b16 %v3053
    %v3809 = vunpack.c.h.b16 %v3053
    %v3810 = vunpack.c.l.b16 %v3054
    %v3811 = vunpack.c.h.b16 %v3054
    %v3812 = vunpack.c.l.b16 %v3055
    %v3813 = vunpack.c.h.b16 %v3055
    %v3814 = vunpack.c.l.b16 %v3056
    %v3815 = vunpack.c.h.b16 %v3056
    %v3816 = vunpack.c.l.b16 %v3057
    %v3817 = vunpack.c.h.b16 %v3057
    %v3818 = vunpack.c.l.b16 %v3058
    %v3819 = vunpack.c.h.b16 %v3058
    %v3820 = vunpack.c.l.b16 %v3059
    %v3821 = vunpack.c.h.b16 %v3059
    %v3822 = vunpack.c.l.b16 %v3060
    %v3823 = vunpack.c.h.b16 %v3060
    %v3824 = vunpack.c.l.b16 %v3061
    %v3825 = vunpack.c.h.b16 %v3061
    %v3826 = vunpack.c.l.b16 %v3062
    %v3827 = vunpack.c.h.b16 %v3062
    %v3828 = vunpack.c.l.b16 %v3063
    %v3829 = vunpack.c.h.b16 %v3063
    %v3830 = vunpack.c.l.b16 %v3064
    %v3831 = vunpack.c.h.b16 %v3064
    %v3832 = vunpack.c.l.b16 %v3065
    %v3833 = vunpack.c.h.b16 %v3065
    %v3834 = vunpack.c.l.b16 %v3066
    %v3835 = vunpack.c.h.b16 %v3066
    %v3836 = vunpack.c.l.b16 %v3067
    %v3837 = vunpack.c.h.b16 %v3067
    %v3838 = vunpack.c.l.b16 %v3068
    %v3839 = vunpack.c.h.b16 %v3068
    %v3840 = vunpack.c.l.b16 %v3069
    %v3841 = vunpack.c.h.b16 %v3069
    %v3842 = vunpack.c.l.b16 %v3070
    %v3843 = vunpack.c.h.b16 %v3070
    %v3844 = vunpack.c.l.b16 %v3071
    %v3845 = vunpack.c.h.b16 %v3071
    %v3846 = vunpack.c.l.b16 %v3072
    %v3847 = vunpack.c.h.b16 %v3072
    %v3848 = vunpack.c.l.b16 %v3073
    %v3849 = vunpack.c.h.b16 %v3073
    %v3850 = vunpack.c.l.b16 %v3074
    %v3851 = vunpack.c.h.b16 %v3074
    %v3852 = vunpack.c.l.b16 %v3075
    %v3853 = vunpack.c.h.b16 %v3075
    %v3854 = vunpack.c.l.b16 %v3076
    %v3855 = vunpack.c.h.b16 %v3076
    %v3856 = vunpack.c.l.b16 %v3077
    %v3857 = vunpack.c.h.b16 %v3077
    %v3858 = vunpack.c.l.b16 %v3078
    %v3859 = vunpack.c.h.b16 %v3078
    %v3860 = vunpack.c.l.b16 %v3079
    %v3861 = vunpack.c.h.b16 %v3079
    %v3862 = vunpack.c.l.b16 %v3080
    %v3863 = vunpack.c.h.b16 %v3080
    %v3864 = vunpack.c.l.b16 %v3081
    %v3865 = vunpack.c.h.b16 %v3081
    %v3866 = vunpack.c.l.b16 %v3082
    %v3867 = vunpack.c.h.b16 %v3082
    %v3868 = vunpack.c.l.b16 %v3083
    %v3869 = vunpack.c.h.b16 %v3083
    %v3870 = vunpack.c.l.b16 %v3084
    %v3871 = vunpack.c.h.b16 %v3084
    %v3872 = vunpack.c.l.b16 %v3085
    %v3873 = vunpack.c.h.b16 %v3085
    %v3874 = vunpack.c.l.b16 %v3086
    %v3875 = vunpack.c.h.b16 %v3086
    %v3876 = vunpack.c.l.b16 %v3087
    %v3877 = vunpack.c.h.b16 %v3087
    %v3878 = vpack.c.b16 %v3370, %v3366
    %v3879 = vpack.c.b16 %v3371, %v3367
    %v3880 = vpack.c.b16 %v3372, %v3368
    %v3881 = vpack.c.b16 %v3373, %v3369
    %v3882 = vpack.c.b16 %v3378, %v3374
    %v3883 = vpack.c.b16 %v3379, %v3375
    %v3884 = vpack.c.b16 %v3380, %v3376
    %v3885 = vpack.c.b16 %v3381, %v3377
    %v3886 = vpack.c.b16 %v3386, %v3382
    %v3887 = vpack.c.b16 %v3387, %v3383
    %v3888 = vpack.c.b16 %v3388, %v3384
    %v3889 = vpack.c.b16 %v3389, %v3385
    %v3890 = vpack.c.b16 %v3394, %v3390
    %v3891 = vpack.c.b16 %v3395, %v3391
    %v3892 = vpack.c.b16 %v3396, %v3392
    %v3893 = vpack.c.b16 %v3397, %v3393
    %v3894 = vpack.c.b16 %v3402, %v3398
    %v3895 = vpack.c.b16 %v3403, %v3399
    %v3896 = vpack.c.b16 %v3404, %v3400
    %v3897 = vpack.c.b16 %v3405, %v3401
    %v3898 = vpack.c.b16 %v3410, %v3406
    %v3899 = vpack.c.b16 %v3411, %v3407
    %v3900 = vpack.c.b16 %v3412, %v3408
    %v3901 = vpack.c.b16 %v3413, %v3409
    %v3902 = vpack.c.b16 %v3418, %v3414
    %v3903 = vpack.c.b16 %v3419, %v3415
    %v3904 = vpack.c.b16 %v3420, %v3416
    %v3905 = vpack.c.b16 %v3421, %v3417
    %v3906 = vpack.c.b16 %v3426, %v3422
    %v3907 = vpack.c.b16 %v3427, %v3423
    %v3908 = vpack.c.b16 %v3428, %v3424
    %v3909 = vpack.c.b16 %v3429, %v3425
    %v3910 = vpack.c.b16 %v3434, %v3430
    %v3911 = vpack.c.b16 %v3435, %v3431
    %v3912 = vpack.c.b16 %v3436, %v3432
    %v3913 = vpack.c.b16 %v3437, %v3433
    %v3914 = vpack.c.b16 %v3442, %v3438
    %v3915 = vpack.c.b16 %v3443, %v3439
    %v3916 = vpack.c.b16 %v3444, %v3440
    %v3917 = vpack.c.b16 %v3445, %v3441
    %v3918 = vpack.c.b16 %v3450, %v3446
    %v3919 = vpack.c.b16 %v3451, %v3447
    %v3920 = vpack.c.b16 %v3452, %v3448
    %v3921 = vpack.c.b16 %v3453, %v3449
    %v3922 = vpack.c.b16 %v3458, %v3454
    %v3923 = vpack.c.b16 %v3459, %v3455
    %v3924 = vpack.c.b16 %v3460, %v3456
    %v3925 = vpack.c.b16 %v3461, %v3457
    %v3926 = vpack.c.b16 %v3466, %v3462
    %v3927 = vpack.c.b16 %v3467, %v3463
    %v3928 = vpack.c.b16 %v3468, %v3464
    %v3929 = vpack.c.b16 %v3469, %v3465
    %v3930 = vpack.c.b16 %v3474, %v3470
    %v3931 = vpack.c.b16 %v3475, %v3471
    %v3932 = vpack.c.b16 %v3476, %v3472
    %v3933 = vpack.c.b16 %v3477, %v3473
    %v3934 = vpack.c.b16 %v3482, %v3478
    %v3935 = vpack.c.b16 %v3483, %v3479
    %v3936 = vpack.c.b16 %v3484, %v3480
    %v3937 = vpack.c.b16 %v3485, %v3481
    %v3938 = vpack.c.b16 %v3490, %v3486
    %v3939 = vpack.c.b16 %v3491, %v3487
    %v3940 = vpack.c.b16 %v3492, %v3488
    %v3941 = vpack.c.b16 %v3493, %v3489
    %v3942 = vpack.c.b16 %v3498, %v3494
    %v3943 = vpack.c.b16 %v3499, %v3495
    %v3944 = vpack.c.b16 %v3500, %v3496
    %v3945 = vpack.c.b16 %v3501, %v3497
    %v3946 = vpack.c.b16 %v3506, %v3502
    %v3947 = vpack.c.b16 %v3507, %v3503
    %v3948 = vpack.c.b16 %v3508, %v3504
    %v3949 = vpack.c.b16 %v3509, %v3505
    %v3950 = vpack.c.b16 %v3514, %v3510
    %v3951 = vpack.c.b16 %v3515, %v3511
    %v3952 = vpack.c.b16 %v3516, %v3512
    %v3953 = vpack.c.b16 %v3517, %v3513
    %v3954 = vpack.c.b16 %v3522, %v3518
    %v3955 = vpack.c.b16 %v3523, %v3519
    %v3956 = vpack.c.b16 %v3524, %v3520
    %v3957 = vpack.c.b16 %v3525, %v3521
    %v3958 = vpack.c.b16 %v3530, %v3526
    %v3959 = vpack.c.b16 %v3531, %v3527
    %v3960 = vpack.c.b16 %v3532, %v3528
    %v3961 = vpack.c.b16 %v3533, %v3529
    %v3962 = vpack.c.b16 %v3538, %v3534
    %v3963 = vpack.c.b16 %v3539, %v3535
    %v3964 = vpack.c.b16 %v3540, %v3536
    %v3965 = vpack.c.b16 %v3541, %v3537
    %v3966 = vpack.c.b16 %v3546, %v3542
    %v3967 = vpack.c.b16 %v3547, %v3543
    %v3968 = vpack.c.b16 %v3548, %v3544
    %v3969 = vpack.c.b16 %v3549, %v3545
    %v3970 = vpack.c.b16 %v3554, %v3550
    %v3971 = vpack.c.b16 %v3555, %v3551
    %v3972 = vpack.c.b16 %v3556, %v3552
    %v3973 = vpack.c.b16 %v3557, %v3553
    %v3974 = vpack.c.b16 %v3562, %v3558
    %v3975 = vpack.c.b16 %v3563, %v3559
    %v3976 = vpack.c.b16 %v3564, %v3560
    %v3977 = vpack.c.b16 %v3565, %v3561
    %v3978 = vpack.c.b16 %v3570, %v3566
    %v3979 = vpack.c.b16 %v3571, %v3567
    %v3980 = vpack.c.b16 %v3572, %v3568
    %v3981 = vpack.c.b16 %v3573, %v3569
    %v3982 = vpack.c.b16 %v3578, %v3574
    %v3983 = vpack.c.b16 %v3579, %v3575
    %v3984 = vpack.c.b16 %v3580, %v3576
    %v3985 = vpack.c.b16 %v3581, %v3577
    %v3986 = vpack.c.b16 %v3586, %v3582
    %v3987 = vpack.c.b16 %v3587, %v3583
    %v3988 = vpack.c.b16 %v3588, %v3584
    %v3989 = vpack.c.b16 %v3589, %v3585
    %v3990 = vpack.c.b16 %v3594, %v3590
    %v3991 = vpack.c.b16 %v3595, %v3591
    %v3992 = vpack.c.b16 %v3596, %v3592
    %v3993 = vpack.c.b16 %v3597, %v3593
    %v3994 = vpack.c.b16 %v3602, %v3598
    %v3995 = vpack.c.b16 %v3603, %v3599
    %v3996 = vpack.c.b16 %v3604, %v3600
    %v3997 = vpack.c.b16 %v3605, %v3601
    %v3998 = vpack.c.b16 %v3610, %v3606
    %v3999 = vpack.c.b16 %v3611, %v3607
    %v4000 = vpack.c.b16 %v3612, %v3608
    %v4001 = vpack.c.b16 %v3613, %v3609
    %v4002 = vpack.c.b16 %v3618, %v3614
    %v4003 = vpack.c.b16 %v3619, %v3615
    %v4004 = vpack.c.b16 %v3620, %v3616
    %v4005 = vpack.c.b16 %v3621, %v3617
    %v4006 = vpack.c.b16 %v3626, %v3622
    %v4007 = vpack.c.b16 %v3627, %v3623
    %v4008 = vpack.c.b16 %v3628, %v3624
    %v4009 = vpack.c.b16 %v3629, %v3625
    %v4010 = vpack.c.b16 %v3634, %v3630
    %v4011 = vpack.c.b16 %v3635, %v3631
    %v4012 = vpack.c.b16 %v3636, %v3632
    %v4013 = vpack.c.b16 %v3637, %v3633
    %v4014 = vpack.c.b16 %v3642, %v3638
    %v4015 = vpack.c.b16 %v3643, %v3639
    %v4016 = vpack.c.b16 %v3644, %v3640
    %v4017 = vpack.c.b16 %v3645, %v3641
    %v4018 = vpack.c.b16 %v3650, %v3646
    %v4019 = vpack.c.b16 %v3651, %v3647
    %v4020 = vpack.c.b16 %v3652, %v3648
    %v4021 = vpack.c.b16 %v3653, %v3649
    %v4022 = vpack.c.b16 %v3658, %v3654
    %v4023 = vpack.c.b16 %v3659, %v3655
    %v4024 = vpack.c.b16 %v3660, %v3656
    %v4025 = vpack.c.b16 %v3661, %v3657
    %v4026 = vpack.c.b16 %v3666, %v3662
    %v4027 = vpack.c.b16 %v3667, %v3663
    %v4028 = vpack.c.b16 %v3668, %v3664
    %v4029 = vpack.c.b16 %v3669, %v3665
    %v4030 = vpack.c.b16 %v3674, %v3670
    %v4031 = vpack.c.b16 %v3675, %v3671
    %v4032 = vpack.c.b16 %v3676, %v3672
    %v4033 = vpack.c.b16 %v3677, %v3673
    %v4034 = vpack.c.b16 %v3682, %v3678
    %v4035 = vpack.c.b16 %v3683, %v3679
    %v4036 = vpack.c.b16 %v3684, %v3680
    %v4037 = vpack.c.b16 %v3685, %v3681
    %v4038 = vpack.c.b16 %v3690, %v3686
    %v4039 = vpack.c.b16 %v3691, %v3687
    %v4040 = vpack.c.b16 %v3692, %v3688
    %v4041 = vpack.c.b16 %v3693, %v3689
    %v4042 = vpack.c.b16 %v3698, %v3694
    %v4043 = vpack.c.b16 %v3699, %v3695
    %v4044 = vpack.c.b16 %v3700, %v3696
    %v4045 = vpack.c.b16 %v3701, %v3697
    %v4046 = vpack.c.b16 %v3706, %v3702
    %v4047 = vpack.c.b16 %v3707, %v3703
    %v4048 = vpack.c.b16 %v3708, %v3704
    %v4049 = vpack.c.b16 %v3709, %v3705
    %v4050 = vpack.c.b16 %v3714, %v3710
    %v4051 = vpack.c.b16 %v3715, %v3711
    %v4052 = vpack.c.b16 %v3716, %v3712
    %v4053 = vpack.c.b16 %v3717, %v3713
    %v4054 = vpack.c.b16 %v3722, %v3718
    %v4055 = vpack.c.b16 %v3723, %v3719
    %v4056 = vpack.c.b16 %v3724, %v3720
    %v4057 = vpack.c.b16 %v3725, %v3721
    %v4058 = vpack.c.b16 %v3730, %v3726
    %v4059 = vpack.c.b16 %v3731, %v3727
    %v4060 = vpack.c.b16 %v3732, %v3728
    %v4061 = vpack.c.b16 %v3733, %v3729
    %v4062 = vpack.c.b16 %v3738, %v3734
    %v4063 = vpack.c.b16 %v3739, %v3735
    %v4064 = vpack.c.b16 %v3740, %v3736
    %v4065 = vpack.c.b16 %v3741, %v3737
    %v4066 = vpack.c.b16 %v3746, %v3742
    %v4067 = vpack.c.b16 %v3747, %v3743
    %v4068 = vpack.c.b16 %v3748, %v3744
    %v4069 = vpack.c.b16 %v3749, %v3745
    %v4070 = vpack.c.b16 %v3754, %v3750
    %v4071 = vpack.c.b16 %v3755, %v3751
    %v4072 = vpack.c.b16 %v3756, %v3752
    %v4073 = vpack.c.b16 %v3757, %v3753
    %v4074 = vpack.c.b16 %v3762, %v3758
    %v4075 = vpack.c.b16 %v3763, %v3759
    %v4076 = vpack.c.b16 %v3764, %v3760
    %v4077 = vpack.c.b16 %v3765, %v3761
    %v4078 = vpack.c.b16 %v3770, %v3766
    %v4079 = vpack.c.b16 %v3771, %v3767
    %v4080 = vpack.c.b16 %v3772, %v3768
    %v4081 = vpack.c.b16 %v3773, %v3769
    %v4082 = vpack.c.b16 %v3778, %v3774
    %v4083 = vpack.c.b16 %v3779, %v3775
    %v4084 = vpack.c.b16 %v3780, %v3776
    %v4085 = vpack.c.b16 %v3781, %v3777
    %v4086 = vpack.c.b16 %v3786, %v3782
    %v4087 = vpack.c.b16 %v3787, %v3783
    %v4088 = vpack.c.b16 %v3788, %v3784
    %v4089 = vpack.c.b16 %v3789, %v3785
    %v4090 = vpack.c.b16 %v3794, %v3790
    %v4091 = vpack.c.b16 %v3795, %v3791
    %v4092 = vpack.c.b16 %v3796, %v3792
    %v4093 = vpack.c.b16 %v3797, %v3793
    %v4094 = vpack.c.b16 %v3802, %v3798
    %v4095 = vpack.c.b16 %v3803, %v3799
    %v4096 = vpack.c.b16 %v3804, %v3800
    %v4097 = vpack.c.b16 %v3805, %v3801
    %v4098 = vpack.c.b16 %v3810, %v3806
    %v4099 = vpack.c.b16 %v3811, %v3807
    %v4100 = vpack.c.b16 %v3812, %v3808
    %v4101 = vpack.c.b16 %v3813, %v3809
    %v4102 = vpack.c.b16 %v3818, %v3814
    %v4103 = vpack.c.b16 %v3819, %v3815
    %v4104 = vpack.c.b16 %v3820, %v3816
    %v4105 = vpack.c.b16 %v3821, %v3817
    %v4106 = vpack.c.b16 %v3826, %v3822
    %v4107 = vpack.c.b16 %v3827, %v3823
    %v4108 = vpack.c.b16 %v3828, %v3824
    %v4109 = vpack.c.b16 %v3829, %v3825
    %v4110 = vpack.c.b16 %v3834, %v3830
    %v4111 = vpack.c.b16 %v3835, %v3831
    %v4112 = vpack.c.b16 %v3836, %v3832
    %v4113 = vpack.c.b16 %v3837, %v3833
    %v4114 = vpack.c.b16 %v3842, %v3838
    %v4115 = vpack.c.b16 %v3843, %v3839
    %v4116 = vpack.c.b16 %v3844, %v3840
    %v4117 = vpack.c.b16 %v3845, %v3841
    %v4118 = vpack.c.b16 %v3850, %v3846
    %v4119 = vpack.c.b16 %v3851, %v3847
    %v4120 = vpack.c.b16 %v3852, %v3848
    %v4121 = vpack.c.b16 %v3853, %v3849
    %v4122 = vpack.c.b16 %v3858, %v3854
    %v4123 = vpack.c.b16 %v3859, %v3855
    %v4124 = vpack.c.b16 %v3860, %v3856
    %v4125 = vpack.c.b16 %v3861, %v3857
    %v4126 = vpack.c.b16 %v3866, %v3862
    %v4127 = vpack.c.b16 %v3867, %v3863
    %v4128 = vpack.c.b16 %v3868, %v3864
    %v4129 = vpack.c.b16 %v3869, %v3865
    %v4130 = vpack.c.b16 %v3874, %v3870
    %v4131 = vpack.c.b16 %v3875, %v3871
    %v4132 = vpack.c.b16 %v3876, %v3872
    %v4133 = vpack.c.b16 %v3877, %v3873
    %4390 = vmatprep.subr.bf16.mxu0 %v3907
    %4391 = vmatpush1.bf16.msra.mxu0 %v3906
    %4392 = vmatprep.subr.bf16.mxu0 %v3903
    %4393 = vmatpush1.bf16.msra.mxu0 %v3902
    %4394 = vmatprep.subr.bf16.mxu0 %v3899
    %4395 = vmatpush1.bf16.msra.mxu0 %v3898
    %4396 = vmatprep.subr.bf16.mxu0 %v3895
    %4397 = vmatpush1.bf16.msra.mxu0 %v3894
    %4398 = vmatprep.subr.bf16.mxu0 %v3891
    %4399 = vmatpush1.bf16.msra.mxu0 %v3890
    %4400 = vmatprep.subr.bf16.mxu0 %v3887
    %4401 = vmatpush1.bf16.msra.mxu0 %v3886
    %4402 = vmatprep.subr.bf16.mxu0 %v3883
    %4403 = vmatpush1.bf16.msra.mxu0 %v3882
    %4404 = vmatprep.subr.bf16.mxu0 %v3879
    %4405 = vmatpush1.bf16.msra.mxu0 %v3878
    %4406 = vmatprep.subr.bf16.mxu0 %v3939
    %4407 = vmatpush2.bf16.msra.mxu0 %v3938
    %4408 = vmatprep.subr.bf16.mxu0 %v3935
    %4409 = vmatpush2.bf16.msra.mxu0 %v3934
    %4410 = vmatprep.subr.bf16.mxu0 %v3931
    %4411 = vmatpush2.bf16.msra.mxu0 %v3930
    %4412 = vmatprep.subr.bf16.mxu0 %v3927
    %4413 = vmatpush2.bf16.msra.mxu0 %v3926
    %4414 = vmatprep.subr.bf16.mxu0 %v3923
    %4415 = vmatpush2.bf16.msra.mxu0 %v3922
    %4416 = vmatprep.subr.bf16.mxu0 %v3919
    %4417 = vmatpush2.bf16.msra.mxu0 %v3918
    %4418 = vmatprep.subr.bf16.mxu0 %v3915
    %4419 = vmatpush2.bf16.msra.mxu0 %v3914
    %4420 = vmatprep.subr.bf16.mxu0 %v3911
    %4421 = vmatpush2.bf16.msra.mxu0 %v3910
    %4422 = vmatprep.mubr.bf16.mxu0 %v2825
    %4423 = vmatmul.mubr.bf16.gmra.mxu0 %v2824
    %v4424 = vpop.f32.mrf.mxu0
    %v4425 = vadd.f32 %v3093, %v4424
    %v4426 = vpop.f32.mrf.mxu0
    %v4427 = vadd.f32 %v3097, %v4426
    %v4428 = vpop.f32.mrf.mxu0
    %v4429 = vpop.f32.mrf.mxu0
    %4430 = vdwg.mxu0
    %4431 = vmatprep.subr.bf16.mxu0 %v3971
    %4432 = vmatpush1.bf16.msra.mxu0 %v3970
    %4433 = vmatprep.subr.bf16.mxu0 %v3967
    %4434 = vmatpush1.bf16.msra.mxu0 %v3966
    %4435 = vmatprep.subr.bf16.mxu0 %v3963
    %4436 = vmatpush1.bf16.msra.mxu0 %v3962
    %4437 = vmatprep.subr.bf16.mxu0 %v3959
    %4438 = vmatpush1.bf16.msra.mxu0 %v3958
    %4439 = vmatprep.subr.bf16.mxu0 %v3955
    %4440 = vmatpush1.bf16.msra.mxu0 %v3954
    %4441 = vmatprep.subr.bf16.mxu0 %v3951
    %4442 = vmatpush1.bf16.msra.mxu0 %v3950
    %4443 = vmatprep.subr.bf16.mxu0 %v3947
    %4444 = vmatpush1.bf16.msra.mxu0 %v3946
    %4445 = vmatprep.subr.bf16.mxu0 %v3943
    %4446 = vmatpush1.bf16.msra.mxu0 %v3942
    %4447 = vmatprep.subr.bf16.mxu0 %v4003
    %4448 = vmatpush2.bf16.msra.mxu0 %v4002
    %4449 = vmatprep.subr.bf16.mxu0 %v3999
    %4450 = vmatpush2.bf16.msra.mxu0 %v3998
    %4451 = vmatprep.subr.bf16.mxu0 %v3995
    %4452 = vmatpush2.bf16.msra.mxu0 %v3994
    %4453 = vmatprep.subr.bf16.mxu0 %v3991
    %4454 = vmatpush2.bf16.msra.mxu0 %v3990
    %4455 = vmatprep.subr.bf16.mxu0 %v3987
    %4456 = vmatpush2.bf16.msra.mxu0 %v3986
    %4457 = vmatprep.subr.bf16.mxu0 %v3983
    %4458 = vmatpush2.bf16.msra.mxu0 %v3982
    %4459 = vmatprep.subr.bf16.mxu0 %v3979
    %4460 = vmatpush2.bf16.msra.mxu0 %v3978
    %4461 = vmatprep.subr.bf16.mxu0 %v3975
    %4462 = vmatpush2.bf16.msra.mxu0 %v3974
    %4463 = vmatprep.mubr.bf16.mxu0 %v2827
    %4464 = vmatmul.mubr.bf16.gmra.mxu0 %v2826
    %v4465 = vpop.f32.mrf.mxu0
    %v4466 = vadd.f32 %v4425, %v4465
    %v4467 = vpop.f32.mrf.mxu0
    %v4468 = vadd.f32 %v4427, %v4467
    %v4469 = vpop.f32.mrf.mxu0
    %v4470 = vpop.f32.mrf.mxu0
    %4471 = vdwg.mxu0
    %4472 = vmatprep.subr.bf16.mxu0 %v4035
    %4473 = vmatpush1.bf16.msra.mxu0 %v4034
    %4474 = vmatprep.subr.bf16.mxu0 %v4031
    %4475 = vmatpush1.bf16.msra.mxu0 %v4030
    %4476 = vmatprep.subr.bf16.mxu0 %v4027
    %4477 = vmatpush1.bf16.msra.mxu0 %v4026
    %4478 = vmatprep.subr.bf16.mxu0 %v4023
    %4479 = vmatpush1.bf16.msra.mxu0 %v4022
    %4480 = vmatprep.subr.bf16.mxu0 %v4019
    %4481 = vmatpush1.bf16.msra.mxu0 %v4018
    %4482 = vmatprep.subr.bf16.mxu0 %v4015
    %4483 = vmatpush1.bf16.msra.mxu0 %v4014
    %4484 = vmatprep.subr.bf16.mxu0 %v4011
    %4485 = vmatpush1.bf16.msra.mxu0 %v4010
    %4486 = vmatprep.subr.bf16.mxu0 %v4007
    %4487 = vmatpush1.bf16.msra.mxu0 %v4006
    %4488 = vmatprep.subr.bf16.mxu0 %v4067
    %4489 = vmatpush2.bf16.msra.mxu0 %v4066
    %4490 = vmatprep.subr.bf16.mxu0 %v4063
    %4491 = vmatpush2.bf16.msra.mxu0 %v4062
    %4492 = vmatprep.subr.bf16.mxu0 %v4059
    %4493 = vmatpush2.bf16.msra.mxu0 %v4058
    %4494 = vmatprep.subr.bf16.mxu0 %v4055
    %4495 = vmatpush2.bf16.msra.mxu0 %v4054
    %4496 = vmatprep.subr.bf16.mxu0 %v4051
    %4497 = vmatpush2.bf16.msra.mxu0 %v4050
    %4498 = vmatprep.subr.bf16.mxu0 %v4047
    %4499 = vmatpush2.bf16.msra.mxu0 %v4046
    %4500 = vmatprep.subr.bf16.mxu0 %v4043
    %4501 = vmatpush2.bf16.msra.mxu0 %v4042
    %4502 = vmatprep.subr.bf16.mxu0 %v4039
    %4503 = vmatpush2.bf16.msra.mxu0 %v4038
    %4504 = vmatprep.mubr.bf16.mxu0 %v2829
    %4505 = vmatmul.mubr.bf16.gmra.mxu0 %v2828
    %v4506 = vpop.f32.mrf.mxu0
    %v4507 = vadd.f32 %v4466, %v4506
    %v4508 = vpop.f32.mrf.mxu0
    %v4509 = vadd.f32 %v4468, %v4508
    %v4510 = vpop.f32.mrf.mxu0
    %v4511 = vpop.f32.mrf.mxu0
    %4512 = vdwg.mxu0
    %4513 = vmatprep.subr.bf16.mxu0 %v4099
    %4514 = vmatpush1.bf16.msra.mxu0 %v4098
    %4515 = vmatprep.subr.bf16.mxu0 %v4095
    %4516 = vmatpush1.bf16.msra.mxu0 %v4094
    %4517 = vmatprep.subr.bf16.mxu0 %v4091
    %4518 = vmatpush1.bf16.msra.mxu0 %v4090
    %4519 = vmatprep.subr.bf16.mxu0 %v4087
    %4520 = vmatpush1.bf16.msra.mxu0 %v4086
    %4521 = vmatprep.subr.bf16.mxu0 %v4083
    %4522 = vmatpush1.bf16.msra.mxu0 %v4082
    %4523 = vmatprep.subr.bf16.mxu0 %v4079
    %4524 = vmatpush1.bf16.msra.mxu0 %v4078
    %4525 = vmatprep.subr.bf16.mxu0 %v4075
    %4526 = vmatpush1.bf16.msra.mxu0 %v4074
    %4527 = vmatprep.subr.bf16.mxu0 %v4071
    %4528 = vmatpush1.bf16.msra.mxu0 %v4070
    %4529 = vmatprep.subr.bf16.mxu0 %v4131
    %4530 = vmatpush2.bf16.msra.mxu0 %v4130
    %4531 = vmatprep.subr.bf16.mxu0 %v4127
    %4532 = vmatpush2.bf16.msra.mxu0 %v4126
    %4533 = vmatprep.subr.bf16.mxu0 %v4123
    %4534 = vmatpush2.bf16.msra.mxu0 %v4122
    %4535 = vmatprep.subr.bf16.mxu0 %v4119
    %4536 = vmatpush2.bf16.msra.mxu0 %v4118
    %4537 = vmatprep.subr.bf16.mxu0 %v4115
    %4538 = vmatpush2.bf16.msra.mxu0 %v4114
    %4539 = vmatprep.subr.bf16.mxu0 %v4111
    %4540 = vmatpush2.bf16.msra.mxu0 %v4110
    %4541 = vmatprep.subr.bf16.mxu0 %v4107
    %4542 = vmatpush2.bf16.msra.mxu0 %v4106
    %4543 = vmatprep.subr.bf16.mxu0 %v4103
    %4544 = vmatpush2.bf16.msra.mxu0 %v4102
    %4545 = vmatprep.mubr.bf16.mxu0 %v2831
    %4546 = vmatmul.mubr.bf16.gmra.mxu0 %v2830
    %v4547 = vpop.f32.mrf.mxu0
    %v4548 = vadd.f32 %v4507, %v4547
    %v4549 = vpop.f32.mrf.mxu0
    %v4550 = vadd.f32 %v4509, %v4549
    %v4551 = vpop.f32.mrf.mxu0
    %v4552 = vpop.f32.mrf.mxu0
    %4553 = vdwg.mxu0
    %4554 = vmatprep.subr.bf16.mxu0 %v3909
    %4555 = vmatpush1.bf16.msra.mxu0 %v3908
    %4556 = vmatprep.subr.bf16.mxu0 %v3905
    %4557 = vmatpush1.bf16.msra.mxu0 %v3904
    %4558 = vmatprep.subr.bf16.mxu0 %v3901
    %4559 = vmatpush1.bf16.msra.mxu0 %v3900
    %4560 = vmatprep.subr.bf16.mxu0 %v3897
    %4561 = vmatpush1.bf16.msra.mxu0 %v3896
    %4562 = vmatprep.subr.bf16.mxu0 %v3893
    %4563 = vmatpush1.bf16.msra.mxu0 %v3892
    %4564 = vmatprep.subr.bf16.mxu0 %v3889
    %4565 = vmatpush1.bf16.msra.mxu0 %v3888
    %4566 = vmatprep.subr.bf16.mxu0 %v3885
    %4567 = vmatpush1.bf16.msra.mxu0 %v3884
    %4568 = vmatprep.subr.bf16.mxu0 %v3881
    %4569 = vmatpush1.bf16.msra.mxu0 %v3880
    %4570 = vmatprep.subr.bf16.mxu0 %v3941
    %4571 = vmatpush2.bf16.msra.mxu0 %v3940
    %4572 = vmatprep.subr.bf16.mxu0 %v3937
    %4573 = vmatpush2.bf16.msra.mxu0 %v3936
    %4574 = vmatprep.subr.bf16.mxu0 %v3933
    %4575 = vmatpush2.bf16.msra.mxu0 %v3932
    %4576 = vmatprep.subr.bf16.mxu0 %v3929
    %4577 = vmatpush2.bf16.msra.mxu0 %v3928
    %4578 = vmatprep.subr.bf16.mxu0 %v3925
    %4579 = vmatpush2.bf16.msra.mxu0 %v3924
    %4580 = vmatprep.subr.bf16.mxu0 %v3921
    %4581 = vmatpush2.bf16.msra.mxu0 %v3920
    %4582 = vmatprep.subr.bf16.mxu0 %v3917
    %4583 = vmatpush2.bf16.msra.mxu0 %v3916
    %4584 = vmatprep.subr.bf16.mxu0 %v3913
    %4585 = vmatpush2.bf16.msra.mxu0 %v3912
    %4586 = vmatprep.mubr.bf16.mxu0 %v2825
    %4587 = vmatmul.mubr.bf16.gmra.mxu0 %v2824
    %v4588 = vpop.f32.mrf.mxu0
    %v4589 = vadd.f32 %v3101, %v4588
    %v4590 = vpop.f32.mrf.mxu0
    %v4591 = vadd.f32 %v3105, %v4590
    %v4592 = vpop.f32.mrf.mxu0
    %v4593 = vpop.f32.mrf.mxu0
    %4594 = vdwg.mxu0
    %4595 = vmatprep.subr.bf16.mxu0 %v3973
    %4596 = vmatpush1.bf16.msra.mxu0 %v3972
    %4597 = vmatprep.subr.bf16.mxu0 %v3969
    %4598 = vmatpush1.bf16.msra.mxu0 %v3968
    %4599 = vmatprep.subr.bf16.mxu0 %v3965
    %4600 = vmatpush1.bf16.msra.mxu0 %v3964
    %4601 = vmatprep.subr.bf16.mxu0 %v3961
    %4602 = vmatpush1.bf16.msra.mxu0 %v3960
    %4603 = vmatprep.subr.bf16.mxu0 %v3957
    %4604 = vmatpush1.bf16.msra.mxu0 %v3956
    %4605 = vmatprep.subr.bf16.mxu0 %v3953
    %4606 = vmatpush1.bf16.msra.mxu0 %v3952
    %4607 = vmatprep.subr.bf16.mxu0 %v3949
    %4608 = vmatpush1.bf16.msra.mxu0 %v3948
    %4609 = vmatprep.subr.bf16.mxu0 %v3945
    %4610 = vmatpush1.bf16.msra.mxu0 %v3944
    %4611 = vmatprep.subr.bf16.mxu0 %v4005
    %4612 = vmatpush2.bf16.msra.mxu0 %v4004
    %4613 = vmatprep.subr.bf16.mxu0 %v4001
    %4614 = vmatpush2.bf16.msra.mxu0 %v4000
    %4615 = vmatprep.subr.bf16.mxu0 %v3997
    %4616 = vmatpush2.bf16.msra.mxu0 %v3996
    %4617 = vmatprep.subr.bf16.mxu0 %v3993
    %4618 = vmatpush2.bf16.msra.mxu0 %v3992
    %4619 = vmatprep.subr.bf16.mxu0 %v3989
    %4620 = vmatpush2.bf16.msra.mxu0 %v3988
    %4621 = vmatprep.subr.bf16.mxu0 %v3985
    %4622 = vmatpush2.bf16.msra.mxu0 %v3984
    %4623 = vmatprep.subr.bf16.mxu0 %v3981
    %4624 = vmatpush2.bf16.msra.mxu0 %v3980
    %4625 = vmatprep.subr.bf16.mxu0 %v3977
    %4626 = vmatpush2.bf16.msra.mxu0 %v3976
    %4627 = vmatprep.mubr.bf16.mxu0 %v2827
    %4628 = vmatmul.mubr.bf16.gmra.mxu0 %v2826
    %v4629 = vpop.f32.mrf.mxu0
    %v4630 = vadd.f32 %v4589, %v4629
    %v4631 = vpop.f32.mrf.mxu0
    %v4632 = vadd.f32 %v4591, %v4631
    %v4633 = vpop.f32.mrf.mxu0
    %v4634 = vpop.f32.mrf.mxu0
    %4635 = vdwg.mxu0
    %4636 = vmatprep.subr.bf16.mxu0 %v4037
    %4637 = vmatpush1.bf16.msra.mxu0 %v4036
    %4638 = vmatprep.subr.bf16.mxu0 %v4033
    %4639 = vmatpush1.bf16.msra.mxu0 %v4032
    %4640 = vmatprep.subr.bf16.mxu0 %v4029
    %4641 = vmatpush1.bf16.msra.mxu0 %v4028
    %4642 = vmatprep.subr.bf16.mxu0 %v4025
    %4643 = vmatpush1.bf16.msra.mxu0 %v4024
    %4644 = vmatprep.subr.bf16.mxu0 %v4021
    %4645 = vmatpush1.bf16.msra.mxu0 %v4020
    %4646 = vmatprep.subr.bf16.mxu0 %v4017
    %4647 = vmatpush1.bf16.msra.mxu0 %v4016
    %4648 = vmatprep.subr.bf16.mxu0 %v4013
    %4649 = vmatpush1.bf16.msra.mxu0 %v4012
    %4650 = vmatprep.subr.bf16.mxu0 %v4009
    %4651 = vmatpush1.bf16.msra.mxu0 %v4008
    %4652 = vmatprep.subr.bf16.mxu0 %v4069
    %4653 = vmatpush2.bf16.msra.mxu0 %v4068
    %4654 = vmatprep.subr.bf16.mxu0 %v4065
    %4655 = vmatpush2.bf16.msra.mxu0 %v4064
    %4656 = vmatprep.subr.bf16.mxu0 %v4061
    %4657 = vmatpush2.bf16.msra.mxu0 %v4060
    %4658 = vmatprep.subr.bf16.mxu0 %v4057
    %4659 = vmatpush2.bf16.msra.mxu0 %v4056
    %4660 = vmatprep.subr.bf16.mxu0 %v4053
    %4661 = vmatpush2.bf16.msra.mxu0 %v4052
    %4662 = vmatprep.subr.bf16.mxu0 %v4049
    %4663 = vmatpush2.bf16.msra.mxu0 %v4048
    %4664 = vmatprep.subr.bf16.mxu0 %v4045
    %4665 = vmatpush2.bf16.msra.mxu0 %v4044
    %4666 = vmatprep.subr.bf16.mxu0 %v4041
    %4667 = vmatpush2.bf16.msra.mxu0 %v4040
    %4668 = vmatprep.mubr.bf16.mxu0 %v2829
    %4669 = vmatmul.mubr.bf16.gmra.mxu0 %v2828
    %v4670 = vpop.f32.mrf.mxu0
    %v4671 = vadd.f32 %v4630, %v4670
    %v4672 = vpop.f32.mrf.mxu0
    %v4673 = vadd.f32 %v4632, %v4672
    %v4674 = vpop.f32.mrf.mxu0
    %v4675 = vpop.f32.mrf.mxu0
    %4676 = vdwg.mxu0
    %4677 = vmatprep.subr.bf16.mxu0 %v4101
    %4678 = vmatpush1.bf16.msra.mxu0 %v4100
    %4679 = vmatprep.subr.bf16.mxu0 %v4097
    %4680 = vmatpush1.bf16.msra.mxu0 %v4096
    %4681 = vmatprep.subr.bf16.mxu0 %v4093
    %4682 = vmatpush1.bf16.msra.mxu0 %v4092
    %4683 = vmatprep.subr.bf16.mxu0 %v4089
    %4684 = vmatpush1.bf16.msra.mxu0 %v4088
    %4685 = vmatprep.subr.bf16.mxu0 %v4085
    %4686 = vmatpush1.bf16.msra.mxu0 %v4084
    %4687 = vmatprep.subr.bf16.mxu0 %v4081
    %4688 = vmatpush1.bf16.msra.mxu0 %v4080
    %4689 = vmatprep.subr.bf16.mxu0 %v4077
    %4690 = vmatpush1.bf16.msra.mxu0 %v4076
    %4691 = vmatprep.subr.bf16.mxu0 %v4073
    %4692 = vmatpush1.bf16.msra.mxu0 %v4072
    %4693 = vmatprep.subr.bf16.mxu0 %v4133
    %4694 = vmatpush2.bf16.msra.mxu0 %v4132
    %4695 = vmatprep.subr.bf16.mxu0 %v4129
    %4696 = vmatpush2.bf16.msra.mxu0 %v4128
    %4697 = vmatprep.subr.bf16.mxu0 %v4125
    %4698 = vmatpush2.bf16.msra.mxu0 %v4124
    %4699 = vmatprep.subr.bf16.mxu0 %v4121
    %4700 = vmatpush2.bf16.msra.mxu0 %v4120
    %4701 = vmatprep.subr.bf16.mxu0 %v4117
    %4702 = vmatpush2.bf16.msra.mxu0 %v4116
    %4703 = vmatprep.subr.bf16.mxu0 %v4113
    %4704 = vmatpush2.bf16.msra.mxu0 %v4112
    %4705 = vmatprep.subr.bf16.mxu0 %v4109
    %4706 = vmatpush2.bf16.msra.mxu0 %v4108
    %4707 = vmatprep.subr.bf16.mxu0 %v4105
    %4708 = vmatpush2.bf16.msra.mxu0 %v4104
    %4709 = vmatprep.mubr.bf16.mxu0 %v2831
    %4710 = vmatmul.mubr.bf16.gmra.mxu0 %v2830
    %v4711 = vpop.f32.mrf.mxu0
    %v4712 = vadd.f32 %v4671, %v4711
    %v4713 = vpop.f32.mrf.mxu0
    %v4714 = vadd.f32 %v4673, %v4713
    %v4715 = vpop.f32.mrf.mxu0
    %v4716 = vpop.f32.mrf.mxu0
    %4717 = vdwg.mxu0
    %v4718 = vmul.f32 %v4548, 0.2
    %v4719 = vmul.f32 %v4550, 0.2
    %v4720 = vmul.f32 %v4712, 0.2
    %v4721 = vmul.f32 %v4714, 0.2
    %v4722 = vmax.f32 %v4548, %v4718
    %v4723 = vmax.f32 %v4550, %v4719
    %v4724 = vmax.f32 %v4712, %v4720
    %v4725 = vmax.f32 %v4714, %v4721
    %v4726 = vld [vmem:[%s11] sm:$0xff]
    %v4727 = vld [vmem:[%s11 + $0x8] sm:$0xff]
    %v4728 = vld [vmem:[%s11 + $0x10] sm:$0xff]
    %v4729 = vld [vmem:[%s11 + $0x18] sm:$0xff]
    %v4730 = vld [vmem:[%s11 + $0x20] sm:$0xff]
    %v4731 = vld [vmem:[%s11 + $0x28] sm:$0xff]
    %v4732 = vld [vmem:[%s11 + $0x30] sm:$0xff]
    %v4733 = vld [vmem:[%s11 + $0x38] sm:$0xff]
    %v4734 = vld [vmem:[%s11 + $0x40] sm:$0xff]
    %v4735 = vld [vmem:[%s11 + $0x48] sm:$0xff]
    %v4736 = vld [vmem:[%s11 + $0x50] sm:$0xff]
    %v4737 = vld [vmem:[%s11 + $0x58] sm:$0xff]
    %v4738 = vld [vmem:[%s11 + $0x60] sm:$0xff]
    %v4739 = vld [vmem:[%s11 + $0x68] sm:$0xff]
    %v4740 = vld [vmem:[%s11 + $0x70] sm:$0xff]
    %v4741 = vld [vmem:[%s11 + $0x78] sm:$0xff]
    %v4742 = vld [vmem:[%s11 + $0x80] sm:$0xff]
    %v4743 = vld [vmem:[%s11 + $0x88] sm:$0xff]
    %v4744 = vld [vmem:[%s11 + $0x90] sm:$0xff]
    %v4745 = vld [vmem:[%s11 + $0x98] sm:$0xff]
    %v4746 = vld [vmem:[%s11 + $0xa0] sm:$0xff]
    %v4747 = vld [vmem:[%s11 + $0xa8] sm:$0xff]
    %v4748 = vld [vmem:[%s11 + $0xb0] sm:$0xff]
    %v4749 = vld [vmem:[%s11 + $0xb8] sm:$0xff]
    %v4750 = vld [vmem:[%s11 + $0xc0] sm:$0xff]
    %v4751 = vld [vmem:[%s11 + $0xc8] sm:$0xff]
    %v4752 = vld [vmem:[%s11 + $0xd0] sm:$0xff]
    %v4753 = vld [vmem:[%s11 + $0xd8] sm:$0xff]
    %v4754 = vld [vmem:[%s11 + $0xe0] sm:$0xff]
    %v4755 = vld [vmem:[%s11 + $0xe8] sm:$0xff]
    %v4756 = vld [vmem:[%s11 + $0xf0] sm:$0xff]
    %v4757 = vld [vmem:[%s11 + $0xf8] sm:$0xff]
    %v4758 = vld [vmem:[%s11 + $0x100] sm:$0xff]
    %v4759 = vld [vmem:[%s11 + $0x108] sm:$0xff]
    %v4760 = vld [vmem:[%s11 + $0x110] sm:$0xff]
    %v4761 = vld [vmem:[%s11 + $0x118] sm:$0xff]
    %v4762 = vld [vmem:[%s11 + $0x120] sm:$0xff]
    %v4763 = vld [vmem:[%s11 + $0x128] sm:$0xff]
    %v4764 = vld [vmem:[%s11 + $0x130] sm:$0xff]
    %v4765 = vld [vmem:[%s11 + $0x138] sm:$0xff]
    %v4766 = vld [vmem:[%s11 + $0x140] sm:$0xff]
    %v4767 = vld [vmem:[%s11 + $0x148] sm:$0xff]
    %v4768 = vld [vmem:[%s11 + $0x150] sm:$0xff]
    %v4769 = vld [vmem:[%s11 + $0x158] sm:$0xff]
    %v4770 = vld [vmem:[%s11 + $0x160] sm:$0xff]
    %v4771 = vld [vmem:[%s11 + $0x168] sm:$0xff]
    %v4772 = vld [vmem:[%s11 + $0x170] sm:$0xff]
    %v4773 = vld [vmem:[%s11 + $0x178] sm:$0xff]
    %v4774 = vld [vmem:[%s11 + $0x180] sm:$0xff]
    %v4775 = vld [vmem:[%s11 + $0x188] sm:$0xff]
    %v4776 = vld [vmem:[%s11 + $0x190] sm:$0xff]
    %v4777 = vld [vmem:[%s11 + $0x198] sm:$0xff]
    %v4778 = vld [vmem:[%s11 + $0x1a0] sm:$0xff]
    %v4779 = vld [vmem:[%s11 + $0x1a8] sm:$0xff]
    %v4780 = vld [vmem:[%s11 + $0x1b0] sm:$0xff]
    %v4781 = vld [vmem:[%s11 + $0x1b8] sm:$0xff]
    %v4782 = vld [vmem:[%s11 + $0x1c0] sm:$0xff]
    %v4783 = vld [vmem:[%s11 + $0x1c8] sm:$0xff]
    %v4784 = vld [vmem:[%s11 + $0x1d0] sm:$0xff]
    %v4785 = vld [vmem:[%s11 + $0x1d8] sm:$0xff]
    %v4786 = vld [vmem:[%s11 + $0x1e0] sm:$0xff]
    %v4787 = vld [vmem:[%s11 + $0x1e8] sm:$0xff]
    %v4788 = vld [vmem:[%s11 + $0x1f0] sm:$0xff]
    %v4789 = vld [vmem:[%s11 + $0x1f8] sm:$0xff]
    %v4790 = vld [vmem:[%s11 + $0x200] sm:$0xff]
    %v4791 = vld [vmem:[%s11 + $0x208] sm:$0xff]
    %v4792 = vld [vmem:[%s11 + $0x210] sm:$0xff]
    %v4793 = vld [vmem:[%s11 + $0x218] sm:$0xff]
    %v4794 = vld [vmem:[%s11 + $0x220] sm:$0xff]
    %v4795 = vld [vmem:[%s11 + $0x228] sm:$0xff]
    %v4796 = vld [vmem:[%s11 + $0x230] sm:$0xff]
    %v4797 = vld [vmem:[%s11 + $0x238] sm:$0xff]
    %v4798 = vld [vmem:[%s11 + $0x240] sm:$0xff]
    %v4799 = vld [vmem:[%s11 + $0x248] sm:$0xff]
    %v4800 = vld [vmem:[%s11 + $0x250] sm:$0xff]
    %v4801 = vld [vmem:[%s11 + $0x258] sm:$0xff]
    %v4802 = vld [vmem:[%s11 + $0x260] sm:$0xff]
    %v4803 = vld [vmem:[%s11 + $0x268] sm:$0xff]
    %v4804 = vld [vmem:[%s11 + $0x270] sm:$0xff]
    %v4805 = vld [vmem:[%s11 + $0x278] sm:$0xff]
    %v4806 = vld [vmem:[%s11 + $0x280] sm:$0xff]
    %v4807 = vld [vmem:[%s11 + $0x288] sm:$0xff]
    %v4808 = vld [vmem:[%s11 + $0x290] sm:$0xff]
    %v4809 = vld [vmem:[%s11 + $0x298] sm:$0xff]
    %v4810 = vld [vmem:[%s11 + $0x2a0] sm:$0xff]
    %v4811 = vld [vmem:[%s11 + $0x2a8] sm:$0xff]
    %v4812 = vld [vmem:[%s11 + $0x2b0] sm:$0xff]
    %v4813 = vld [vmem:[%s11 + $0x2b8] sm:$0xff]
    %v4814 = vld [vmem:[%s11 + $0x2c0] sm:$0xff]
    %v4815 = vld [vmem:[%s11 + $0x2c8] sm:$0xff]
    %v4816 = vld [vmem:[%s11 + $0x2d0] sm:$0xff]
    %v4817 = vld [vmem:[%s11 + $0x2d8] sm:$0xff]
    %v4818 = vld [vmem:[%s11 + $0x2e0] sm:$0xff]
    %v4819 = vld [vmem:[%s11 + $0x2e8] sm:$0xff]
    %v4820 = vld [vmem:[%s11 + $0x2f0] sm:$0xff]
    %v4821 = vld [vmem:[%s11 + $0x2f8] sm:$0xff]
    %v4822 = vld [vmem:[%s11 + $0x300] sm:$0xff]
    %v4823 = vld [vmem:[%s11 + $0x308] sm:$0xff]
    %v4824 = vld [vmem:[%s11 + $0x310] sm:$0xff]
    %v4825 = vld [vmem:[%s11 + $0x318] sm:$0xff]
    %v4826 = vld [vmem:[%s11 + $0x320] sm:$0xff]
    %v4827 = vld [vmem:[%s11 + $0x328] sm:$0xff]
    %v4828 = vld [vmem:[%s11 + $0x330] sm:$0xff]
    %v4829 = vld [vmem:[%s11 + $0x338] sm:$0xff]
    %v4830 = vld [vmem:[%s11 + $0x340] sm:$0xff]
    %v4831 = vld [vmem:[%s11 + $0x348] sm:$0xff]
    %v4832 = vld [vmem:[%s11 + $0x350] sm:$0xff]
    %v4833 = vld [vmem:[%s11 + $0x358] sm:$0xff]
    %v4834 = vld [vmem:[%s11 + $0x360] sm:$0xff]
    %v4835 = vld [vmem:[%s11 + $0x368] sm:$0xff]
    %v4836 = vld [vmem:[%s11 + $0x370] sm:$0xff]
    %v4837 = vld [vmem:[%s11 + $0x378] sm:$0xff]
    %v4838 = vld [vmem:[%s11 + $0x380] sm:$0xff]
    %v4839 = vld [vmem:[%s11 + $0x388] sm:$0xff]
    %v4840 = vld [vmem:[%s11 + $0x390] sm:$0xff]
    %v4841 = vld [vmem:[%s11 + $0x398] sm:$0xff]
    %v4842 = vld [vmem:[%s11 + $0x3a0] sm:$0xff]
    %v4843 = vld [vmem:[%s11 + $0x3a8] sm:$0xff]
    %v4844 = vld [vmem:[%s11 + $0x3b0] sm:$0xff]
    %v4845 = vld [vmem:[%s11 + $0x3b8] sm:$0xff]
    %v4846 = vld [vmem:[%s11 + $0x3c0] sm:$0xff]
    %v4847 = vld [vmem:[%s11 + $0x3c8] sm:$0xff]
    %v4848 = vld [vmem:[%s11 + $0x3d0] sm:$0xff]
    %v4849 = vld [vmem:[%s11 + $0x3d8] sm:$0xff]
    %v4850 = vld [vmem:[%s11 + $0x3e0] sm:$0xff]
    %v4851 = vld [vmem:[%s11 + $0x3e8] sm:$0xff]
    %v4852 = vld [vmem:[%s11 + $0x3f0] sm:$0xff]
    %v4853 = vld [vmem:[%s11 + $0x3f8] sm:$0xff]
    %v4854 = vld [vmem:[%s12] sm:$0x3]
    %v4856 = vlaneseq
    %v4857 = vshrl.u32 %v4856, 7
    %v4858 = vsub.s32 0, %v4857
    %v4859 = vrot.slane %v4854, %v4858
    %v4860 = vlaneseq
    %v4861 = vshrl.u32 %v4860, 7
    %v4862 = vsub.s32 1, %v4861
    %v4863 = vrot.slane %v4854, %v4862
    %4866 = vmatprep.subr.mxu0 %v4757
    %4867 = vmatpush1.msra.mxu0 %v4756
    %4868 = vmatprep.subr.mxu0 %v4755
    %4869 = vmatpush1.msra.mxu0 %v4754
    %4870 = vmatprep.subr.mxu0 %v4753
    %4871 = vmatpush1.msra.mxu0 %v4752
    %4872 = vmatprep.subr.mxu0 %v4751
    %4873 = vmatpush1.msra.mxu0 %v4750
    %4874 = vmatprep.subr.mxu0 %v4749
    %4875 = vmatpush1.msra.mxu0 %v4748
    %4876 = vmatprep.subr.mxu0 %v4747
    %4877 = vmatpush1.msra.mxu0 %v4746
    %4878 = vmatprep.subr.mxu0 %v4745
    %4879 = vmatpush1.msra.mxu0 %v4744
    %4880 = vmatprep.subr.mxu0 %v4743
    %4881 = vmatpush1.msra.mxu0 %v4742
    %4882 = vmatprep.subr.mxu0 %v4741
    %4883 = vmatpush1.msra.mxu0 %v4740
    %4884 = vmatprep.subr.mxu0 %v4739
    %4885 = vmatpush1.msra.mxu0 %v4738
    %4886 = vmatprep.subr.mxu0 %v4737
    %4887 = vmatpush1.msra.mxu0 %v4736
    %4888 = vmatprep.subr.mxu0 %v4735
    %4889 = vmatpush1.msra.mxu0 %v4734
    %4890 = vmatprep.subr.mxu0 %v4733
    %4891 = vmatpush1.msra.mxu0 %v4732
    %4892 = vmatprep.subr.mxu0 %v4731
    %4893 = vmatpush1.msra.mxu0 %v4730
    %4894 = vmatprep.subr.mxu0 %v4729
    %4895 = vmatpush1.msra.mxu0 %v4728
    %4896 = vmatprep.subr.mxu0 %v4727
    %4897 = vmatpush1.msra.mxu0 %v4726
    %4898 = vmatprep.subr.mxu0 %v4789
    %4899 = vmatpush2.msra.mxu0 %v4788
    %4900 = vmatprep.subr.mxu0 %v4787
    %4901 = vmatpush2.msra.mxu0 %v4786
    %4902 = vmatprep.subr.mxu0 %v4785
    %4903 = vmatpush2.msra.mxu0 %v4784
    %4904 = vmatprep.subr.mxu0 %v4783
    %4905 = vmatpush2.msra.mxu0 %v4782
    %4906 = vmatprep.subr.mxu0 %v4781
    %4907 = vmatpush2.msra.mxu0 %v4780
    %4908 = vmatprep.subr.mxu0 %v4779
    %4909 = vmatpush2.msra.mxu0 %v4778
    %4910 = vmatprep.subr.mxu0 %v4777
    %4911 = vmatpush2.msra.mxu0 %v4776
    %4912 = vmatprep.subr.mxu0 %v4775
    %4913 = vmatpush2.msra.mxu0 %v4774
    %4914 = vmatprep.subr.mxu0 %v4773
    %4915 = vmatpush2.msra.mxu0 %v4772
    %4916 = vmatprep.subr.mxu0 %v4771
    %4917 = vmatpush2.msra.mxu0 %v4770
    %4918 = vmatprep.subr.mxu0 %v4769
    %4919 = vmatpush2.msra.mxu0 %v4768
    %4920 = vmatprep.subr.mxu0 %v4767
    %4921 = vmatpush2.msra.mxu0 %v4766
    %4922 = vmatprep.subr.mxu0 %v4765
    %4923 = vmatpush2.msra.mxu0 %v4764
    %4924 = vmatprep.subr.mxu0 %v4763
    %4925 = vmatpush2.msra.mxu0 %v4762
    %4926 = vmatprep.subr.mxu0 %v4761
    %4927 = vmatpush2.msra.mxu0 %v4760
    %4928 = vmatprep.subr.mxu0 %v4759
    %4929 = vmatpush2.msra.mxu0 %v4758
    %4930 = vmatprep.mubr.f32.mxu0 %v4723
    %4931 = vmatmul.mubr.f32.gmra.mxu0 %v4722
    %v4932 = vpop.f32.mrf.mxu0
    %v4933 = vadd.f32 %v4859, %v4932
    %v4934 = vpop.f32.mrf.mxu0
    %v4935 = vadd.f32 %v4863, %v4934
    %4936 = vdwg.mxu0
    %4937 = vmatprep.subr.mxu0 %v4821
    %4938 = vmatpush1.msra.mxu0 %v4820
    %4939 = vmatprep.subr.mxu0 %v4819
    %4940 = vmatpush1.msra.mxu0 %v4818
    %4941 = vmatprep.subr.mxu0 %v4817
    %4942 = vmatpush1.msra.mxu0 %v4816
    %4943 = vmatprep.subr.mxu0 %v4815
    %4944 = vmatpush1.msra.mxu0 %v4814
    %4945 = vmatprep.subr.mxu0 %v4813
    %4946 = vmatpush1.msra.mxu0 %v4812
    %4947 = vmatprep.subr.mxu0 %v4811
    %4948 = vmatpush1.msra.mxu0 %v4810
    %4949 = vmatprep.subr.mxu0 %v4809
    %4950 = vmatpush1.msra.mxu0 %v4808
    %4951 = vmatprep.subr.mxu0 %v4807
    %4952 = vmatpush1.msra.mxu0 %v4806
    %4953 = vmatprep.subr.mxu0 %v4805
    %4954 = vmatpush1.msra.mxu0 %v4804
    %4955 = vmatprep.subr.mxu0 %v4803
    %4956 = vmatpush1.msra.mxu0 %v4802
    %4957 = vmatprep.subr.mxu0 %v4801
    %4958 = vmatpush1.msra.mxu0 %v4800
    %4959 = vmatprep.subr.mxu0 %v4799
    %4960 = vmatpush1.msra.mxu0 %v4798
    %4961 = vmatprep.subr.mxu0 %v4797
    %4962 = vmatpush1.msra.mxu0 %v4796
    %4963 = vmatprep.subr.mxu0 %v4795
    %4964 = vmatpush1.msra.mxu0 %v4794
    %4965 = vmatprep.subr.mxu0 %v4793
    %4966 = vmatpush1.msra.mxu0 %v4792
    %4967 = vmatprep.subr.mxu0 %v4791
    %4968 = vmatpush1.msra.mxu0 %v4790
    %4969 = vmatprep.subr.mxu0 %v4853
    %4970 = vmatpush2.msra.mxu0 %v4852
    %4971 = vmatprep.subr.mxu0 %v4851
    %4972 = vmatpush2.msra.mxu0 %v4850
    %4973 = vmatprep.subr.mxu0 %v4849
    %4974 = vmatpush2.msra.mxu0 %v4848
    %4975 = vmatprep.subr.mxu0 %v4847
    %4976 = vmatpush2.msra.mxu0 %v4846
    %4977 = vmatprep.subr.mxu0 %v4845
    %4978 = vmatpush2.msra.mxu0 %v4844
    %4979 = vmatprep.subr.mxu0 %v4843
    %4980 = vmatpush2.msra.mxu0 %v4842
    %4981 = vmatprep.subr.mxu0 %v4841
    %4982 = vmatpush2.msra.mxu0 %v4840
    %4983 = vmatprep.subr.mxu0 %v4839
    %4984 = vmatpush2.msra.mxu0 %v4838
    %4985 = vmatprep.subr.mxu0 %v4837
    %4986 = vmatpush2.msra.mxu0 %v4836
    %4987 = vmatprep.subr.mxu0 %v4835
    %4988 = vmatpush2.msra.mxu0 %v4834
    %4989 = vmatprep.subr.mxu0 %v4833
    %4990 = vmatpush2.msra.mxu0 %v4832
    %4991 = vmatprep.subr.mxu0 %v4831
    %4992 = vmatpush2.msra.mxu0 %v4830
    %4993 = vmatprep.subr.mxu0 %v4829
    %4994 = vmatpush2.msra.mxu0 %v4828
    %4995 = vmatprep.subr.mxu0 %v4827
    %4996 = vmatpush2.msra.mxu0 %v4826
    %4997 = vmatprep.subr.mxu0 %v4825
    %4998 = vmatpush2.msra.mxu0 %v4824
    %4999 = vmatprep.subr.mxu0 %v4823
    %5000 = vmatpush2.msra.mxu0 %v4822
    %5001 = vmatprep.mubr.f32.mxu0 %v4725
    %5002 = vmatmul.mubr.f32.gmra.mxu0 %v4724
    %v5003 = vpop.f32.mrf.mxu0
    %v5004 = vadd.f32 %v4933, %v5003
    %v5005 = vpop.f32.mrf.mxu0
    %v5006 = vadd.f32 %v4935, %v5005
    %5007 = vdwg.mxu0
    %v5008 = vmul.f32 %v5004, 0.2
    %v5009 = vmul.f32 %v5006, 0.2
    %v5010 = vmax.f32 %v5004, %v5008
    %v5011 = vmax.f32 %v5006, %v5009
    %v5012 = vld [vmem:[%s13] sm:$0xff]
    %v5013 = vld [vmem:[%s13 + $0x8] sm:$0xff]
    %v5014 = vld [vmem:[%s13 + $0x10] sm:$0xff]
    %v5015 = vld [vmem:[%s13 + $0x18] sm:$0xff]
    %v5016 = vld [vmem:[%s13 + $0x20] sm:$0xff]
    %v5017 = vld [vmem:[%s13 + $0x28] sm:$0xff]
    %v5018 = vld [vmem:[%s13 + $0x30] sm:$0xff]
    %v5019 = vld [vmem:[%s13 + $0x38] sm:$0xff]
    %v5020 = vld [vmem:[%s13 + $0x40] sm:$0xff]
    %v5021 = vld [vmem:[%s13 + $0x48] sm:$0xff]
    %v5022 = vld [vmem:[%s13 + $0x50] sm:$0xff]
    %v5023 = vld [vmem:[%s13 + $0x58] sm:$0xff]
    %v5024 = vld [vmem:[%s13 + $0x60] sm:$0xff]
    %v5025 = vld [vmem:[%s13 + $0x68] sm:$0xff]
    %v5026 = vld [vmem:[%s13 + $0x70] sm:$0xff]
    %v5027 = vld [vmem:[%s13 + $0x78] sm:$0xff]
    %v5028 = vld [vmem:[%s13 + $0x80] sm:$0xff]
    %v5029 = vld [vmem:[%s13 + $0x88] sm:$0xff]
    %v5030 = vld [vmem:[%s13 + $0x90] sm:$0xff]
    %v5031 = vld [vmem:[%s13 + $0x98] sm:$0xff]
    %v5032 = vld [vmem:[%s13 + $0xa0] sm:$0xff]
    %v5033 = vld [vmem:[%s13 + $0xa8] sm:$0xff]
    %v5034 = vld [vmem:[%s13 + $0xb0] sm:$0xff]
    %v5035 = vld [vmem:[%s13 + $0xb8] sm:$0xff]
    %v5036 = vld [vmem:[%s13 + $0xc0] sm:$0xff]
    %v5037 = vld [vmem:[%s13 + $0xc8] sm:$0xff]
    %v5038 = vld [vmem:[%s13 + $0xd0] sm:$0xff]
    %v5039 = vld [vmem:[%s13 + $0xd8] sm:$0xff]
    %v5040 = vld [vmem:[%s13 + $0xe0] sm:$0xff]
    %v5041 = vld [vmem:[%s13 + $0xe8] sm:$0xff]
    %v5042 = vld [vmem:[%s13 + $0xf0] sm:$0xff]
    %v5043 = vld [vmem:[%s13 + $0xf8] sm:$0xff]
    %v5044 = vld [vmem:[#allocation4] sm:$0x1]
    %v5046 = vlaneseq
    %v5047 = vshrl.u32 %v5046, 7
    %v5048 = vsub.s32 0, %v5047
    %v5049 = vrot.slane %v5044, %v5048
    %5051 = vmatprep.subr.mxu0 0.0
    %5052 = vmatpush1.msra.mxu0 %v5027
    %5053 = vmatprep.subr.mxu0 0.0
    %5054 = vmatpush1.msra.mxu0 %v5026
    %5055 = vmatprep.subr.mxu0 0.0
    %5056 = vmatpush1.msra.mxu0 %v5025
    %5057 = vmatprep.subr.mxu0 0.0
    %5058 = vmatpush1.msra.mxu0 %v5024
    %5059 = vmatprep.subr.mxu0 0.0
    %5060 = vmatpush1.msra.mxu0 %v5023
    %5061 = vmatprep.subr.mxu0 0.0
    %5062 = vmatpush1.msra.mxu0 %v5022
    %5063 = vmatprep.subr.mxu0 0.0
    %5064 = vmatpush1.msra.mxu0 %v5021
    %5065 = vmatprep.subr.mxu0 0.0
    %5066 = vmatpush1.msra.mxu0 %v5020
    %5067 = vmatprep.subr.mxu0 0.0
    %5068 = vmatpush1.msra.mxu0 %v5019
    %5069 = vmatprep.subr.mxu0 0.0
    %5070 = vmatpush1.msra.mxu0 %v5018
    %5071 = vmatprep.subr.mxu0 0.0
    %5072 = vmatpush1.msra.mxu0 %v5017
    %5073 = vmatprep.subr.mxu0 0.0
    %5074 = vmatpush1.msra.mxu0 %v5016
    %5075 = vmatprep.subr.mxu0 0.0
    %5076 = vmatpush1.msra.mxu0 %v5015
    %5077 = vmatprep.subr.mxu0 0.0
    %5078 = vmatpush1.msra.mxu0 %v5014
    %5079 = vmatprep.subr.mxu0 0.0
    %5080 = vmatpush1.msra.mxu0 %v5013
    %5081 = vmatprep.subr.mxu0 0.0
    %5082 = vmatpush1.msra.mxu0 %v5012
    %5083 = vmatprep.subr.mxu0 0.0
    %5084 = vmatpush2.msra.mxu0 %v5043
    %5085 = vmatprep.subr.mxu0 0.0
    %5086 = vmatpush2.msra.mxu0 %v5042
    %5087 = vmatprep.subr.mxu0 0.0
    %5088 = vmatpush2.msra.mxu0 %v5041
    %5089 = vmatprep.subr.mxu0 0.0
    %5090 = vmatpush2.msra.mxu0 %v5040
    %5091 = vmatprep.subr.mxu0 0.0
    %5092 = vmatpush2.msra.mxu0 %v5039
    %5093 = vmatprep.subr.mxu0 0.0
    %5094 = vmatpush2.msra.mxu0 %v5038
    %5095 = vmatprep.subr.mxu0 0.0
    %5096 = vmatpush2.msra.mxu0 %v5037
    %5097 = vmatprep.subr.mxu0 0.0
    %5098 = vmatpush2.msra.mxu0 %v5036
    %5099 = vmatprep.subr.mxu0 0.0
    %5100 = vmatpush2.msra.mxu0 %v5035
    %5101 = vmatprep.subr.mxu0 0.0
    %5102 = vmatpush2.msra.mxu0 %v5034
    %5103 = vmatprep.subr.mxu0 0.0
    %5104 = vmatpush2.msra.mxu0 %v5033
    %5105 = vmatprep.subr.mxu0 0.0
    %5106 = vmatpush2.msra.mxu0 %v5032
    %5107 = vmatprep.subr.mxu0 0.0
    %5108 = vmatpush2.msra.mxu0 %v5031
    %5109 = vmatprep.subr.mxu0 0.0
    %5110 = vmatpush2.msra.mxu0 %v5030
    %5111 = vmatprep.subr.mxu0 0.0
    %5112 = vmatpush2.msra.mxu0 %v5029
    %5113 = vmatprep.subr.mxu0 0.0
    %5114 = vmatpush2.msra.mxu0 %v5028
    %5115 = vmatprep.mubr.f32.mxu0 %v5011
    %5116 = vmatmul.mubr.f32.gmra.mxu0 %v5010
    %v5117 = vpop.f32.mrf.mxu0
    %v5118 = vadd.f32 %v5049, %v5117
    %v5119 = vpop.f32.mrf.mxu0
    %5120 = vdwg.mxu0
    %v5121 = vmul.f32 %v5118, 0.2
    %v5122 = vmax.f32 %v5118, %v5121
    %5123 = vst.msk [vmem:[%s15] sm:$0x3] %vm96, %v5122
  $region69: #{mesh_des_forward.1} parent=0 // pred_fallthru
    _
  // Predicated region
  $region70: #{mesh_des_forward.1} parent=0 // pred_check
    _
  $region71: #{mesh_des_forward.1} parent=0 // pred_check_branch
    %5125 = sbr.rel (0) target = $region73
  $region72: #{mesh_des_forward.1} parent=0 // pred_region
    _
  $region73: #{mesh_des_forward.1} parent=0 // pred_fallthru
    _
  // Predicated region
  $region74: #{mesh_des_forward.1} parent=0 // pred_check
    _
  $region75: #{mesh_des_forward.1} parent=0 // pred_check_branch
    %5127 = sbr.rel (0) target = $region77
  $region76: #{mesh_des_forward.1} parent=0 // pred_region
    _
  $region77: #{mesh_des_forward.1} parent=0 // pred_fallthru
    _

</llo_original>
